<compile_context>
chip_gen: v5e
topology: v5e:2x2
jax: 0.10.0
libtpu: 0.0.40
codegen_flags: <defaults>
</compile_context>

<pallas_src>
import jax
import jax.numpy as jnp
from jax.experimental import pallas as pl
from jax.experimental.pallas import tpu as pltpu


_MiB = 1024 * 1024


def _is_dual_core_tpu():
    """True on chips with 2 TensorCores per chip (v7x) -> keep an N split."""
    try:
        kind = jax.devices()[0].device_kind.lower()
    except Exception:
        return False
    return ("v7" in kind) or ("7x" in kind)


def _pick_tile(dim, max_tile, multiple=128):
    """Largest tile <= max_tile that divides dim (dim is a multiple of 128)."""
    t = min(max_tile, dim)
    while dim % t != 0:
        t -= multiple
    return t


# ---------------------------------------------------------------------------
# Fully-fused encoder (single-TC path):
#   out = relu(relu(x @ w1 + b1) @ w2 + b2) @ [w31|w32] + [b31|b32]
# fc1 weights streamed over a 1-D K grid; tail folded into the last K step.
# ---------------------------------------------------------------------------
def _encoder_fused_kernel(x_ref, w1_ref, b1_ref, w2_ref, b2_ref,
                          w3_ref, b3_ref, o_ref, acc_ref):
    k = pl.program_id(0)
    tk = w1_ref.shape[0]

    @pl.when(k == 0)
    def _():
        acc_ref[...] = jnp.zeros_like(acc_ref)

    off = pl.multiple_of(k * tk, 128)
    acc_ref[...] += jnp.dot(x_ref[:, pl.ds(off, tk)], w1_ref[...],
                            preferred_element_type=jnp.float32)

    @pl.when(k == pl.num_programs(0) - 1)
    def _():
        h1 = jnp.maximum(acc_ref[...] + b1_ref[...], 0.0)           # relu(fc1)
        h2 = jnp.dot(h1.astype(w2_ref.dtype), w2_ref[...],
                     preferred_element_type=jnp.float32)
        h2 = jnp.maximum(h2 + b2_ref[...], 0.0)                     # relu(fc2)
        out = jnp.dot(h2.astype(w3_ref.dtype), w3_ref[...],
                      preferred_element_type=jnp.float32)
        o_ref[...] = (out + b3_ref[...]).astype(o_ref.dtype)        # [mu|logvar]


def encoder_fused(x, w1, b1, w2, b2, w3, b3, *, tk_max=8192,
                  vmem_limit_bytes=64 * _MiB):
    """x:(M,K) bf16, w1:(K,N) bf16, w2:(N,H) bf16, w3:(H,NO) bf16, biases f32."""
    M, K = x.shape
    K2, N = w1.shape
    N2, H = w2.shape
    H2, NO = w3.shape
    assert K == K2 and N == N2 and H == H2
    assert b1.shape == (N,) and b2.shape == (H,) and b3.shape == (NO,)
    assert K % 128 == 0 and N % 128 == 0, "feature dims must be multiples of 128"
    # TODO(synk): if batch M ever grows past ~256, add an M grid axis; at small
    # batch the kernel is purely HBM-bound on the fc1 weight stream.

    tk = _pick_tile(K, tk_max)

    return pl.pallas_call(
        _encoder_fused_kernel,
        out_shape=jax.ShapeDtypeStruct((M, NO), jnp.float32),
        grid_spec=pltpu.PrefetchScalarGridSpec(
            num_scalar_prefetch=0,
            grid=(K // tk,),
            in_specs=[
                pl.BlockSpec((M, K), lambda k: (0, 0)),      # x: VMEM-resident
                pl.BlockSpec((tk, N), lambda k: (k, 0)),     # fc1 weights: streamed
                pl.BlockSpec((1, N), lambda k: (0, 0)),
                pl.BlockSpec((N, H), lambda k: (0, 0)),      # tail weights: resident
                pl.BlockSpec((1, H), lambda k: (0, 0)),
                pl.BlockSpec((H, NO), lambda k: (0, 0)),
                pl.BlockSpec((1, NO), lambda k: (0, 0)),
            ],
            out_specs=pl.BlockSpec((M, NO), lambda k: (0, 0)),
            scratch_shapes=[pltpu.VMEM((M, N), jnp.float32)],
        ),
        compiler_params=pltpu.CompilerParams(
            dimension_semantics=("arbitrary",),
            vmem_limit_bytes=vmem_limit_bytes,
        ),
    )(x, w1, b1.reshape(1, N), w2, b2.reshape(1, H), w3, b3.reshape(1, NO))


# ---------------------------------------------------------------------------
# v7x path, part 1: fc1 = relu(x @ w1 + b1), tn=512 for the dual-TC split.
# Accumulates directly into the resident f32 output block (no scratch).
# ---------------------------------------------------------------------------
def _fc1_kernel(x_ref, w_ref, b_ref, o_ref):
    k = pl.program_id(1)
    tk = w_ref.shape[0]

    @pl.when(k == 0)
    def _():
        o_ref[...] = jnp.zeros_like(o_ref)

    off = pl.multiple_of(k * tk, 128)
    o_ref[...] += jnp.dot(x_ref[:, pl.ds(off, tk)], w_ref[...],
                          preferred_element_type=jnp.float32)

    @pl.when(k == pl.num_programs(1) - 1)
    def _():
        o_ref[...] = jnp.maximum(o_ref[...] + b_ref[...], 0.0)


def fc1_linear_relu(x, w, b, *, tn_max=512, tk_max=8192,
                    vmem_limit_bytes=32 * _MiB):
    """relu(x @ w + b); x:(M,K) bf16, w:(K,N) bf16, b:(N,) f32."""
    M, K = x.shape
    K2, N = w.shape
    assert K == K2 and b.shape == (N,)
    assert K % 128 == 0 and N % 128 == 0, "feature dims must be multiples of 128"

    tn = _pick_tile(N, tn_max)   # N//tn >= 2 for N >= 1024 (v7x dual-TC split)
    tk = _pick_tile(K, tk_max)   # (tk, tn) bf16 = 8 MiB, 16 MiB double-buffered

    return pl.pallas_call(
        _fc1_kernel,
        out_shape=jax.ShapeDtypeStruct((M, N), jnp.float32),
        grid_spec=pltpu.PrefetchScalarGridSpec(
            num_scalar_prefetch=0,
            grid=(N // tn, K // tk),
            in_specs=[
                pl.BlockSpec((M, K), lambda j, k: (0, 0)),   # x resident (no re-DMA per j)
                pl.BlockSpec((tk, tn), lambda j, k: (k, j)),
                pl.BlockSpec((1, tn), lambda j, k: (0, j)),
            ],
            out_specs=pl.BlockSpec((M, tn), lambda j, k: (0, j)),
        ),
        compiler_params=pltpu.CompilerParams(
            dimension_semantics=("parallel", "arbitrary"),
            vmem_limit_bytes=vmem_limit_bytes,
        ),
    )(x, w, b.reshape(1, N))


# ---------------------------------------------------------------------------
# v7x path, part 2: relu(h @ w2 + b2) @ [w31|w32] + [b31|b32], VMEM-resident.
# ---------------------------------------------------------------------------
def _tail_kernel(h_ref, w2_ref, b2_ref, w3_ref, b3_ref, o_ref):
    h2 = jnp.dot(h_ref[...].astype(w2_ref.dtype), w2_ref[...],
                 preferred_element_type=jnp.float32)
    h2 = jnp.maximum(h2 + b2_ref[...], 0.0)
    out = jnp.dot(h2.astype(w3_ref.dtype), w3_ref[...],
                  preferred_element_type=jnp.float32)
    o_ref[...] = (out + b3_ref[...]).astype(o_ref.dtype)


def tail_fused(h, w2, b2, w3, b3, *, vmem_limit_bytes=32 * _MiB):
    M, K = h.shape
    K2, H = w2.shape
    H2, NO = w3.shape
    assert K == K2 and H == H2 and b2.shape == (H,) and b3.shape == (NO,)

    return pl.pallas_call(
        _tail_kernel,
        out_shape=jax.ShapeDtypeStruct((M, NO), jnp.float32),
        grid_spec=pltpu.PrefetchScalarGridSpec(
            num_scalar_prefetch=0,
            grid=(1,),
            in_specs=[
                pl.BlockSpec((M, K), lambda i: (0, 0)),
                pl.BlockSpec((K, H), lambda i: (0, 0)),
                pl.BlockSpec((1, H), lambda i: (0, 0)),
                pl.BlockSpec((H, NO), lambda i: (0, 0)),
                pl.BlockSpec((1, NO), lambda i: (0, 0)),
            ],
            out_specs=pl.BlockSpec((M, NO), lambda i: (0, 0)),
        ),
        compiler_params=pltpu.CompilerParams(
            dimension_semantics=("arbitrary",),
            vmem_limit_bytes=vmem_limit_bytes,
        ),
    )(h, w2, b2.reshape(1, H), w3, b3.reshape(1, NO))


# ---------------------------------------------------------------------------
# Module wrapper: fc1 -> relu -> fc2 -> relu -> (fc31, fc32)
# ---------------------------------------------------------------------------
class EncoderPallas:
    def __init__(self, key, input_dim=(32, 768), latent_dim=128):
        self.latent_dim = latent_dim
        in_feat = input_dim[0] * input_dim[1]
        dims = [
            ("fc1", in_feat, 1024),
            ("fc2", 1024, 256),
            ("fc31", 256, latent_dim),
            ("fc32", 256, latent_dim),
        ]
        self.params = {}
        for name, fan_in, fan_out in dims:
            key, kw, kb = jax.random.split(key, 3)
            bound = 1.0 / float(fan_in) ** 0.5
            w = jax.random.uniform(kw, (fan_in, fan_out), jnp.float32,
                                   minval=-bound, maxval=bound)
            b = jax.random.uniform(kb, (fan_out,), jnp.float32,
                                   minval=-bound, maxval=bound)
            # Weights streamed as bf16 (kernel is HBM-bandwidth bound); biases
            # and accumulation stay f32.
            # TODO(synk): optional int8 (v5e/v6e) / fp8 (v7x) weight storage
            # would halve the dominant fc1 HBM stream; kept bf16 for accuracy.
            self.params[name] = (w.astype(jnp.bfloat16), b)

        # Concatenate the two heads into one lane-dense (256, 2*latent) matmul.
        w31, b31 = self.params["fc31"]
        w32, b32 = self.params["fc32"]
        self.w3 = jnp.concatenate([w31, w32], axis=1)
        self.b3 = jnp.concatenate([b31, b32], axis=0)

        self._dual_core = _is_dual_core_tpu()

    def __call__(self, x):
        B = x.shape[0]
        # Same as torch x.view(B, -1); cast to bf16 once (no per-step VPU cast).
        xf = x.reshape(B, -1).astype(jnp.bfloat16)
        w1, b1 = self.params["fc1"]
        w2, b2 = self.params["fc2"]
        if self._dual_core:
            # v7x: tn=512 keeps the "parallel" N axis 2-way for the dual-TC
            # split; stay within the 32 MiB scoped-VMEM default (64 MiB/TC).
            h = fc1_linear_relu(xf, w1, b1, tn_max=512, tk_max=8192,
                                vmem_limit_bytes=32 * _MiB)
            out = tail_fused(h, w2, b2, self.w3, self.b3)
        else:
            # v5e/v6e (single TC, 128 MiB VMEM): full-N weight tiles, tail
            # folded into the last K step -> a single pallas_call.
            out = encoder_fused(xf, w1, b1, w2, b2, self.w3, self.b3,
                                tk_max=8192, vmem_limit_bytes=64 * _MiB)
        mu = out[:, : self.latent_dim]
        logvar = out[:, self.latent_dim:]
        return mu, logvar


if __name__ == "__main__":
    key = jax.random.PRNGKey(0)
    k_param, k_x = jax.random.split(key)

    # Small shapes consistent with the module: input_dim=(8, 128) -> 1024
    # flattened features; latent_dim=128; batch=2.
    input_dim = (8, 128)
    latent_dim = 128
    batch = 2

    enc = EncoderPallas(k_param, input_dim=input_dim, latent_dim=latent_dim)
    x = jax.random.normal(k_x, (batch,) + input_dim, dtype=jnp.float32)

    mu, logvar = enc(x)
    jax.block_until_ready((mu, logvar))

    # Plain-JAX reference with the same bf16 weights / f32 accumulation.
    xf = x.reshape(batch, -1).astype(jnp.bfloat16)
    w1, b1 = enc.params["fc1"]
    w2, b2 = enc.params["fc2"]
    h_ref = jnp.maximum(
        jnp.dot(xf, w1, preferred_element_type=jnp.float32) + b1, 0.0)
    h2_ref = jnp.maximum(
        jnp.dot(h_ref.astype(jnp.bfloat16), w2,
                preferred_element_type=jnp.float32) + b2, 0.0)
    out_ref = jnp.dot(h2_ref.astype(jnp.bfloat16), enc.w3,
                      preferred_element_type=jnp.float32) + enc.b3
    mu_ref = out_ref[:, :latent_dim]
    lv_ref = out_ref[:, latent_dim:]

    assert mu.shape == (batch, latent_dim) and logvar.shape == (batch, latent_dim)
    assert jnp.allclose(mu, mu_ref, atol=2e-2, rtol=2e-2)
    assert jnp.allclose(logvar, lv_ref, atol=2e-2, rtol=2e-2)

    print("KERNEL_OK")
</pallas_src>

<mosaic_0001>
module attributes {stable_mosaic.version = 11 : i64} {
  func.func @_encoder_fused_kernel(%arg0: i32, %arg1: memref<2x1024xbf16, #tpu.memory_space<vmem>>, %arg2: memref<1024x1024xbf16, #tpu.memory_space<vmem>>, %arg3: memref<1x1024xf32, #tpu.memory_space<vmem>>, %arg4: memref<1024x256xbf16, #tpu.memory_space<vmem>>, %arg5: memref<1x256xf32, #tpu.memory_space<vmem>>, %arg6: memref<256x256xbf16, #tpu.memory_space<vmem>>, %arg7: memref<1x256xf32, #tpu.memory_space<vmem>>, %arg8: memref<2x256xf32, #tpu.memory_space<vmem>>, %arg9: memref<2x1024xf32, #tpu.memory_space<vmem>>) attributes {dimension_semantics = [#tpu.dimension_semantics<arbitrary>], iteration_bounds = array<i64: 1>, scalar_prefetch = 0 : i64, scratch_operands = 1 : i64, tpu.core_type = #tpu.core_type<tc>, window_params = [{pipeline_mode = #tpu.pipeline_mode<synchronous>, transform_indices = @transform_0, window_bounds = array<i64: 2, 1024>}, {transform_indices = @transform_1, window_bounds = array<i64: 1024, 1024>}, {pipeline_mode = #tpu.pipeline_mode<synchronous>, transform_indices = @transform_2, window_bounds = array<i64: 1, 1024>}, {pipeline_mode = #tpu.pipeline_mode<synchronous>, transform_indices = @transform_3, window_bounds = array<i64: 1024, 256>}, {pipeline_mode = #tpu.pipeline_mode<synchronous>, transform_indices = @transform_4, window_bounds = array<i64: 1, 256>}, {pipeline_mode = #tpu.pipeline_mode<synchronous>, transform_indices = @transform_5, window_bounds = array<i64: 256, 256>}, {pipeline_mode = #tpu.pipeline_mode<synchronous>, transform_indices = @transform_6, window_bounds = array<i64: 1, 256>}, {pipeline_mode = #tpu.pipeline_mode<synchronous>, transform_indices = @transform_7, window_bounds = array<i64: 2, 256>}]} {
    %c0_i32 = arith.constant 0 : i32
    %0 = arith.cmpi eq, %arg0, %c0_i32 : i32
    %1 = arith.extui %0 : i1 to i32
    %c0_i32_0 = arith.constant 0 : i32
    %2 = arith.cmpi ne, %1, %c0_i32_0 : i32
    scf.if %2 {
      %cst_9 = arith.constant 0.000000e+00 : f32
      %15 = vector.broadcast %cst_9 : f32 to vector<2x1024xf32>
      %c0_10 = arith.constant 0 : index
      %c0_11 = arith.constant 0 : index
      %16 = vector.load %arg9[%c0_10, %c0_11] : memref<2x1024xf32, #tpu.memory_space<vmem>>, vector<2x1024xf32>
      tpu.vector_store %arg9[%c0_10, %c0_11], %15 {strides = array<i32>} : memref<2x1024xf32, #tpu.memory_space<vmem>>, vector<2x1024xf32>,
    } else {
    }
    %c1024_i32 = arith.constant 1024 : i32
    %3 = arith.muli %arg0, %c1024_i32 : i32
    %4 = tpu.assume_multiple %3, 128 : i32
    %c0 = arith.constant 0 : index
    %c0_1 = arith.constant 0 : index
    %5 = vector.load %arg9[%c0, %c0_1] : memref<2x1024xf32, #tpu.memory_space<vmem>>, vector<2x1024xf32>
    %c0_2 = arith.constant 0 : index
    %6 = arith.index_cast %4 : i32 to index
    %7 = vector.load %arg1[%c0_2, %6] : memref<2x1024xbf16, #tpu.memory_space<vmem>>, vector<2x1024xbf16>
    %c0_3 = arith.constant 0 : index
    %c0_4 = arith.constant 0 : index
    %8 = vector.load %arg2[%c0_3, %c0_4] : memref<1024x1024xbf16, #tpu.memory_space<vmem>>, vector<1024x1024xbf16>
    %cst = arith.constant dense<0.000000e+00> : vector<2x1024xf32>
    %9 = tpu.matmul %7, %8, %cst {dimension_numbers = #tpu.dot_dimension_numbers<[1], [0], [0], [1], [0, 0, 1, 1], [], []>} : vector<2x1024xbf16>, vector<1024x1024xbf16>, vector<2x1024xf32> -> vector<2x1024xf32>
    %10 = arith.addf %5, %9 : vector<2x1024xf32>
    %c0_5 = arith.constant 0 : index
    %c0_6 = arith.constant 0 : index
    %11 = vector.load %arg9[%c0_5, %c0_6] : memref<2x1024xf32, #tpu.memory_space<vmem>>, vector<2x1024xf32>
    tpu.vector_store %arg9[%c0_5, %c0_6], %10 {strides = array<i32>} : memref<2x1024xf32, #tpu.memory_space<vmem>>, vector<2x1024xf32>,
    %c0_i32_7 = arith.constant 0 : i32
    %12 = arith.cmpi eq, %arg0, %c0_i32_7 : i32
    %13 = arith.extui %12 : i1 to i32
    %c0_i32_8 = arith.constant 0 : i32
    %14 = arith.cmpi ne, %13, %c0_i32_8 : i32
    scf.if %14 {
      %c0_9 = arith.constant 0 : index
      %c0_10 = arith.constant 0 : index
      %15 = vector.load %arg9[%c0_9, %c0_10] : memref<2x1024xf32, #tpu.memory_space<vmem>>, vector<2x1024xf32>
      %c0_11 = arith.constant 0 : index
      %c0_12 = arith.constant 0 : index
      %16 = vector.load %arg3[%c0_11, %c0_12] : memref<1x1024xf32, #tpu.memory_space<vmem>>, vector<1x1024xf32>
      %17 = vector.broadcast %16 : vector<1x1024xf32> to vector<2x1024xf32>
      %18 = arith.addf %15, %17 : vector<2x1024xf32>
      %cst_13 = arith.constant 0.000000e+00 : f32
      %19 = vector.broadcast %cst_13 : f32 to vector<2x1024xf32>
      %20 = arith.maximumf %18, %19 : vector<2x1024xf32>
      %21 = arith.truncf %20 : vector<2x1024xf32> to vector<2x1024xbf16>
      %c0_14 = arith.constant 0 : index
      %c0_15 = arith.constant 0 : index
      %22 = vector.load %arg4[%c0_14, %c0_15] : memref<1024x256xbf16, #tpu.memory_space<vmem>>, vector<1024x256xbf16>
      %cst_16 = arith.constant dense<0.000000e+00> : vector<2x256xf32>
      %23 = tpu.matmul %21, %22, %cst_16 {dimension_numbers = #tpu.dot_dimension_numbers<[1], [0], [0], [1], [0, 0, 1, 1], [], []>} : vector<2x1024xbf16>, vector<1024x256xbf16>, vector<2x256xf32> -> vector<2x256xf32>
      %c0_17 = arith.constant 0 : index
      %c0_18 = arith.constant 0 : index
      %24 = vector.load %arg5[%c0_17, %c0_18] : memref<1x256xf32, #tpu.memory_space<vmem>>, vector<1x256xf32>
      %25 = vector.broadcast %24 : vector<1x256xf32> to vector<2x256xf32>
      %26 = arith.addf %23, %25 : vector<2x256xf32>
      %cst_19 = arith.constant 0.000000e+00 : f32
      %27 = vector.broadcast %cst_19 : f32 to vector<2x256xf32>
      %28 = arith.maximumf %26, %27 : vector<2x256xf32>
      %29 = arith.truncf %28 : vector<2x256xf32> to vector<2x256xbf16>
      %c0_20 = arith.constant 0 : index
      %c0_21 = arith.constant 0 : index
      %30 = vector.load %arg6[%c0_20, %c0_21] : memref<256x256xbf16, #tpu.memory_space<vmem>>, vector<256x256xbf16>
      %cst_22 = arith.constant dense<0.000000e+00> : vector<2x256xf32>
      %31 = tpu.matmul %29, %30, %cst_22 {dimension_numbers = #tpu.dot_dimension_numbers<[1], [0], [0], [1], [0, 0, 1, 1], [], []>} : vector<2x256xbf16>, vector<256x256xbf16>, vector<2x256xf32> -> vector<2x256xf32>
      %c0_23 = arith.constant 0 : index
      %c0_24 = arith.constant 0 : index
      %32 = vector.load %arg7[%c0_23, %c0_24] : memref<1x256xf32, #tpu.memory_space<vmem>>, vector<1x256xf32>
      %33 = vector.broadcast %32 : vector<1x256xf32> to vector<2x256xf32>
      %34 = arith.addf %31, %33 : vector<2x256xf32>
      %c0_25 = arith.constant 0 : index
      %c0_26 = arith.constant 0 : index
      %35 = vector.load %arg8[%c0_25, %c0_26] : memref<2x256xf32, #tpu.memory_space<vmem>>, vector<2x256xf32>
      tpu.vector_store %arg8[%c0_25, %c0_26], %34 {strides = array<i32>} : memref<2x256xf32, #tpu.memory_space<vmem>>, vector<2x256xf32>,
    } else {
    }
    return
  }
  func.func @transform_0(%arg0: i32) -> (i32, i32) {
    %c0_i32 = arith.constant 0 : i32
    %c0_i32_0 = arith.constant 0 : i32
    %c0_i32_1 = arith.constant 0 : i32
    return %c0_i32, %c0_i32_0 : i32, i32
  }
  func.func @transform_1(%arg0: i32) -> (i32, i32) {
    %c0_i32 = arith.constant 0 : i32
    %c0_i32_0 = arith.constant 0 : i32
    return %arg0, %c0_i32 : i32, i32
  }
  func.func @transform_2(%arg0: i32) -> (i32, i32) {
    %c0_i32 = arith.constant 0 : i32
    %c0_i32_0 = arith.constant 0 : i32
    %c0_i32_1 = arith.constant 0 : i32
    return %c0_i32, %c0_i32_0 : i32, i32
  }
  func.func @transform_3(%arg0: i32) -> (i32, i32) {
    %c0_i32 = arith.constant 0 : i32
    %c0_i32_0 = arith.constant 0 : i32
    %c0_i32_1 = arith.constant 0 : i32
    return %c0_i32, %c0_i32_0 : i32, i32
  }
  func.func @transform_4(%arg0: i32) -> (i32, i32) {
    %c0_i32 = arith.constant 0 : i32
    %c0_i32_0 = arith.constant 0 : i32
    %c0_i32_1 = arith.constant 0 : i32
    return %c0_i32, %c0_i32_0 : i32, i32
  }
  func.func @transform_5(%arg0: i32) -> (i32, i32) {
    %c0_i32 = arith.constant 0 : i32
    %c0_i32_0 = arith.constant 0 : i32
    %c0_i32_1 = arith.constant 0 : i32
    return %c0_i32, %c0_i32_0 : i32, i32
  }
  func.func @transform_6(%arg0: i32) -> (i32, i32) {
    %c0_i32 = arith.constant 0 : i32
    %c0_i32_0 = arith.constant 0 : i32
    %c0_i32_1 = arith.constant 0 : i32
    return %c0_i32, %c0_i32_0 : i32, i32
  }
  func.func @transform_7(%arg0: i32) -> (i32, i32) {
    %c0_i32 = arith.constant 0 : i32
    %c0_i32_0 = arith.constant 0 : i32
    %c0_i32_1 = arith.constant 0 : i32
    return %c0_i32, %c0_i32_0 : i32, i32
  }
}

</mosaic_0001>

<llo_original>
// kernel: tpu_custom_call.1
$region0: #{tpu_custom_call.1}
  #allocation0 [shape = 'u32[]', space=smem, size = 0x4, offset = 0x4, fixed_abs, tag = 'smem constant byte address 0x4 - core index']
  #allocation1 [shape = 'u32[72,128]{1,0:T(1,128)}', space=vmem, size = 0x9000, scoped, tag = 'internal scratch']
  #allocation2 [shape = 'f32[2,1024]{1,0:T(2,128)}', space=vmem, size = 0x2000, scoped, tag = 'scratch operand']
  %s0 = inlined_call_operand.hbm [shape: bf16[2,1024], index: 0, kind: input, shape index: {}]
  %s1 = inlined_call_operand.hbm [shape: bf16[1024,1024], index: 1, kind: input, shape index: {}]
  %s2 = inlined_call_operand.hbm [shape: f32[1,1024], index: 2, kind: input, shape index: {}]
  %s3 = inlined_call_operand.hbm [shape: bf16[1024,256], index: 3, kind: input, shape index: {}]
  %s4 = inlined_call_operand.hbm [shape: f32[1,256], index: 4, kind: input, shape index: {}]
  %s5 = inlined_call_operand.hbm [shape: bf16[256,256], index: 5, kind: input, shape index: {}]
  %s6 = inlined_call_operand.hbm [shape: f32[1,256], index: 6, kind: input, shape index: {}]
  %s7 = inlined_call_operand.hbm [shape: f32[2,256], index: 7, kind: output, shape index: {}]
  %s8 = sld [smem:[#allocation0]]
  $region74: #{tpu_custom_call.1} parent=0
    _
  %s10 = ssub.s32 1, %s8
  %s11 = scalar_select 0, %s10, %s8
  $region1: #{tpu_custom_call.1} parent=0
    #allocation3 [shape = 'u8[4096]{0}', space=vmem, size = 0x1000, scoped, tag = 'input window, operand 0, single buffered']
    #allocation4 [shape = 's32[1]{0}', space=sflag, size = 0x4, scoped, tag = 'scoped memory for tpu_custom_call.1']
    #allocation5 [shape = 's32[1]{0}', space=sflag, size = 0x4, scoped, tag = 'scoped memory for tpu_custom_call.1']
    #allocation6 [shape = 'u8[2097152]{0}', space=vmem, size = 0x200000, scoped, tag = 'input window, operand 1, single buffered']
    #allocation7 [shape = 's32[1]{0}', space=sflag, size = 0x4, scoped, tag = 'scoped memory for tpu_custom_call.1']
    #allocation8 [shape = 'u8[4096]{0}', space=vmem, size = 0x1000, scoped, tag = 'input window, operand 2, single buffered']
    #allocation9 [shape = 'u8[524288]{0}', space=vmem, size = 0x80000, scoped, tag = 'input window, operand 3, single buffered']
    #allocation10 [shape = 's32[1]{0}', space=sflag, size = 0x4, scoped, tag = 'scoped memory for tpu_custom_call.1']
    #allocation11 [shape = 'u8[1024]{0}', space=vmem, size = 0x400, scoped, tag = 'input window, operand 4, single buffered']
    #allocation12 [shape = 'u8[131072]{0}', space=vmem, size = 0x20000, scoped, tag = 'input window, operand 5, single buffered']
    #allocation13 [shape = 's32[1]{0}', space=sflag, size = 0x4, scoped, tag = 'scoped memory for tpu_custom_call.1']
    #allocation14 [shape = 'u8[1024]{0}', space=vmem, size = 0x400, scoped, tag = 'input window, operand 6, single buffered']
    #allocation15 [shape = 'u8[2048]{0}', space=vmem, size = 0x800, scoped, tag = 'output window, operand 0, single buffered']
    %12 = vsyncpa [#allocation4], 0
    %13 = vsyncpa [#allocation7], 0
    %14 = vsyncpa [#allocation10], 0
    %15 = vsyncpa [#allocation13], 0
    %16 = vsyncpa [#allocation5], 0
    // Predicated region
    $region2: #{tpu_custom_call.1} parent=1 // pred_check
      _
    $region3: #{tpu_custom_call.1} parent=1 // pred_check_branch
      %18 = sbr.rel (0) target = $region5
    $region4: #{tpu_custom_call.1} parent=1 // pred_region
      %20 = vsyncadd [#allocation4], 0
      %s22 = sshll.u32 %s0, 4
      %s23 = int_to_ptr.hbm [resolvable:$true] %s22
      %s24 = sshll.u32 [#allocation3], 4
      %s25 = int_to_ptr.vmem [resolvable:$true] %s24
      %27 = dma.hbm_to_vmem [thread:$0]  %s23, 128, %s25, [#allocation4]
    $region5: #{tpu_custom_call.1} parent=1 // pred_fallthru
      _
    // Predicated region
    $region6: #{tpu_custom_call.1} parent=1 // pred_check
      _
    $region7: #{tpu_custom_call.1} parent=1 // pred_check_branch
      %29 = sbr.rel (0) target = $region9
    $region8: #{tpu_custom_call.1} parent=1 // pred_region
      %31 = vsyncadd [#allocation7], 0
      %s32 = sshll.u32 %s1, 4
      %s33 = int_to_ptr.hbm [resolvable:$true] %s32
      %s34 = sshll.u32 [#allocation6], 4
      %s35 = int_to_ptr.vmem [resolvable:$true] %s34
      %40 = dma.hbm_to_vmem [thread:$0]  %s33, 65536, %s35, [#allocation7], 512, 512, 32
    $region9: #{tpu_custom_call.1} parent=1 // pred_fallthru
      _
    // Predicated region
    $region10: #{tpu_custom_call.1} parent=1 // pred_check
      _
    $region11: #{tpu_custom_call.1} parent=1 // pred_check_branch
      %42 = sbr.rel (0) target = $region13
    $region12: #{tpu_custom_call.1} parent=1 // pred_region
      %44 = vsyncadd [#allocation7], 0
      %s46 = sshll.u32 %s2, 4
      %s47 = int_to_ptr.hbm [resolvable:$true] %s46
      %s48 = sshll.u32 [#allocation8], 4
      %s49 = int_to_ptr.vmem [resolvable:$true] %s48
      %51 = dma.hbm_to_vmem [thread:$0]  %s47, 128, %s49, [#allocation7]
    $region13: #{tpu_custom_call.1} parent=1 // pred_fallthru
      _
    // Predicated region
    $region14: #{tpu_custom_call.1} parent=1 // pred_check
      _
    $region15: #{tpu_custom_call.1} parent=1 // pred_check_branch
      %53 = sbr.rel (0) target = $region17
    $region16: #{tpu_custom_call.1} parent=1 // pred_region
      %55 = vsyncadd [#allocation10], 0
      %s56 = sshll.u32 %s3, 4
      %s57 = int_to_ptr.hbm [resolvable:$true] %s56
      %s58 = sshll.u32 [#allocation9], 4
      %s59 = int_to_ptr.vmem [resolvable:$true] %s58
      %64 = dma.hbm_to_vmem [thread:$0]  %s57, 16384, %s59, [#allocation10], 128, 128, 8
    $region17: #{tpu_custom_call.1} parent=1 // pred_fallthru
      _
    // Predicated region
    $region18: #{tpu_custom_call.1} parent=1 // pred_check
      _
    $region19: #{tpu_custom_call.1} parent=1 // pred_check_branch
      %66 = sbr.rel (0) target = $region21
    $region20: #{tpu_custom_call.1} parent=1 // pred_region
      %68 = vsyncadd [#allocation10], 0
      %s70 = sshll.u32 %s4, 4
      %s71 = int_to_ptr.hbm [resolvable:$true] %s70
      %s72 = sshll.u32 [#allocation11], 4
      %s73 = int_to_ptr.vmem [resolvable:$true] %s72
      %75 = dma.hbm_to_vmem [thread:$0]  %s71, 32, %s73, [#allocation10]
    $region21: #{tpu_custom_call.1} parent=1 // pred_fallthru
      _
    // Predicated region
    $region22: #{tpu_custom_call.1} parent=1 // pred_check
      _
    $region23: #{tpu_custom_call.1} parent=1 // pred_check_branch
      %77 = sbr.rel (0) target = $region25
    $region24: #{tpu_custom_call.1} parent=1 // pred_region
      %79 = vsyncadd [#allocation13], 0
      %s80 = sshll.u32 %s5, 4
      %s81 = int_to_ptr.hbm [resolvable:$true] %s80
      %s82 = sshll.u32 [#allocation12], 4
      %s83 = int_to_ptr.vmem [resolvable:$true] %s82
      %88 = dma.hbm_to_vmem [thread:$0]  %s81, 4096, %s83, [#allocation13], 128, 128, 8
    $region25: #{tpu_custom_call.1} parent=1 // pred_fallthru
      _
    // Predicated region
    $region26: #{tpu_custom_call.1} parent=1 // pred_check
      _
    $region27: #{tpu_custom_call.1} parent=1 // pred_check_branch
      %90 = sbr.rel (0) target = $region29
    $region28: #{tpu_custom_call.1} parent=1 // pred_region
      %92 = vsyncadd [#allocation13], 0
      %s94 = sshll.u32 %s6, 4
      %s95 = int_to_ptr.hbm [resolvable:$true] %s94
      %s96 = sshll.u32 [#allocation14], 4
      %s97 = int_to_ptr.vmem [resolvable:$true] %s96
      %99 = dma.hbm_to_vmem [thread:$0]  %s95, 32, %s97, [#allocation13]
    $region29: #{tpu_custom_call.1} parent=1 // pred_fallthru
      _
    // Predicated region
    $region30: #{tpu_custom_call.1} parent=1 // pred_check
      _
    $region31: #{tpu_custom_call.1} parent=1 // pred_check_branch
      %101 = sbr.rel (0) target = $region33
    $region32: #{tpu_custom_call.1} parent=1 // pred_region
      %103 = dma.done [#allocation4], 128
    $region33: #{tpu_custom_call.1} parent=1 // pred_fallthru
      _
    // Predicated region
    $region34: #{tpu_custom_call.1} parent=1 // pred_check
      _
    $region35: #{tpu_custom_call.1} parent=1 // pred_check_branch
      %105 = sbr.rel (0) target = $region37
    $region36: #{tpu_custom_call.1} parent=1 // pred_region
      %107 = dma.done [#allocation7], 65536
    $region37: #{tpu_custom_call.1} parent=1 // pred_fallthru
      _
    // Predicated region
    $region38: #{tpu_custom_call.1} parent=1 // pred_check
      _
    $region39: #{tpu_custom_call.1} parent=1 // pred_check_branch
      %109 = sbr.rel (0) target = $region41
    $region40: #{tpu_custom_call.1} parent=1 // pred_region
      %111 = dma.done [#allocation7], 128
    $region41: #{tpu_custom_call.1} parent=1 // pred_fallthru
      _
    // Predicated region
    $region42: #{tpu_custom_call.1} parent=1 // pred_check
      _
    $region43: #{tpu_custom_call.1} parent=1 // pred_check_branch
      %113 = sbr.rel (0) target = $region45
    $region44: #{tpu_custom_call.1} parent=1 // pred_region
      %115 = dma.done [#allocation10], 16384
    $region45: #{tpu_custom_call.1} parent=1 // pred_fallthru
      _
    // Predicated region
    $region46: #{tpu_custom_call.1} parent=1 // pred_check
      _
    $region47: #{tpu_custom_call.1} parent=1 // pred_check_branch
      %117 = sbr.rel (0) target = $region49
    $region48: #{tpu_custom_call.1} parent=1 // pred_region
      %119 = dma.done [#allocation10], 32
    $region49: #{tpu_custom_call.1} parent=1 // pred_fallthru
      _
    // Predicated region
    $region50: #{tpu_custom_call.1} parent=1 // pred_check
      _
    $region51: #{tpu_custom_call.1} parent=1 // pred_check_branch
      %121 = sbr.rel (0) target = $region53
    $region52: #{tpu_custom_call.1} parent=1 // pred_region
      %123 = dma.done [#allocation13], 4096
    $region53: #{tpu_custom_call.1} parent=1 // pred_fallthru
      _
    // Predicated region
    $region54: #{tpu_custom_call.1} parent=1 // pred_check
      _
    $region55: #{tpu_custom_call.1} parent=1 // pred_check_branch
      %125 = sbr.rel (0) target = $region57
    $region56: #{tpu_custom_call.1} parent=1 // pred_region
      %127 = dma.done [#allocation13], 32
    $region57: #{tpu_custom_call.1} parent=1 // pred_fallthru
      _
    %p128 = scmp.eq.s32.totalorder 0, 0
    // Predicated region
    $region58: #{tpu_custom_call.1} parent=1 // pred_check
      %p129 = pneg %p128
    $region59: #{tpu_custom_call.1} parent=1 // pred_check_branch
      %131 = sbr.rel (%p129) target = $region61
    $region60: #{tpu_custom_call.1} parent=1 // pred_region
      %132 = vst [vmem:[#allocation2] sm:$0xff] 0.0
      %133 = vst [vmem:[#allocation2 + $0x8] sm:$0xff] 0.0
    $region61: #{tpu_custom_call.1} parent=1 // pred_fallthru
      _
    %s134 = smul.u32 0, 1024
    %v135 = vld [vmem:[#allocation2] sm:$0xff]
    %v136 = vld [vmem:[#allocation2 + $0x8] sm:$0xff]
    %s137 = sshra.s32 %s134, 7
    %s138 = sand.u32 %s134, 127
    %s139 = scalar_lea.vmem [#allocation3], %s137
    %v140 = vld [vmem:[%s139] sm:$0xff]
    %v141 = vld [vmem:[#allocation6] sm:$0xff]
    %v142 = vld [vmem:[#allocation6 + $0x8] sm:$0xff]
    %v143 = vld [vmem:[#allocation6 + $0x10] sm:$0xff]
    %v144 = vld [vmem:[#allocation6 + $0x18] sm:$0xff]
    %v145 = vld [vmem:[#allocation6 + $0x20] sm:$0xff]
    %v146 = vld [vmem:[#allocation6 + $0x28] sm:$0xff]
    %v147 = vld [vmem:[#allocation6 + $0x30] sm:$0xff]
    %v148 = vld [vmem:[#allocation6 + $0x38] sm:$0xff]
    %v149 = vld [vmem:[#allocation6 + $0x40] sm:$0xff]
    %v150 = vld [vmem:[#allocation6 + $0x48] sm:$0xff]
    %v151 = vld [vmem:[#allocation6 + $0x50] sm:$0xff]
    %v152 = vld [vmem:[#allocation6 + $0x58] sm:$0xff]
    %v153 = vld [vmem:[#allocation6 + $0x60] sm:$0xff]
    %v154 = vld [vmem:[#allocation6 + $0x68] sm:$0xff]
    %v155 = vld [vmem:[#allocation6 + $0x70] sm:$0xff]
    %v156 = vld [vmem:[#allocation6 + $0x78] sm:$0xff]
    %v157 = vld [vmem:[#allocation6 + $0x80] sm:$0xff]
    %v158 = vld [vmem:[#allocation6 + $0x88] sm:$0xff]
    %v159 = vld [vmem:[#allocation6 + $0x90] sm:$0xff]
    %v160 = vld [vmem:[#allocation6 + $0x98] sm:$0xff]
    %v161 = vld [vmem:[#allocation6 + $0xa0] sm:$0xff]
    %v162 = vld [vmem:[#allocation6 + $0xa8] sm:$0xff]
    %v163 = vld [vmem:[#allocation6 + $0xb0] sm:$0xff]
    %v164 = vld [vmem:[#allocation6 + $0xb8] sm:$0xff]
    %v165 = vld [vmem:[#allocation6 + $0xc0] sm:$0xff]
    %v166 = vld [vmem:[#allocation6 + $0xc8] sm:$0xff]
    %v167 = vld [vmem:[#allocation6 + $0xd0] sm:$0xff]
    %v168 = vld [vmem:[#allocation6 + $0xd8] sm:$0xff]
    %v169 = vld [vmem:[#allocation6 + $0xe0] sm:$0xff]
    %v170 = vld [vmem:[#allocation6 + $0xe8] sm:$0xff]
    %v171 = vld [vmem:[#allocation6 + $0xf0] sm:$0xff]
    %v172 = vld [vmem:[#allocation6 + $0xf8] sm:$0xff]
    %v173 = vld [vmem:[#allocation6 + $0x100] sm:$0xff]
    %v174 = vld [vmem:[#allocation6 + $0x108] sm:$0xff]
    %v175 = vld [vmem:[#allocation6 + $0x110] sm:$0xff]
    %v176 = vld [vmem:[#allocation6 + $0x118] sm:$0xff]
    %v177 = vld [vmem:[#allocation6 + $0x120] sm:$0xff]
    %v178 = vld [vmem:[#allocation6 + $0x128] sm:$0xff]
    %v179 = vld [vmem:[#allocation6 + $0x130] sm:$0xff]
    %v180 = vld [vmem:[#allocation6 + $0x138] sm:$0xff]
    %v181 = vld [vmem:[#allocation6 + $0x140] sm:$0xff]
    %v182 = vld [vmem:[#allocation6 + $0x148] sm:$0xff]
    %v183 = vld [vmem:[#allocation6 + $0x150] sm:$0xff]
    %v184 = vld [vmem:[#allocation6 + $0x158] sm:$0xff]
    %v185 = vld [vmem:[#allocation6 + $0x160] sm:$0xff]
    %v186 = vld [vmem:[#allocation6 + $0x168] sm:$0xff]
    %v187 = vld [vmem:[#allocation6 + $0x170] sm:$0xff]
    %v188 = vld [vmem:[#allocation6 + $0x178] sm:$0xff]
    %v189 = vld [vmem:[#allocation6 + $0x180] sm:$0xff]
    %v190 = vld [vmem:[#allocation6 + $0x188] sm:$0xff]
    %v191 = vld [vmem:[#allocation6 + $0x190] sm:$0xff]
    %v192 = vld [vmem:[#allocation6 + $0x198] sm:$0xff]
    %v193 = vld [vmem:[#allocation6 + $0x1a0] sm:$0xff]
    %v194 = vld [vmem:[#allocation6 + $0x1a8] sm:$0xff]
    %v195 = vld [vmem:[#allocation6 + $0x1b0] sm:$0xff]
    %v196 = vld [vmem:[#allocation6 + $0x1b8] sm:$0xff]
    %v197 = vld [vmem:[#allocation6 + $0x1c0] sm:$0xff]
    %v198 = vld [vmem:[#allocation6 + $0x1c8] sm:$0xff]
    %v199 = vld [vmem:[#allocation6 + $0x1d0] sm:$0xff]
    %v200 = vld [vmem:[#allocation6 + $0x1d8] sm:$0xff]
    %v201 = vld [vmem:[#allocation6 + $0x1e0] sm:$0xff]
    %v202 = vld [vmem:[#allocation6 + $0x1e8] sm:$0xff]
    %v203 = vld [vmem:[#allocation6 + $0x1f0] sm:$0xff]
    %v204 = vld [vmem:[#allocation6 + $0x1f8] sm:$0xff]
    %v205 = vld [vmem:[#allocation6 + $0x200] sm:$0xff]
    %v206 = vld [vmem:[#allocation6 + $0x208] sm:$0xff]
    %v207 = vld [vmem:[#allocation6 + $0x210] sm:$0xff]
    %v208 = vld [vmem:[#allocation6 + $0x218] sm:$0xff]
    %v209 = vld [vmem:[#allocation6 + $0x220] sm:$0xff]
    %v210 = vld [vmem:[#allocation6 + $0x228] sm:$0xff]
    %v211 = vld [vmem:[#allocation6 + $0x230] sm:$0xff]
    %v212 = vld [vmem:[#allocation6 + $0x238] sm:$0xff]
    %v213 = vld [vmem:[#allocation6 + $0x240] sm:$0xff]
    %v214 = vld [vmem:[#allocation6 + $0x248] sm:$0xff]
    %v215 = vld [vmem:[#allocation6 + $0x250] sm:$0xff]
    %v216 = vld [vmem:[#allocation6 + $0x258] sm:$0xff]
    %v217 = vld [vmem:[#allocation6 + $0x260] sm:$0xff]
    %v218 = vld [vmem:[#allocation6 + $0x268] sm:$0xff]
    %v219 = vld [vmem:[#allocation6 + $0x270] sm:$0xff]
    %v220 = vld [vmem:[#allocation6 + $0x278] sm:$0xff]
    %v221 = vld [vmem:[#allocation6 + $0x280] sm:$0xff]
    %v222 = vld [vmem:[#allocation6 + $0x288] sm:$0xff]
    %v223 = vld [vmem:[#allocation6 + $0x290] sm:$0xff]
    %v224 = vld [vmem:[#allocation6 + $0x298] sm:$0xff]
    %v225 = vld [vmem:[#allocation6 + $0x2a0] sm:$0xff]
    %v226 = vld [vmem:[#allocation6 + $0x2a8] sm:$0xff]
    %v227 = vld [vmem:[#allocation6 + $0x2b0] sm:$0xff]
    %v228 = vld [vmem:[#allocation6 + $0x2b8] sm:$0xff]
    %v229 = vld [vmem:[#allocation6 + $0x2c0] sm:$0xff]
    %v230 = vld [vmem:[#allocation6 + $0x2c8] sm:$0xff]
    %v231 = vld [vmem:[#allocation6 + $0x2d0] sm:$0xff]
    %v232 = vld [vmem:[#allocation6 + $0x2d8] sm:$0xff]
    %v233 = vld [vmem:[#allocation6 + $0x2e0] sm:$0xff]
    %v234 = vld [vmem:[#allocation6 + $0x2e8] sm:$0xff]
    %v235 = vld [vmem:[#allocation6 + $0x2f0] sm:$0xff]
    %v236 = vld [vmem:[#allocation6 + $0x2f8] sm:$0xff]
    %v237 = vld [vmem:[#allocation6 + $0x300] sm:$0xff]
    %v238 = vld [vmem:[#allocation6 + $0x308] sm:$0xff]
    %v239 = vld [vmem:[#allocation6 + $0x310] sm:$0xff]
    %v240 = vld [vmem:[#allocation6 + $0x318] sm:$0xff]
    %v241 = vld [vmem:[#allocation6 + $0x320] sm:$0xff]
    %v242 = vld [vmem:[#allocation6 + $0x328] sm:$0xff]
    %v243 = vld [vmem:[#allocation6 + $0x330] sm:$0xff]
    %v244 = vld [vmem:[#allocation6 + $0x338] sm:$0xff]
    %v245 = vld [vmem:[#allocation6 + $0x340] sm:$0xff]
    %v246 = vld [vmem:[#allocation6 + $0x348] sm:$0xff]
    %v247 = vld [vmem:[#allocation6 + $0x350] sm:$0xff]
    %v248 = vld [vmem:[#allocation6 + $0x358] sm:$0xff]
    %v249 = vld [vmem:[#allocation6 + $0x360] sm:$0xff]
    %v250 = vld [vmem:[#allocation6 + $0x368] sm:$0xff]
    %v251 = vld [vmem:[#allocation6 + $0x370] sm:$0xff]
    %v252 = vld [vmem:[#allocation6 + $0x378] sm:$0xff]
    %v253 = vld [vmem:[#allocation6 + $0x380] sm:$0xff]
    %v254 = vld [vmem:[#allocation6 + $0x388] sm:$0xff]
    %v255 = vld [vmem:[#allocation6 + $0x390] sm:$0xff]
    %v256 = vld [vmem:[#allocation6 + $0x398] sm:$0xff]
    %v257 = vld [vmem:[#allocation6 + $0x3a0] sm:$0xff]
    %v258 = vld [vmem:[#allocation6 + $0x3a8] sm:$0xff]
    %v259 = vld [vmem:[#allocation6 + $0x3b0] sm:$0xff]
    %v260 = vld [vmem:[#allocation6 + $0x3b8] sm:$0xff]
    %v261 = vld [vmem:[#allocation6 + $0x3c0] sm:$0xff]
    %v262 = vld [vmem:[#allocation6 + $0x3c8] sm:$0xff]
    %v263 = vld [vmem:[#allocation6 + $0x3d0] sm:$0xff]
    %v264 = vld [vmem:[#allocation6 + $0x3d8] sm:$0xff]
    %v265 = vld [vmem:[#allocation6 + $0x3e0] sm:$0xff]
    %v266 = vld [vmem:[#allocation6 + $0x3e8] sm:$0xff]
    %v267 = vld [vmem:[#allocation6 + $0x3f0] sm:$0xff]
    %v268 = vld [vmem:[#allocation6 + $0x3f8] sm:$0xff]
    %v269 = vld [vmem:[#allocation6 + $0x400] sm:$0xff]
    %v270 = vld [vmem:[#allocation6 + $0x408] sm:$0xff]
    %v271 = vld [vmem:[#allocation6 + $0x410] sm:$0xff]
    %v272 = vld [vmem:[#allocation6 + $0x418] sm:$0xff]
    %v273 = vld [vmem:[#allocation6 + $0x420] sm:$0xff]
    %v274 = vld [vmem:[#allocation6 + $0x428] sm:$0xff]
    %v275 = vld [vmem:[#allocation6 + $0x430] sm:$0xff]
    %v276 = vld [vmem:[#allocation6 + $0x438] sm:$0xff]
    %v277 = vld [vmem:[#allocation6 + $0x440] sm:$0xff]
    %v278 = vld [vmem:[#allocation6 + $0x448] sm:$0xff]
    %v279 = vld [vmem:[#allocation6 + $0x450] sm:$0xff]
    %v280 = vld [vmem:[#allocation6 + $0x458] sm:$0xff]
    %v281 = vld [vmem:[#allocation6 + $0x460] sm:$0xff]
    %v282 = vld [vmem:[#allocation6 + $0x468] sm:$0xff]
    %v283 = vld [vmem:[#allocation6 + $0x470] sm:$0xff]
    %v284 = vld [vmem:[#allocation6 + $0x478] sm:$0xff]
    %v285 = vld [vmem:[#allocation6 + $0x480] sm:$0xff]
    %v286 = vld [vmem:[#allocation6 + $0x488] sm:$0xff]
    %v287 = vld [vmem:[#allocation6 + $0x490] sm:$0xff]
    %v288 = vld [vmem:[#allocation6 + $0x498] sm:$0xff]
    %v289 = vld [vmem:[#allocation6 + $0x4a0] sm:$0xff]
    %v290 = vld [vmem:[#allocation6 + $0x4a8] sm:$0xff]
    %v291 = vld [vmem:[#allocation6 + $0x4b0] sm:$0xff]
    %v292 = vld [vmem:[#allocation6 + $0x4b8] sm:$0xff]
    %v293 = vld [vmem:[#allocation6 + $0x4c0] sm:$0xff]
    %v294 = vld [vmem:[#allocation6 + $0x4c8] sm:$0xff]
    %v295 = vld [vmem:[#allocation6 + $0x4d0] sm:$0xff]
    %v296 = vld [vmem:[#allocation6 + $0x4d8] sm:$0xff]
    %v297 = vld [vmem:[#allocation6 + $0x4e0] sm:$0xff]
    %v298 = vld [vmem:[#allocation6 + $0x4e8] sm:$0xff]
    %v299 = vld [vmem:[#allocation6 + $0x4f0] sm:$0xff]
    %v300 = vld [vmem:[#allocation6 + $0x4f8] sm:$0xff]
    %v301 = vld [vmem:[#allocation6 + $0x500] sm:$0xff]
    %v302 = vld [vmem:[#allocation6 + $0x508] sm:$0xff]
    %v303 = vld [vmem:[#allocation6 + $0x510] sm:$0xff]
    %v304 = vld [vmem:[#allocation6 + $0x518] sm:$0xff]
    %v305 = vld [vmem:[#allocation6 + $0x520] sm:$0xff]
    %v306 = vld [vmem:[#allocation6 + $0x528] sm:$0xff]
    %v307 = vld [vmem:[#allocation6 + $0x530] sm:$0xff]
    %v308 = vld [vmem:[#allocation6 + $0x538] sm:$0xff]
    %v309 = vld [vmem:[#allocation6 + $0x540] sm:$0xff]
    %v310 = vld [vmem:[#allocation6 + $0x548] sm:$0xff]
    %v311 = vld [vmem:[#allocation6 + $0x550] sm:$0xff]
    %v312 = vld [vmem:[#allocation6 + $0x558] sm:$0xff]
    %v313 = vld [vmem:[#allocation6 + $0x560] sm:$0xff]
    %v314 = vld [vmem:[#allocation6 + $0x568] sm:$0xff]
    %v315 = vld [vmem:[#allocation6 + $0x570] sm:$0xff]
    %v316 = vld [vmem:[#allocation6 + $0x578] sm:$0xff]
    %v317 = vld [vmem:[#allocation6 + $0x580] sm:$0xff]
    %v318 = vld [vmem:[#allocation6 + $0x588] sm:$0xff]
    %v319 = vld [vmem:[#allocation6 + $0x590] sm:$0xff]
    %v320 = vld [vmem:[#allocation6 + $0x598] sm:$0xff]
    %v321 = vld [vmem:[#allocation6 + $0x5a0] sm:$0xff]
    %v322 = vld [vmem:[#allocation6 + $0x5a8] sm:$0xff]
    %v323 = vld [vmem:[#allocation6 + $0x5b0] sm:$0xff]
    %v324 = vld [vmem:[#allocation6 + $0x5b8] sm:$0xff]
    %v325 = vld [vmem:[#allocation6 + $0x5c0] sm:$0xff]
    %v326 = vld [vmem:[#allocation6 + $0x5c8] sm:$0xff]
    %v327 = vld [vmem:[#allocation6 + $0x5d0] sm:$0xff]
    %v328 = vld [vmem:[#allocation6 + $0x5d8] sm:$0xff]
    %v329 = vld [vmem:[#allocation6 + $0x5e0] sm:$0xff]
    %v330 = vld [vmem:[#allocation6 + $0x5e8] sm:$0xff]
    %v331 = vld [vmem:[#allocation6 + $0x5f0] sm:$0xff]
    %v332 = vld [vmem:[#allocation6 + $0x5f8] sm:$0xff]
    %v333 = vld [vmem:[#allocation6 + $0x600] sm:$0xff]
    %v334 = vld [vmem:[#allocation6 + $0x608] sm:$0xff]
    %v335 = vld [vmem:[#allocation6 + $0x610] sm:$0xff]
    %v336 = vld [vmem:[#allocation6 + $0x618] sm:$0xff]
    %v337 = vld [vmem:[#allocation6 + $0x620] sm:$0xff]
    %v338 = vld [vmem:[#allocation6 + $0x628] sm:$0xff]
    %v339 = vld [vmem:[#allocation6 + $0x630] sm:$0xff]
    %v340 = vld [vmem:[#allocation6 + $0x638] sm:$0xff]
    %v341 = vld [vmem:[#allocation6 + $0x640] sm:$0xff]
    %v342 = vld [vmem:[#allocation6 + $0x648] sm:$0xff]
    %v343 = vld [vmem:[#allocation6 + $0x650] sm:$0xff]
    %v344 = vld [vmem:[#allocation6 + $0x658] sm:$0xff]
    %v345 = vld [vmem:[#allocation6 + $0x660] sm:$0xff]
    %v346 = vld [vmem:[#allocation6 + $0x668] sm:$0xff]
    %v347 = vld [vmem:[#allocation6 + $0x670] sm:$0xff]
    %v348 = vld [vmem:[#allocation6 + $0x678] sm:$0xff]
    %v349 = vld [vmem:[#allocation6 + $0x680] sm:$0xff]
    %v350 = vld [vmem:[#allocation6 + $0x688] sm:$0xff]
    %v351 = vld [vmem:[#allocation6 + $0x690] sm:$0xff]
    %v352 = vld [vmem:[#allocation6 + $0x698] sm:$0xff]
    %v353 = vld [vmem:[#allocation6 + $0x6a0] sm:$0xff]
    %v354 = vld [vmem:[#allocation6 + $0x6a8] sm:$0xff]
    %v355 = vld [vmem:[#allocation6 + $0x6b0] sm:$0xff]
    %v356 = vld [vmem:[#allocation6 + $0x6b8] sm:$0xff]
    %v357 = vld [vmem:[#allocation6 + $0x6c0] sm:$0xff]
    %v358 = vld [vmem:[#allocation6 + $0x6c8] sm:$0xff]
    %v359 = vld [vmem:[#allocation6 + $0x6d0] sm:$0xff]
    %v360 = vld [vmem:[#allocation6 + $0x6d8] sm:$0xff]
    %v361 = vld [vmem:[#allocation6 + $0x6e0] sm:$0xff]
    %v362 = vld [vmem:[#allocation6 + $0x6e8] sm:$0xff]
    %v363 = vld [vmem:[#allocation6 + $0x6f0] sm:$0xff]
    %v364 = vld [vmem:[#allocation6 + $0x6f8] sm:$0xff]
    %v365 = vld [vmem:[#allocation6 + $0x700] sm:$0xff]
    %v366 = vld [vmem:[#allocation6 + $0x708] sm:$0xff]
    %v367 = vld [vmem:[#allocation6 + $0x710] sm:$0xff]
    %v368 = vld [vmem:[#allocation6 + $0x718] sm:$0xff]
    %v369 = vld [vmem:[#allocation6 + $0x720] sm:$0xff]
    %v370 = vld [vmem:[#allocation6 + $0x728] sm:$0xff]
    %v371 = vld [vmem:[#allocation6 + $0x730] sm:$0xff]
    %v372 = vld [vmem:[#allocation6 + $0x738] sm:$0xff]
    %v373 = vld [vmem:[#allocation6 + $0x740] sm:$0xff]
    %v374 = vld [vmem:[#allocation6 + $0x748] sm:$0xff]
    %v375 = vld [vmem:[#allocation6 + $0x750] sm:$0xff]
    %v376 = vld [vmem:[#allocation6 + $0x758] sm:$0xff]
    %v377 = vld [vmem:[#allocation6 + $0x760] sm:$0xff]
    %v378 = vld [vmem:[#allocation6 + $0x768] sm:$0xff]
    %v379 = vld [vmem:[#allocation6 + $0x770] sm:$0xff]
    %v380 = vld [vmem:[#allocation6 + $0x778] sm:$0xff]
    %v381 = vld [vmem:[#allocation6 + $0x780] sm:$0xff]
    %v382 = vld [vmem:[#allocation6 + $0x788] sm:$0xff]
    %v383 = vld [vmem:[#allocation6 + $0x790] sm:$0xff]
    %v384 = vld [vmem:[#allocation6 + $0x798] sm:$0xff]
    %v385 = vld [vmem:[#allocation6 + $0x7a0] sm:$0xff]
    %v386 = vld [vmem:[#allocation6 + $0x7a8] sm:$0xff]
    %v387 = vld [vmem:[#allocation6 + $0x7b0] sm:$0xff]
    %v388 = vld [vmem:[#allocation6 + $0x7b8] sm:$0xff]
    %v389 = vld [vmem:[#allocation6 + $0x7c0] sm:$0xff]
    %v390 = vld [vmem:[#allocation6 + $0x7c8] sm:$0xff]
    %v391 = vld [vmem:[#allocation6 + $0x7d0] sm:$0xff]
    %v392 = vld [vmem:[#allocation6 + $0x7d8] sm:$0xff]
    %v393 = vld [vmem:[#allocation6 + $0x7e0] sm:$0xff]
    %v394 = vld [vmem:[#allocation6 + $0x7e8] sm:$0xff]
    %v395 = vld [vmem:[#allocation6 + $0x7f0] sm:$0xff]
    %v396 = vld [vmem:[#allocation6 + $0x7f8] sm:$0xff]
    %v397 = vld [vmem:[#allocation6 + $0x800] sm:$0xff]
    %v398 = vld [vmem:[#allocation6 + $0x808] sm:$0xff]
    %v399 = vld [vmem:[#allocation6 + $0x810] sm:$0xff]
    %v400 = vld [vmem:[#allocation6 + $0x818] sm:$0xff]
    %v401 = vld [vmem:[#allocation6 + $0x820] sm:$0xff]
    %v402 = vld [vmem:[#allocation6 + $0x828] sm:$0xff]
    %v403 = vld [vmem:[#allocation6 + $0x830] sm:$0xff]
    %v404 = vld [vmem:[#allocation6 + $0x838] sm:$0xff]
    %v405 = vld [vmem:[#allocation6 + $0x840] sm:$0xff]
    %v406 = vld [vmem:[#allocation6 + $0x848] sm:$0xff]
    %v407 = vld [vmem:[#allocation6 + $0x850] sm:$0xff]
    %v408 = vld [vmem:[#allocation6 + $0x858] sm:$0xff]
    %v409 = vld [vmem:[#allocation6 + $0x860] sm:$0xff]
    %v410 = vld [vmem:[#allocation6 + $0x868] sm:$0xff]
    %v411 = vld [vmem:[#allocation6 + $0x870] sm:$0xff]
    %v412 = vld [vmem:[#allocation6 + $0x878] sm:$0xff]
    %v413 = vld [vmem:[#allocation6 + $0x880] sm:$0xff]
    %v414 = vld [vmem:[#allocation6 + $0x888] sm:$0xff]
    %v415 = vld [vmem:[#allocation6 + $0x890] sm:$0xff]
    %v416 = vld [vmem:[#allocation6 + $0x898] sm:$0xff]
    %v417 = vld [vmem:[#allocation6 + $0x8a0] sm:$0xff]
    %v418 = vld [vmem:[#allocation6 + $0x8a8] sm:$0xff]
    %v419 = vld [vmem:[#allocation6 + $0x8b0] sm:$0xff]
    %v420 = vld [vmem:[#allocation6 + $0x8b8] sm:$0xff]
    %v421 = vld [vmem:[#allocation6 + $0x8c0] sm:$0xff]
    %v422 = vld [vmem:[#allocation6 + $0x8c8] sm:$0xff]
    %v423 = vld [vmem:[#allocation6 + $0x8d0] sm:$0xff]
    %v424 = vld [vmem:[#allocation6 + $0x8d8] sm:$0xff]
    %v425 = vld [vmem:[#allocation6 + $0x8e0] sm:$0xff]
    %v426 = vld [vmem:[#allocation6 + $0x8e8] sm:$0xff]
    %v427 = vld [vmem:[#allocation6 + $0x8f0] sm:$0xff]
    %v428 = vld [vmem:[#allocation6 + $0x8f8] sm:$0xff]
    %v429 = vld [vmem:[#allocation6 + $0x900] sm:$0xff]
    %v430 = vld [vmem:[#allocation6 + $0x908] sm:$0xff]
    %v431 = vld [vmem:[#allocation6 + $0x910] sm:$0xff]
    %v432 = vld [vmem:[#allocation6 + $0x918] sm:$0xff]
    %v433 = vld [vmem:[#allocation6 + $0x920] sm:$0xff]
    %v434 = vld [vmem:[#allocation6 + $0x928] sm:$0xff]
    %v435 = vld [vmem:[#allocation6 + $0x930] sm:$0xff]
    %v436 = vld [vmem:[#allocation6 + $0x938] sm:$0xff]
    %v437 = vld [vmem:[#allocation6 + $0x940] sm:$0xff]
    %v438 = vld [vmem:[#allocation6 + $0x948] sm:$0xff]
    %v439 = vld [vmem:[#allocation6 + $0x950] sm:$0xff]
    %v440 = vld [vmem:[#allocation6 + $0x958] sm:$0xff]
    %v441 = vld [vmem:[#allocation6 + $0x960] sm:$0xff]
    %v442 = vld [vmem:[#allocation6 + $0x968] sm:$0xff]
    %v443 = vld [vmem:[#allocation6 + $0x970] sm:$0xff]
    %v444 = vld [vmem:[#allocation6 + $0x978] sm:$0xff]
    %v445 = vld [vmem:[#allocation6 + $0x980] sm:$0xff]
    %v446 = vld [vmem:[#allocation6 + $0x988] sm:$0xff]
    %v447 = vld [vmem:[#allocation6 + $0x990] sm:$0xff]
    %v448 = vld [vmem:[#allocation6 + $0x998] sm:$0xff]
    %v449 = vld [vmem:[#allocation6 + $0x9a0] sm:$0xff]
    %v450 = vld [vmem:[#allocation6 + $0x9a8] sm:$0xff]
    %v451 = vld [vmem:[#allocation6 + $0x9b0] sm:$0xff]
    %v452 = vld [vmem:[#allocation6 + $0x9b8] sm:$0xff]
    %v453 = vld [vmem:[#allocation6 + $0x9c0] sm:$0xff]
    %v454 = vld [vmem:[#allocation6 + $0x9c8] sm:$0xff]
    %v455 = vld [vmem:[#allocation6 + $0x9d0] sm:$0xff]
    %v456 = vld [vmem:[#allocation6 + $0x9d8] sm:$0xff]
    %v457 = vld [vmem:[#allocation6 + $0x9e0] sm:$0xff]
    %v458 = vld [vmem:[#allocation6 + $0x9e8] sm:$0xff]
    %v459 = vld [vmem:[#allocation6 + $0x9f0] sm:$0xff]
    %v460 = vld [vmem:[#allocation6 + $0x9f8] sm:$0xff]
    %v461 = vld [vmem:[#allocation6 + $0xa00] sm:$0xff]
    %v462 = vld [vmem:[#allocation6 + $0xa08] sm:$0xff]
    %v463 = vld [vmem:[#allocation6 + $0xa10] sm:$0xff]
    %v464 = vld [vmem:[#allocation6 + $0xa18] sm:$0xff]
    %v465 = vld [vmem:[#allocation6 + $0xa20] sm:$0xff]
    %v466 = vld [vmem:[#allocation6 + $0xa28] sm:$0xff]
    %v467 = vld [vmem:[#allocation6 + $0xa30] sm:$0xff]
    %v468 = vld [vmem:[#allocation6 + $0xa38] sm:$0xff]
    %v469 = vld [vmem:[#allocation6 + $0xa40] sm:$0xff]
    %v470 = vld [vmem:[#allocation6 + $0xa48] sm:$0xff]
    %v471 = vld [vmem:[#allocation6 + $0xa50] sm:$0xff]
    %v472 = vld [vmem:[#allocation6 + $0xa58] sm:$0xff]
    %v473 = vld [vmem:[#allocation6 + $0xa60] sm:$0xff]
    %v474 = vld [vmem:[#allocation6 + $0xa68] sm:$0xff]
    %v475 = vld [vmem:[#allocation6 + $0xa70] sm:$0xff]
    %v476 = vld [vmem:[#allocation6 + $0xa78] sm:$0xff]
    %v477 = vld [vmem:[#allocation6 + $0xa80] sm:$0xff]
    %v478 = vld [vmem:[#allocation6 + $0xa88] sm:$0xff]
    %v479 = vld [vmem:[#allocation6 + $0xa90] sm:$0xff]
    %v480 = vld [vmem:[#allocation6 + $0xa98] sm:$0xff]
    %v481 = vld [vmem:[#allocation6 + $0xaa0] sm:$0xff]
    %v482 = vld [vmem:[#allocation6 + $0xaa8] sm:$0xff]
    %v483 = vld [vmem:[#allocation6 + $0xab0] sm:$0xff]
    %v484 = vld [vmem:[#allocation6 + $0xab8] sm:$0xff]
    %v485 = vld [vmem:[#allocation6 + $0xac0] sm:$0xff]
    %v486 = vld [vmem:[#allocation6 + $0xac8] sm:$0xff]
    %v487 = vld [vmem:[#allocation6 + $0xad0] sm:$0xff]
    %v488 = vld [vmem:[#allocation6 + $0xad8] sm:$0xff]
    %v489 = vld [vmem:[#allocation6 + $0xae0] sm:$0xff]
    %v490 = vld [vmem:[#allocation6 + $0xae8] sm:$0xff]
    %v491 = vld [vmem:[#allocation6 + $0xaf0] sm:$0xff]
    %v492 = vld [vmem:[#allocation6 + $0xaf8] sm:$0xff]
    %v493 = vld [vmem:[#allocation6 + $0xb00] sm:$0xff]
    %v494 = vld [vmem:[#allocation6 + $0xb08] sm:$0xff]
    %v495 = vld [vmem:[#allocation6 + $0xb10] sm:$0xff]
    %v496 = vld [vmem:[#allocation6 + $0xb18] sm:$0xff]
    %v497 = vld [vmem:[#allocation6 + $0xb20] sm:$0xff]
    %v498 = vld [vmem:[#allocation6 + $0xb28] sm:$0xff]
    %v499 = vld [vmem:[#allocation6 + $0xb30] sm:$0xff]
    %v500 = vld [vmem:[#allocation6 + $0xb38] sm:$0xff]
    %v501 = vld [vmem:[#allocation6 + $0xb40] sm:$0xff]
    %v502 = vld [vmem:[#allocation6 + $0xb48] sm:$0xff]
    %v503 = vld [vmem:[#allocation6 + $0xb50] sm:$0xff]
    %v504 = vld [vmem:[#allocation6 + $0xb58] sm:$0xff]
    %v505 = vld [vmem:[#allocation6 + $0xb60] sm:$0xff]
    %v506 = vld [vmem:[#allocation6 + $0xb68] sm:$0xff]
    %v507 = vld [vmem:[#allocation6 + $0xb70] sm:$0xff]
    %v508 = vld [vmem:[#allocation6 + $0xb78] sm:$0xff]
    %v509 = vld [vmem:[#allocation6 + $0xb80] sm:$0xff]
    %v510 = vld [vmem:[#allocation6 + $0xb88] sm:$0xff]
    %v511 = vld [vmem:[#allocation6 + $0xb90] sm:$0xff]
    %v512 = vld [vmem:[#allocation6 + $0xb98] sm:$0xff]
    %v513 = vld [vmem:[#allocation6 + $0xba0] sm:$0xff]
    %v514 = vld [vmem:[#allocation6 + $0xba8] sm:$0xff]
    %v515 = vld [vmem:[#allocation6 + $0xbb0] sm:$0xff]
    %v516 = vld [vmem:[#allocation6 + $0xbb8] sm:$0xff]
    %v517 = vld [vmem:[#allocation6 + $0xbc0] sm:$0xff]
    %v518 = vld [vmem:[#allocation6 + $0xbc8] sm:$0xff]
    %v519 = vld [vmem:[#allocation6 + $0xbd0] sm:$0xff]
    %v520 = vld [vmem:[#allocation6 + $0xbd8] sm:$0xff]
    %v521 = vld [vmem:[#allocation6 + $0xbe0] sm:$0xff]
    %v522 = vld [vmem:[#allocation6 + $0xbe8] sm:$0xff]
    %v523 = vld [vmem:[#allocation6 + $0xbf0] sm:$0xff]
    %v524 = vld [vmem:[#allocation6 + $0xbf8] sm:$0xff]
    %v525 = vld [vmem:[#allocation6 + $0xc00] sm:$0xff]
    %v526 = vld [vmem:[#allocation6 + $0xc08] sm:$0xff]
    %v527 = vld [vmem:[#allocation6 + $0xc10] sm:$0xff]
    %v528 = vld [vmem:[#allocation6 + $0xc18] sm:$0xff]
    %v529 = vld [vmem:[#allocation6 + $0xc20] sm:$0xff]
    %v530 = vld [vmem:[#allocation6 + $0xc28] sm:$0xff]
    %v531 = vld [vmem:[#allocation6 + $0xc30] sm:$0xff]
    %v532 = vld [vmem:[#allocation6 + $0xc38] sm:$0xff]
    %v533 = vld [vmem:[#allocation6 + $0xc40] sm:$0xff]
    %v534 = vld [vmem:[#allocation6 + $0xc48] sm:$0xff]
    %v535 = vld [vmem:[#allocation6 + $0xc50] sm:$0xff]
    %v536 = vld [vmem:[#allocation6 + $0xc58] sm:$0xff]
    %v537 = vld [vmem:[#allocation6 + $0xc60] sm:$0xff]
    %v538 = vld [vmem:[#allocation6 + $0xc68] sm:$0xff]
    %v539 = vld [vmem:[#allocation6 + $0xc70] sm:$0xff]
    %v540 = vld [vmem:[#allocation6 + $0xc78] sm:$0xff]
    %v541 = vld [vmem:[#allocation6 + $0xc80] sm:$0xff]
    %v542 = vld [vmem:[#allocation6 + $0xc88] sm:$0xff]
    %v543 = vld [vmem:[#allocation6 + $0xc90] sm:$0xff]
    %v544 = vld [vmem:[#allocation6 + $0xc98] sm:$0xff]
    %v545 = vld [vmem:[#allocation6 + $0xca0] sm:$0xff]
    %v546 = vld [vmem:[#allocation6 + $0xca8] sm:$0xff]
    %v547 = vld [vmem:[#allocation6 + $0xcb0] sm:$0xff]
    %v548 = vld [vmem:[#allocation6 + $0xcb8] sm:$0xff]
    %v549 = vld [vmem:[#allocation6 + $0xcc0] sm:$0xff]
    %v550 = vld [vmem:[#allocation6 + $0xcc8] sm:$0xff]
    %v551 = vld [vmem:[#allocation6 + $0xcd0] sm:$0xff]
    %v552 = vld [vmem:[#allocation6 + $0xcd8] sm:$0xff]
    %v553 = vld [vmem:[#allocation6 + $0xce0] sm:$0xff]
    %v554 = vld [vmem:[#allocation6 + $0xce8] sm:$0xff]
    %v555 = vld [vmem:[#allocation6 + $0xcf0] sm:$0xff]
    %v556 = vld [vmem:[#allocation6 + $0xcf8] sm:$0xff]
    %v557 = vld [vmem:[#allocation6 + $0xd00] sm:$0xff]
    %v558 = vld [vmem:[#allocation6 + $0xd08] sm:$0xff]
    %v559 = vld [vmem:[#allocation6 + $0xd10] sm:$0xff]
    %v560 = vld [vmem:[#allocation6 + $0xd18] sm:$0xff]
    %v561 = vld [vmem:[#allocation6 + $0xd20] sm:$0xff]
    %v562 = vld [vmem:[#allocation6 + $0xd28] sm:$0xff]
    %v563 = vld [vmem:[#allocation6 + $0xd30] sm:$0xff]
    %v564 = vld [vmem:[#allocation6 + $0xd38] sm:$0xff]
    %v565 = vld [vmem:[#allocation6 + $0xd40] sm:$0xff]
    %v566 = vld [vmem:[#allocation6 + $0xd48] sm:$0xff]
    %v567 = vld [vmem:[#allocation6 + $0xd50] sm:$0xff]
    %v568 = vld [vmem:[#allocation6 + $0xd58] sm:$0xff]
    %v569 = vld [vmem:[#allocation6 + $0xd60] sm:$0xff]
    %v570 = vld [vmem:[#allocation6 + $0xd68] sm:$0xff]
    %v571 = vld [vmem:[#allocation6 + $0xd70] sm:$0xff]
    %v572 = vld [vmem:[#allocation6 + $0xd78] sm:$0xff]
    %v573 = vld [vmem:[#allocation6 + $0xd80] sm:$0xff]
    %v574 = vld [vmem:[#allocation6 + $0xd88] sm:$0xff]
    %v575 = vld [vmem:[#allocation6 + $0xd90] sm:$0xff]
    %v576 = vld [vmem:[#allocation6 + $0xd98] sm:$0xff]
    %v577 = vld [vmem:[#allocation6 + $0xda0] sm:$0xff]
    %v578 = vld [vmem:[#allocation6 + $0xda8] sm:$0xff]
    %v579 = vld [vmem:[#allocation6 + $0xdb0] sm:$0xff]
    %v580 = vld [vmem:[#allocation6 + $0xdb8] sm:$0xff]
    %v581 = vld [vmem:[#allocation6 + $0xdc0] sm:$0xff]
    %v582 = vld [vmem:[#allocation6 + $0xdc8] sm:$0xff]
    %v583 = vld [vmem:[#allocation6 + $0xdd0] sm:$0xff]
    %v584 = vld [vmem:[#allocation6 + $0xdd8] sm:$0xff]
    %v585 = vld [vmem:[#allocation6 + $0xde0] sm:$0xff]
    %v586 = vld [vmem:[#allocation6 + $0xde8] sm:$0xff]
    %v587 = vld [vmem:[#allocation6 + $0xdf0] sm:$0xff]
    %v588 = vld [vmem:[#allocation6 + $0xdf8] sm:$0xff]
    %v589 = vld [vmem:[#allocation6 + $0xe00] sm:$0xff]
    %v590 = vld [vmem:[#allocation6 + $0xe08] sm:$0xff]
    %v591 = vld [vmem:[#allocation6 + $0xe10] sm:$0xff]
    %v592 = vld [vmem:[#allocation6 + $0xe18] sm:$0xff]
    %v593 = vld [vmem:[#allocation6 + $0xe20] sm:$0xff]
    %v594 = vld [vmem:[#allocation6 + $0xe28] sm:$0xff]
    %v595 = vld [vmem:[#allocation6 + $0xe30] sm:$0xff]
    %v596 = vld [vmem:[#allocation6 + $0xe38] sm:$0xff]
    %v597 = vld [vmem:[#allocation6 + $0xe40] sm:$0xff]
    %v598 = vld [vmem:[#allocation6 + $0xe48] sm:$0xff]
    %v599 = vld [vmem:[#allocation6 + $0xe50] sm:$0xff]
    %v600 = vld [vmem:[#allocation6 + $0xe58] sm:$0xff]
    %v601 = vld [vmem:[#allocation6 + $0xe60] sm:$0xff]
    %v602 = vld [vmem:[#allocation6 + $0xe68] sm:$0xff]
    %v603 = vld [vmem:[#allocation6 + $0xe70] sm:$0xff]
    %v604 = vld [vmem:[#allocation6 + $0xe78] sm:$0xff]
    %v605 = vld [vmem:[#allocation6 + $0xe80] sm:$0xff]
    %v606 = vld [vmem:[#allocation6 + $0xe88] sm:$0xff]
    %v607 = vld [vmem:[#allocation6 + $0xe90] sm:$0xff]
    %v608 = vld [vmem:[#allocation6 + $0xe98] sm:$0xff]
    %v609 = vld [vmem:[#allocation6 + $0xea0] sm:$0xff]
    %v610 = vld [vmem:[#allocation6 + $0xea8] sm:$0xff]
    %v611 = vld [vmem:[#allocation6 + $0xeb0] sm:$0xff]
    %v612 = vld [vmem:[#allocation6 + $0xeb8] sm:$0xff]
    %v613 = vld [vmem:[#allocation6 + $0xec0] sm:$0xff]
    %v614 = vld [vmem:[#allocation6 + $0xec8] sm:$0xff]
    %v615 = vld [vmem:[#allocation6 + $0xed0] sm:$0xff]
    %v616 = vld [vmem:[#allocation6 + $0xed8] sm:$0xff]
    %v617 = vld [vmem:[#allocation6 + $0xee0] sm:$0xff]
    %v618 = vld [vmem:[#allocation6 + $0xee8] sm:$0xff]
    %v619 = vld [vmem:[#allocation6 + $0xef0] sm:$0xff]
    %v620 = vld [vmem:[#allocation6 + $0xef8] sm:$0xff]
    %v621 = vld [vmem:[#allocation6 + $0xf00] sm:$0xff]
    %v622 = vld [vmem:[#allocation6 + $0xf08] sm:$0xff]
    %v623 = vld [vmem:[#allocation6 + $0xf10] sm:$0xff]
    %v624 = vld [vmem:[#allocation6 + $0xf18] sm:$0xff]
    %v625 = vld [vmem:[#allocation6 + $0xf20] sm:$0xff]
    %v626 = vld [vmem:[#allocation6 + $0xf28] sm:$0xff]
    %v627 = vld [vmem:[#allocation6 + $0xf30] sm:$0xff]
    %v628 = vld [vmem:[#allocation6 + $0xf38] sm:$0xff]
    %v629 = vld [vmem:[#allocation6 + $0xf40] sm:$0xff]
    %v630 = vld [vmem:[#allocation6 + $0xf48] sm:$0xff]
    %v631 = vld [vmem:[#allocation6 + $0xf50] sm:$0xff]
    %v632 = vld [vmem:[#allocation6 + $0xf58] sm:$0xff]
    %v633 = vld [vmem:[#allocation6 + $0xf60] sm:$0xff]
    %v634 = vld [vmem:[#allocation6 + $0xf68] sm:$0xff]
    %v635 = vld [vmem:[#allocation6 + $0xf70] sm:$0xff]
    %v636 = vld [vmem:[#allocation6 + $0xf78] sm:$0xff]
    %v637 = vld [vmem:[#allocation6 + $0xf80] sm:$0xff]
    %v638 = vld [vmem:[#allocation6 + $0xf88] sm:$0xff]
    %v639 = vld [vmem:[#allocation6 + $0xf90] sm:$0xff]
    %v640 = vld [vmem:[#allocation6 + $0xf98] sm:$0xff]
    %v641 = vld [vmem:[#allocation6 + $0xfa0] sm:$0xff]
    %v642 = vld [vmem:[#allocation6 + $0xfa8] sm:$0xff]
    %v643 = vld [vmem:[#allocation6 + $0xfb0] sm:$0xff]
    %v644 = vld [vmem:[#allocation6 + $0xfb8] sm:$0xff]
    %v645 = vld [vmem:[#allocation6 + $0xfc0] sm:$0xff]
    %v646 = vld [vmem:[#allocation6 + $0xfc8] sm:$0xff]
    %v647 = vld [vmem:[#allocation6 + $0xfd0] sm:$0xff]
    %v648 = vld [vmem:[#allocation6 + $0xfd8] sm:$0xff]
    %v649 = vld [vmem:[#allocation6 + $0xfe0] sm:$0xff]
    %v650 = vld [vmem:[#allocation6 + $0xfe8] sm:$0xff]
    %v651 = vld [vmem:[#allocation6 + $0xff0] sm:$0xff]
    %v652 = vld [vmem:[#allocation6 + $0xff8] sm:$0xff]
    %654 = vst [vmem:[#allocation1] ss:$9 sm:$0xff] %v140
    %v655 = vld [vmem:[#allocation1] sm:$0xff]
    %v656 = vld [vmem:[#allocation1 + $0x9] sm:$0xff]
    %v657 = vld [vmem:[#allocation1 + $0x12] sm:$0xff]
    %v658 = vld [vmem:[#allocation1 + $0x1b] sm:$0xff]
    %v659 = vld [vmem:[#allocation1 + $0x24] sm:$0xff]
    %v660 = vld [vmem:[#allocation1 + $0x2d] sm:$0xff]
    %v661 = vld [vmem:[#allocation1 + $0x36] sm:$0xff]
    %v662 = vld [vmem:[#allocation1 + $0x3f] sm:$0xff]
    %v1183 = vunpack.c.l.b16 %v141
    %v1184 = vunpack.c.h.b16 %v141
    %v1185 = vunpack.c.l.b16 %v142
    %v1186 = vunpack.c.h.b16 %v142
    %v1187 = vunpack.c.l.b16 %v143
    %v1188 = vunpack.c.h.b16 %v143
    %v1189 = vunpack.c.l.b16 %v144
    %v1190 = vunpack.c.h.b16 %v144
    %v1191 = vunpack.c.l.b16 %v145
    %v1192 = vunpack.c.h.b16 %v145
    %v1193 = vunpack.c.l.b16 %v146
    %v1194 = vunpack.c.h.b16 %v146
    %v1195 = vunpack.c.l.b16 %v147
    %v1196 = vunpack.c.h.b16 %v147
    %v1197 = vunpack.c.l.b16 %v148
    %v1198 = vunpack.c.h.b16 %v148
    %v1199 = vunpack.c.l.b16 %v149
    %v1200 = vunpack.c.h.b16 %v149
    %v1201 = vunpack.c.l.b16 %v150
    %v1202 = vunpack.c.h.b16 %v150
    %v1203 = vunpack.c.l.b16 %v151
    %v1204 = vunpack.c.h.b16 %v151
    %v1205 = vunpack.c.l.b16 %v152
    %v1206 = vunpack.c.h.b16 %v152
    %v1207 = vunpack.c.l.b16 %v153
    %v1208 = vunpack.c.h.b16 %v153
    %v1209 = vunpack.c.l.b16 %v154
    %v1210 = vunpack.c.h.b16 %v154
    %v1211 = vunpack.c.l.b16 %v155
    %v1212 = vunpack.c.h.b16 %v155
    %v1213 = vunpack.c.l.b16 %v156
    %v1214 = vunpack.c.h.b16 %v156
    %v1215 = vunpack.c.l.b16 %v157
    %v1216 = vunpack.c.h.b16 %v157
    %v1217 = vunpack.c.l.b16 %v158
    %v1218 = vunpack.c.h.b16 %v158
    %v1219 = vunpack.c.l.b16 %v159
    %v1220 = vunpack.c.h.b16 %v159
    %v1221 = vunpack.c.l.b16 %v160
    %v1222 = vunpack.c.h.b16 %v160
    %v1223 = vunpack.c.l.b16 %v161
    %v1224 = vunpack.c.h.b16 %v161
    %v1225 = vunpack.c.l.b16 %v162
    %v1226 = vunpack.c.h.b16 %v162
    %v1227 = vunpack.c.l.b16 %v163
    %v1228 = vunpack.c.h.b16 %v163
    %v1229 = vunpack.c.l.b16 %v164
    %v1230 = vunpack.c.h.b16 %v164
    %v1231 = vunpack.c.l.b16 %v165
    %v1232 = vunpack.c.h.b16 %v165
    %v1233 = vunpack.c.l.b16 %v166
    %v1234 = vunpack.c.h.b16 %v166
    %v1235 = vunpack.c.l.b16 %v167
    %v1236 = vunpack.c.h.b16 %v167
    %v1237 = vunpack.c.l.b16 %v168
    %v1238 = vunpack.c.h.b16 %v168
    %v1239 = vunpack.c.l.b16 %v169
    %v1240 = vunpack.c.h.b16 %v169
    %v1241 = vunpack.c.l.b16 %v170
    %v1242 = vunpack.c.h.b16 %v170
    %v1243 = vunpack.c.l.b16 %v171
    %v1244 = vunpack.c.h.b16 %v171
    %v1245 = vunpack.c.l.b16 %v172
    %v1246 = vunpack.c.h.b16 %v172
    %v1247 = vunpack.c.l.b16 %v173
    %v1248 = vunpack.c.h.b16 %v173
    %v1249 = vunpack.c.l.b16 %v174
    %v1250 = vunpack.c.h.b16 %v174
    %v1251 = vunpack.c.l.b16 %v175
    %v1252 = vunpack.c.h.b16 %v175
    %v1253 = vunpack.c.l.b16 %v176
    %v1254 = vunpack.c.h.b16 %v176
    %v1255 = vunpack.c.l.b16 %v177
    %v1256 = vunpack.c.h.b16 %v177
    %v1257 = vunpack.c.l.b16 %v178
    %v1258 = vunpack.c.h.b16 %v178
    %v1259 = vunpack.c.l.b16 %v179
    %v1260 = vunpack.c.h.b16 %v179
    %v1261 = vunpack.c.l.b16 %v180
    %v1262 = vunpack.c.h.b16 %v180
    %v1263 = vunpack.c.l.b16 %v181
    %v1264 = vunpack.c.h.b16 %v181
    %v1265 = vunpack.c.l.b16 %v182
    %v1266 = vunpack.c.h.b16 %v182
    %v1267 = vunpack.c.l.b16 %v183
    %v1268 = vunpack.c.h.b16 %v183
    %v1269 = vunpack.c.l.b16 %v184
    %v1270 = vunpack.c.h.b16 %v184
    %v1271 = vunpack.c.l.b16 %v185
    %v1272 = vunpack.c.h.b16 %v185
    %v1273 = vunpack.c.l.b16 %v186
    %v1274 = vunpack.c.h.b16 %v186
    %v1275 = vunpack.c.l.b16 %v187
    %v1276 = vunpack.c.h.b16 %v187
    %v1277 = vunpack.c.l.b16 %v188
    %v1278 = vunpack.c.h.b16 %v188
    %v1279 = vunpack.c.l.b16 %v189
    %v1280 = vunpack.c.h.b16 %v189
    %v1281 = vunpack.c.l.b16 %v190
    %v1282 = vunpack.c.h.b16 %v190
    %v1283 = vunpack.c.l.b16 %v191
    %v1284 = vunpack.c.h.b16 %v191
    %v1285 = vunpack.c.l.b16 %v192
    %v1286 = vunpack.c.h.b16 %v192
    %v1287 = vunpack.c.l.b16 %v193
    %v1288 = vunpack.c.h.b16 %v193
    %v1289 = vunpack.c.l.b16 %v194
    %v1290 = vunpack.c.h.b16 %v194
    %v1291 = vunpack.c.l.b16 %v195
    %v1292 = vunpack.c.h.b16 %v195
    %v1293 = vunpack.c.l.b16 %v196
    %v1294 = vunpack.c.h.b16 %v196
    %v1295 = vunpack.c.l.b16 %v197
    %v1296 = vunpack.c.h.b16 %v197
    %v1297 = vunpack.c.l.b16 %v198
    %v1298 = vunpack.c.h.b16 %v198
    %v1299 = vunpack.c.l.b16 %v199
    %v1300 = vunpack.c.h.b16 %v199
    %v1301 = vunpack.c.l.b16 %v200
    %v1302 = vunpack.c.h.b16 %v200
    %v1303 = vunpack.c.l.b16 %v201
    %v1304 = vunpack.c.h.b16 %v201
    %v1305 = vunpack.c.l.b16 %v202
    %v1306 = vunpack.c.h.b16 %v202
    %v1307 = vunpack.c.l.b16 %v203
    %v1308 = vunpack.c.h.b16 %v203
    %v1309 = vunpack.c.l.b16 %v204
    %v1310 = vunpack.c.h.b16 %v204
    %v1311 = vunpack.c.l.b16 %v205
    %v1312 = vunpack.c.h.b16 %v205
    %v1313 = vunpack.c.l.b16 %v206
    %v1314 = vunpack.c.h.b16 %v206
    %v1315 = vunpack.c.l.b16 %v207
    %v1316 = vunpack.c.h.b16 %v207
    %v1317 = vunpack.c.l.b16 %v208
    %v1318 = vunpack.c.h.b16 %v208
    %v1319 = vunpack.c.l.b16 %v209
    %v1320 = vunpack.c.h.b16 %v209
    %v1321 = vunpack.c.l.b16 %v210
    %v1322 = vunpack.c.h.b16 %v210
    %v1323 = vunpack.c.l.b16 %v211
    %v1324 = vunpack.c.h.b16 %v211
    %v1325 = vunpack.c.l.b16 %v212
    %v1326 = vunpack.c.h.b16 %v212
    %v1327 = vunpack.c.l.b16 %v213
    %v1328 = vunpack.c.h.b16 %v213
    %v1329 = vunpack.c.l.b16 %v214
    %v1330 = vunpack.c.h.b16 %v214
    %v1331 = vunpack.c.l.b16 %v215
    %v1332 = vunpack.c.h.b16 %v215
    %v1333 = vunpack.c.l.b16 %v216
    %v1334 = vunpack.c.h.b16 %v216
    %v1335 = vunpack.c.l.b16 %v217
    %v1336 = vunpack.c.h.b16 %v217
    %v1337 = vunpack.c.l.b16 %v218
    %v1338 = vunpack.c.h.b16 %v218
    %v1339 = vunpack.c.l.b16 %v219
    %v1340 = vunpack.c.h.b16 %v219
    %v1341 = vunpack.c.l.b16 %v220
    %v1342 = vunpack.c.h.b16 %v220
    %v1343 = vunpack.c.l.b16 %v221
    %v1344 = vunpack.c.h.b16 %v221
    %v1345 = vunpack.c.l.b16 %v222
    %v1346 = vunpack.c.h.b16 %v222
    %v1347 = vunpack.c.l.b16 %v223
    %v1348 = vunpack.c.h.b16 %v223
    %v1349 = vunpack.c.l.b16 %v224
    %v1350 = vunpack.c.h.b16 %v224
    %v1351 = vunpack.c.l.b16 %v225
    %v1352 = vunpack.c.h.b16 %v225
    %v1353 = vunpack.c.l.b16 %v226
    %v1354 = vunpack.c.h.b16 %v226
    %v1355 = vunpack.c.l.b16 %v227
    %v1356 = vunpack.c.h.b16 %v227
    %v1357 = vunpack.c.l.b16 %v228
    %v1358 = vunpack.c.h.b16 %v228
    %v1359 = vunpack.c.l.b16 %v229
    %v1360 = vunpack.c.h.b16 %v229
    %v1361 = vunpack.c.l.b16 %v230
    %v1362 = vunpack.c.h.b16 %v230
    %v1363 = vunpack.c.l.b16 %v231
    %v1364 = vunpack.c.h.b16 %v231
    %v1365 = vunpack.c.l.b16 %v232
    %v1366 = vunpack.c.h.b16 %v232
    %v1367 = vunpack.c.l.b16 %v233
    %v1368 = vunpack.c.h.b16 %v233
    %v1369 = vunpack.c.l.b16 %v234
    %v1370 = vunpack.c.h.b16 %v234
    %v1371 = vunpack.c.l.b16 %v235
    %v1372 = vunpack.c.h.b16 %v235
    %v1373 = vunpack.c.l.b16 %v236
    %v1374 = vunpack.c.h.b16 %v236
    %v1375 = vunpack.c.l.b16 %v237
    %v1376 = vunpack.c.h.b16 %v237
    %v1377 = vunpack.c.l.b16 %v238
    %v1378 = vunpack.c.h.b16 %v238
    %v1379 = vunpack.c.l.b16 %v239
    %v1380 = vunpack.c.h.b16 %v239
    %v1381 = vunpack.c.l.b16 %v240
    %v1382 = vunpack.c.h.b16 %v240
    %v1383 = vunpack.c.l.b16 %v241
    %v1384 = vunpack.c.h.b16 %v241
    %v1385 = vunpack.c.l.b16 %v242
    %v1386 = vunpack.c.h.b16 %v242
    %v1387 = vunpack.c.l.b16 %v243
    %v1388 = vunpack.c.h.b16 %v243
    %v1389 = vunpack.c.l.b16 %v244
    %v1390 = vunpack.c.h.b16 %v244
    %v1391 = vunpack.c.l.b16 %v245
    %v1392 = vunpack.c.h.b16 %v245
    %v1393 = vunpack.c.l.b16 %v246
    %v1394 = vunpack.c.h.b16 %v246
    %v1395 = vunpack.c.l.b16 %v247
    %v1396 = vunpack.c.h.b16 %v247
    %v1397 = vunpack.c.l.b16 %v248
    %v1398 = vunpack.c.h.b16 %v248
    %v1399 = vunpack.c.l.b16 %v249
    %v1400 = vunpack.c.h.b16 %v249
    %v1401 = vunpack.c.l.b16 %v250
    %v1402 = vunpack.c.h.b16 %v250
    %v1403 = vunpack.c.l.b16 %v251
    %v1404 = vunpack.c.h.b16 %v251
    %v1405 = vunpack.c.l.b16 %v252
    %v1406 = vunpack.c.h.b16 %v252
    %v1407 = vunpack.c.l.b16 %v253
    %v1408 = vunpack.c.h.b16 %v253
    %v1409 = vunpack.c.l.b16 %v254
    %v1410 = vunpack.c.h.b16 %v254
    %v1411 = vunpack.c.l.b16 %v255
    %v1412 = vunpack.c.h.b16 %v255
    %v1413 = vunpack.c.l.b16 %v256
    %v1414 = vunpack.c.h.b16 %v256
    %v1415 = vunpack.c.l.b16 %v257
    %v1416 = vunpack.c.h.b16 %v257
    %v1417 = vunpack.c.l.b16 %v258
    %v1418 = vunpack.c.h.b16 %v258
    %v1419 = vunpack.c.l.b16 %v259
    %v1420 = vunpack.c.h.b16 %v259
    %v1421 = vunpack.c.l.b16 %v260
    %v1422 = vunpack.c.h.b16 %v260
    %v1423 = vunpack.c.l.b16 %v261
    %v1424 = vunpack.c.h.b16 %v261
    %v1425 = vunpack.c.l.b16 %v262
    %v1426 = vunpack.c.h.b16 %v262
    %v1427 = vunpack.c.l.b16 %v263
    %v1428 = vunpack.c.h.b16 %v263
    %v1429 = vunpack.c.l.b16 %v264
    %v1430 = vunpack.c.h.b16 %v264
    %v1431 = vunpack.c.l.b16 %v265
    %v1432 = vunpack.c.h.b16 %v265
    %v1433 = vunpack.c.l.b16 %v266
    %v1434 = vunpack.c.h.b16 %v266
    %v1435 = vunpack.c.l.b16 %v267
    %v1436 = vunpack.c.h.b16 %v267
    %v1437 = vunpack.c.l.b16 %v268
    %v1438 = vunpack.c.h.b16 %v268
    %v1439 = vunpack.c.l.b16 %v269
    %v1440 = vunpack.c.h.b16 %v269
    %v1441 = vunpack.c.l.b16 %v270
    %v1442 = vunpack.c.h.b16 %v270
    %v1443 = vunpack.c.l.b16 %v271
    %v1444 = vunpack.c.h.b16 %v271
    %v1445 = vunpack.c.l.b16 %v272
    %v1446 = vunpack.c.h.b16 %v272
    %v1447 = vunpack.c.l.b16 %v273
    %v1448 = vunpack.c.h.b16 %v273
    %v1449 = vunpack.c.l.b16 %v274
    %v1450 = vunpack.c.h.b16 %v274
    %v1451 = vunpack.c.l.b16 %v275
    %v1452 = vunpack.c.h.b16 %v275
    %v1453 = vunpack.c.l.b16 %v276
    %v1454 = vunpack.c.h.b16 %v276
    %v1455 = vunpack.c.l.b16 %v277
    %v1456 = vunpack.c.h.b16 %v277
    %v1457 = vunpack.c.l.b16 %v278
    %v1458 = vunpack.c.h.b16 %v278
    %v1459 = vunpack.c.l.b16 %v279
    %v1460 = vunpack.c.h.b16 %v279
    %v1461 = vunpack.c.l.b16 %v280
    %v1462 = vunpack.c.h.b16 %v280
    %v1463 = vunpack.c.l.b16 %v281
    %v1464 = vunpack.c.h.b16 %v281
    %v1465 = vunpack.c.l.b16 %v282
    %v1466 = vunpack.c.h.b16 %v282
    %v1467 = vunpack.c.l.b16 %v283
    %v1468 = vunpack.c.h.b16 %v283
    %v1469 = vunpack.c.l.b16 %v284
    %v1470 = vunpack.c.h.b16 %v284
    %v1471 = vunpack.c.l.b16 %v285
    %v1472 = vunpack.c.h.b16 %v285
    %v1473 = vunpack.c.l.b16 %v286
    %v1474 = vunpack.c.h.b16 %v286
    %v1475 = vunpack.c.l.b16 %v287
    %v1476 = vunpack.c.h.b16 %v287
    %v1477 = vunpack.c.l.b16 %v288
    %v1478 = vunpack.c.h.b16 %v288
    %v1479 = vunpack.c.l.b16 %v289
    %v1480 = vunpack.c.h.b16 %v289
    %v1481 = vunpack.c.l.b16 %v290
    %v1482 = vunpack.c.h.b16 %v290
    %v1483 = vunpack.c.l.b16 %v291
    %v1484 = vunpack.c.h.b16 %v291
    %v1485 = vunpack.c.l.b16 %v292
    %v1486 = vunpack.c.h.b16 %v292
    %v1487 = vunpack.c.l.b16 %v293
    %v1488 = vunpack.c.h.b16 %v293
    %v1489 = vunpack.c.l.b16 %v294
    %v1490 = vunpack.c.h.b16 %v294
    %v1491 = vunpack.c.l.b16 %v295
    %v1492 = vunpack.c.h.b16 %v295
    %v1493 = vunpack.c.l.b16 %v296
    %v1494 = vunpack.c.h.b16 %v296
    %v1495 = vunpack.c.l.b16 %v297
    %v1496 = vunpack.c.h.b16 %v297
    %v1497 = vunpack.c.l.b16 %v298
    %v1498 = vunpack.c.h.b16 %v298
    %v1499 = vunpack.c.l.b16 %v299
    %v1500 = vunpack.c.h.b16 %v299
    %v1501 = vunpack.c.l.b16 %v300
    %v1502 = vunpack.c.h.b16 %v300
    %v1503 = vunpack.c.l.b16 %v301
    %v1504 = vunpack.c.h.b16 %v301
    %v1505 = vunpack.c.l.b16 %v302
    %v1506 = vunpack.c.h.b16 %v302
    %v1507 = vunpack.c.l.b16 %v303
    %v1508 = vunpack.c.h.b16 %v303
    %v1509 = vunpack.c.l.b16 %v304
    %v1510 = vunpack.c.h.b16 %v304
    %v1511 = vunpack.c.l.b16 %v305
    %v1512 = vunpack.c.h.b16 %v305
    %v1513 = vunpack.c.l.b16 %v306
    %v1514 = vunpack.c.h.b16 %v306
    %v1515 = vunpack.c.l.b16 %v307
    %v1516 = vunpack.c.h.b16 %v307
    %v1517 = vunpack.c.l.b16 %v308
    %v1518 = vunpack.c.h.b16 %v308
    %v1519 = vunpack.c.l.b16 %v309
    %v1520 = vunpack.c.h.b16 %v309
    %v1521 = vunpack.c.l.b16 %v310
    %v1522 = vunpack.c.h.b16 %v310
    %v1523 = vunpack.c.l.b16 %v311
    %v1524 = vunpack.c.h.b16 %v311
    %v1525 = vunpack.c.l.b16 %v312
    %v1526 = vunpack.c.h.b16 %v312
    %v1527 = vunpack.c.l.b16 %v313
    %v1528 = vunpack.c.h.b16 %v313
    %v1529 = vunpack.c.l.b16 %v314
    %v1530 = vunpack.c.h.b16 %v314
    %v1531 = vunpack.c.l.b16 %v315
    %v1532 = vunpack.c.h.b16 %v315
    %v1533 = vunpack.c.l.b16 %v316
    %v1534 = vunpack.c.h.b16 %v316
    %v1535 = vunpack.c.l.b16 %v317
    %v1536 = vunpack.c.h.b16 %v317
    %v1537 = vunpack.c.l.b16 %v318
    %v1538 = vunpack.c.h.b16 %v318
    %v1539 = vunpack.c.l.b16 %v319
    %v1540 = vunpack.c.h.b16 %v319
    %v1541 = vunpack.c.l.b16 %v320
    %v1542 = vunpack.c.h.b16 %v320
    %v1543 = vunpack.c.l.b16 %v321
    %v1544 = vunpack.c.h.b16 %v321
    %v1545 = vunpack.c.l.b16 %v322
    %v1546 = vunpack.c.h.b16 %v322
    %v1547 = vunpack.c.l.b16 %v323
    %v1548 = vunpack.c.h.b16 %v323
    %v1549 = vunpack.c.l.b16 %v324
    %v1550 = vunpack.c.h.b16 %v324
    %v1551 = vunpack.c.l.b16 %v325
    %v1552 = vunpack.c.h.b16 %v325
    %v1553 = vunpack.c.l.b16 %v326
    %v1554 = vunpack.c.h.b16 %v326
    %v1555 = vunpack.c.l.b16 %v327
    %v1556 = vunpack.c.h.b16 %v327
    %v1557 = vunpack.c.l.b16 %v328
    %v1558 = vunpack.c.h.b16 %v328
    %v1559 = vunpack.c.l.b16 %v329
    %v1560 = vunpack.c.h.b16 %v329
    %v1561 = vunpack.c.l.b16 %v330
    %v1562 = vunpack.c.h.b16 %v330
    %v1563 = vunpack.c.l.b16 %v331
    %v1564 = vunpack.c.h.b16 %v331
    %v1565 = vunpack.c.l.b16 %v332
    %v1566 = vunpack.c.h.b16 %v332
    %v1567 = vunpack.c.l.b16 %v333
    %v1568 = vunpack.c.h.b16 %v333
    %v1569 = vunpack.c.l.b16 %v334
    %v1570 = vunpack.c.h.b16 %v334
    %v1571 = vunpack.c.l.b16 %v335
    %v1572 = vunpack.c.h.b16 %v335
    %v1573 = vunpack.c.l.b16 %v336
    %v1574 = vunpack.c.h.b16 %v336
    %v1575 = vunpack.c.l.b16 %v337
    %v1576 = vunpack.c.h.b16 %v337
    %v1577 = vunpack.c.l.b16 %v338
    %v1578 = vunpack.c.h.b16 %v338
    %v1579 = vunpack.c.l.b16 %v339
    %v1580 = vunpack.c.h.b16 %v339
    %v1581 = vunpack.c.l.b16 %v340
    %v1582 = vunpack.c.h.b16 %v340
    %v1583 = vunpack.c.l.b16 %v341
    %v1584 = vunpack.c.h.b16 %v341
    %v1585 = vunpack.c.l.b16 %v342
    %v1586 = vunpack.c.h.b16 %v342
    %v1587 = vunpack.c.l.b16 %v343
    %v1588 = vunpack.c.h.b16 %v343
    %v1589 = vunpack.c.l.b16 %v344
    %v1590 = vunpack.c.h.b16 %v344
    %v1591 = vunpack.c.l.b16 %v345
    %v1592 = vunpack.c.h.b16 %v345
    %v1593 = vunpack.c.l.b16 %v346
    %v1594 = vunpack.c.h.b16 %v346
    %v1595 = vunpack.c.l.b16 %v347
    %v1596 = vunpack.c.h.b16 %v347
    %v1597 = vunpack.c.l.b16 %v348
    %v1598 = vunpack.c.h.b16 %v348
    %v1599 = vunpack.c.l.b16 %v349
    %v1600 = vunpack.c.h.b16 %v349
    %v1601 = vunpack.c.l.b16 %v350
    %v1602 = vunpack.c.h.b16 %v350
    %v1603 = vunpack.c.l.b16 %v351
    %v1604 = vunpack.c.h.b16 %v351
    %v1605 = vunpack.c.l.b16 %v352
    %v1606 = vunpack.c.h.b16 %v352
    %v1607 = vunpack.c.l.b16 %v353
    %v1608 = vunpack.c.h.b16 %v353
    %v1609 = vunpack.c.l.b16 %v354
    %v1610 = vunpack.c.h.b16 %v354
    %v1611 = vunpack.c.l.b16 %v355
    %v1612 = vunpack.c.h.b16 %v355
    %v1613 = vunpack.c.l.b16 %v356
    %v1614 = vunpack.c.h.b16 %v356
    %v1615 = vunpack.c.l.b16 %v357
    %v1616 = vunpack.c.h.b16 %v357
    %v1617 = vunpack.c.l.b16 %v358
    %v1618 = vunpack.c.h.b16 %v358
    %v1619 = vunpack.c.l.b16 %v359
    %v1620 = vunpack.c.h.b16 %v359
    %v1621 = vunpack.c.l.b16 %v360
    %v1622 = vunpack.c.h.b16 %v360
    %v1623 = vunpack.c.l.b16 %v361
    %v1624 = vunpack.c.h.b16 %v361
    %v1625 = vunpack.c.l.b16 %v362
    %v1626 = vunpack.c.h.b16 %v362
    %v1627 = vunpack.c.l.b16 %v363
    %v1628 = vunpack.c.h.b16 %v363
    %v1629 = vunpack.c.l.b16 %v364
    %v1630 = vunpack.c.h.b16 %v364
    %v1631 = vunpack.c.l.b16 %v365
    %v1632 = vunpack.c.h.b16 %v365
    %v1633 = vunpack.c.l.b16 %v366
    %v1634 = vunpack.c.h.b16 %v366
    %v1635 = vunpack.c.l.b16 %v367
    %v1636 = vunpack.c.h.b16 %v367
    %v1637 = vunpack.c.l.b16 %v368
    %v1638 = vunpack.c.h.b16 %v368
    %v1639 = vunpack.c.l.b16 %v369
    %v1640 = vunpack.c.h.b16 %v369
    %v1641 = vunpack.c.l.b16 %v370
    %v1642 = vunpack.c.h.b16 %v370
    %v1643 = vunpack.c.l.b16 %v371
    %v1644 = vunpack.c.h.b16 %v371
    %v1645 = vunpack.c.l.b16 %v372
    %v1646 = vunpack.c.h.b16 %v372
    %v1647 = vunpack.c.l.b16 %v373
    %v1648 = vunpack.c.h.b16 %v373
    %v1649 = vunpack.c.l.b16 %v374
    %v1650 = vunpack.c.h.b16 %v374
    %v1651 = vunpack.c.l.b16 %v375
    %v1652 = vunpack.c.h.b16 %v375
    %v1653 = vunpack.c.l.b16 %v376
    %v1654 = vunpack.c.h.b16 %v376
    %v1655 = vunpack.c.l.b16 %v377
    %v1656 = vunpack.c.h.b16 %v377
    %v1657 = vunpack.c.l.b16 %v378
    %v1658 = vunpack.c.h.b16 %v378
    %v1659 = vunpack.c.l.b16 %v379
    %v1660 = vunpack.c.h.b16 %v379
    %v1661 = vunpack.c.l.b16 %v380
    %v1662 = vunpack.c.h.b16 %v380
    %v1663 = vunpack.c.l.b16 %v381
    %v1664 = vunpack.c.h.b16 %v381
    %v1665 = vunpack.c.l.b16 %v382
    %v1666 = vunpack.c.h.b16 %v382
    %v1667 = vunpack.c.l.b16 %v383
    %v1668 = vunpack.c.h.b16 %v383
    %v1669 = vunpack.c.l.b16 %v384
    %v1670 = vunpack.c.h.b16 %v384
    %v1671 = vunpack.c.l.b16 %v385
    %v1672 = vunpack.c.h.b16 %v385
    %v1673 = vunpack.c.l.b16 %v386
    %v1674 = vunpack.c.h.b16 %v386
    %v1675 = vunpack.c.l.b16 %v387
    %v1676 = vunpack.c.h.b16 %v387
    %v1677 = vunpack.c.l.b16 %v388
    %v1678 = vunpack.c.h.b16 %v388
    %v1679 = vunpack.c.l.b16 %v389
    %v1680 = vunpack.c.h.b16 %v389
    %v1681 = vunpack.c.l.b16 %v390
    %v1682 = vunpack.c.h.b16 %v390
    %v1683 = vunpack.c.l.b16 %v391
    %v1684 = vunpack.c.h.b16 %v391
    %v1685 = vunpack.c.l.b16 %v392
    %v1686 = vunpack.c.h.b16 %v392
    %v1687 = vunpack.c.l.b16 %v393
    %v1688 = vunpack.c.h.b16 %v393
    %v1689 = vunpack.c.l.b16 %v394
    %v1690 = vunpack.c.h.b16 %v394
    %v1691 = vunpack.c.l.b16 %v395
    %v1692 = vunpack.c.h.b16 %v395
    %v1693 = vunpack.c.l.b16 %v396
    %v1694 = vunpack.c.h.b16 %v396
    %v1695 = vunpack.c.l.b16 %v397
    %v1696 = vunpack.c.h.b16 %v397
    %v1697 = vunpack.c.l.b16 %v398
    %v1698 = vunpack.c.h.b16 %v398
    %v1699 = vunpack.c.l.b16 %v399
    %v1700 = vunpack.c.h.b16 %v399
    %v1701 = vunpack.c.l.b16 %v400
    %v1702 = vunpack.c.h.b16 %v400
    %v1703 = vunpack.c.l.b16 %v401
    %v1704 = vunpack.c.h.b16 %v401
    %v1705 = vunpack.c.l.b16 %v402
    %v1706 = vunpack.c.h.b16 %v402
    %v1707 = vunpack.c.l.b16 %v403
    %v1708 = vunpack.c.h.b16 %v403
    %v1709 = vunpack.c.l.b16 %v404
    %v1710 = vunpack.c.h.b16 %v404
    %v1711 = vunpack.c.l.b16 %v405
    %v1712 = vunpack.c.h.b16 %v405
    %v1713 = vunpack.c.l.b16 %v406
    %v1714 = vunpack.c.h.b16 %v406
    %v1715 = vunpack.c.l.b16 %v407
    %v1716 = vunpack.c.h.b16 %v407
    %v1717 = vunpack.c.l.b16 %v408
    %v1718 = vunpack.c.h.b16 %v408
    %v1719 = vunpack.c.l.b16 %v409
    %v1720 = vunpack.c.h.b16 %v409
    %v1721 = vunpack.c.l.b16 %v410
    %v1722 = vunpack.c.h.b16 %v410
    %v1723 = vunpack.c.l.b16 %v411
    %v1724 = vunpack.c.h.b16 %v411
    %v1725 = vunpack.c.l.b16 %v412
    %v1726 = vunpack.c.h.b16 %v412
    %v1727 = vunpack.c.l.b16 %v413
    %v1728 = vunpack.c.h.b16 %v413
    %v1729 = vunpack.c.l.b16 %v414
    %v1730 = vunpack.c.h.b16 %v414
    %v1731 = vunpack.c.l.b16 %v415
    %v1732 = vunpack.c.h.b16 %v415
    %v1733 = vunpack.c.l.b16 %v416
    %v1734 = vunpack.c.h.b16 %v416
    %v1735 = vunpack.c.l.b16 %v417
    %v1736 = vunpack.c.h.b16 %v417
    %v1737 = vunpack.c.l.b16 %v418
    %v1738 = vunpack.c.h.b16 %v418
    %v1739 = vunpack.c.l.b16 %v419
    %v1740 = vunpack.c.h.b16 %v419
    %v1741 = vunpack.c.l.b16 %v420
    %v1742 = vunpack.c.h.b16 %v420
    %v1743 = vunpack.c.l.b16 %v421
    %v1744 = vunpack.c.h.b16 %v421
    %v1745 = vunpack.c.l.b16 %v422
    %v1746 = vunpack.c.h.b16 %v422
    %v1747 = vunpack.c.l.b16 %v423
    %v1748 = vunpack.c.h.b16 %v423
    %v1749 = vunpack.c.l.b16 %v424
    %v1750 = vunpack.c.h.b16 %v424
    %v1751 = vunpack.c.l.b16 %v425
    %v1752 = vunpack.c.h.b16 %v425
    %v1753 = vunpack.c.l.b16 %v426
    %v1754 = vunpack.c.h.b16 %v426
    %v1755 = vunpack.c.l.b16 %v427
    %v1756 = vunpack.c.h.b16 %v427
    %v1757 = vunpack.c.l.b16 %v428
    %v1758 = vunpack.c.h.b16 %v428
    %v1759 = vunpack.c.l.b16 %v429
    %v1760 = vunpack.c.h.b16 %v429
    %v1761 = vunpack.c.l.b16 %v430
    %v1762 = vunpack.c.h.b16 %v430
    %v1763 = vunpack.c.l.b16 %v431
    %v1764 = vunpack.c.h.b16 %v431
    %v1765 = vunpack.c.l.b16 %v432
    %v1766 = vunpack.c.h.b16 %v432
    %v1767 = vunpack.c.l.b16 %v433
    %v1768 = vunpack.c.h.b16 %v433
    %v1769 = vunpack.c.l.b16 %v434
    %v1770 = vunpack.c.h.b16 %v434
    %v1771 = vunpack.c.l.b16 %v435
    %v1772 = vunpack.c.h.b16 %v435
    %v1773 = vunpack.c.l.b16 %v436
    %v1774 = vunpack.c.h.b16 %v436
    %v1775 = vunpack.c.l.b16 %v437
    %v1776 = vunpack.c.h.b16 %v437
    %v1777 = vunpack.c.l.b16 %v438
    %v1778 = vunpack.c.h.b16 %v438
    %v1779 = vunpack.c.l.b16 %v439
    %v1780 = vunpack.c.h.b16 %v439
    %v1781 = vunpack.c.l.b16 %v440
    %v1782 = vunpack.c.h.b16 %v440
    %v1783 = vunpack.c.l.b16 %v441
    %v1784 = vunpack.c.h.b16 %v441
    %v1785 = vunpack.c.l.b16 %v442
    %v1786 = vunpack.c.h.b16 %v442
    %v1787 = vunpack.c.l.b16 %v443
    %v1788 = vunpack.c.h.b16 %v443
    %v1789 = vunpack.c.l.b16 %v444
    %v1790 = vunpack.c.h.b16 %v444
    %v1791 = vunpack.c.l.b16 %v445
    %v1792 = vunpack.c.h.b16 %v445
    %v1793 = vunpack.c.l.b16 %v446
    %v1794 = vunpack.c.h.b16 %v446
    %v1795 = vunpack.c.l.b16 %v447
    %v1796 = vunpack.c.h.b16 %v447
    %v1797 = vunpack.c.l.b16 %v448
    %v1798 = vunpack.c.h.b16 %v448
    %v1799 = vunpack.c.l.b16 %v449
    %v1800 = vunpack.c.h.b16 %v449
    %v1801 = vunpack.c.l.b16 %v450
    %v1802 = vunpack.c.h.b16 %v450
    %v1803 = vunpack.c.l.b16 %v451
    %v1804 = vunpack.c.h.b16 %v451
    %v1805 = vunpack.c.l.b16 %v452
    %v1806 = vunpack.c.h.b16 %v452
    %v1807 = vunpack.c.l.b16 %v453
    %v1808 = vunpack.c.h.b16 %v453
    %v1809 = vunpack.c.l.b16 %v454
    %v1810 = vunpack.c.h.b16 %v454
    %v1811 = vunpack.c.l.b16 %v455
    %v1812 = vunpack.c.h.b16 %v455
    %v1813 = vunpack.c.l.b16 %v456
    %v1814 = vunpack.c.h.b16 %v456
    %v1815 = vunpack.c.l.b16 %v457
    %v1816 = vunpack.c.h.b16 %v457
    %v1817 = vunpack.c.l.b16 %v458
    %v1818 = vunpack.c.h.b16 %v458
    %v1819 = vunpack.c.l.b16 %v459
    %v1820 = vunpack.c.h.b16 %v459
    %v1821 = vunpack.c.l.b16 %v460
    %v1822 = vunpack.c.h.b16 %v460
    %v1823 = vunpack.c.l.b16 %v461
    %v1824 = vunpack.c.h.b16 %v461
    %v1825 = vunpack.c.l.b16 %v462
    %v1826 = vunpack.c.h.b16 %v462
    %v1827 = vunpack.c.l.b16 %v463
    %v1828 = vunpack.c.h.b16 %v463
    %v1829 = vunpack.c.l.b16 %v464
    %v1830 = vunpack.c.h.b16 %v464
    %v1831 = vunpack.c.l.b16 %v465
    %v1832 = vunpack.c.h.b16 %v465
    %v1833 = vunpack.c.l.b16 %v466
    %v1834 = vunpack.c.h.b16 %v466
    %v1835 = vunpack.c.l.b16 %v467
    %v1836 = vunpack.c.h.b16 %v467
    %v1837 = vunpack.c.l.b16 %v468
    %v1838 = vunpack.c.h.b16 %v468
    %v1839 = vunpack.c.l.b16 %v469
    %v1840 = vunpack.c.h.b16 %v469
    %v1841 = vunpack.c.l.b16 %v470
    %v1842 = vunpack.c.h.b16 %v470
    %v1843 = vunpack.c.l.b16 %v471
    %v1844 = vunpack.c.h.b16 %v471
    %v1845 = vunpack.c.l.b16 %v472
    %v1846 = vunpack.c.h.b16 %v472
    %v1847 = vunpack.c.l.b16 %v473
    %v1848 = vunpack.c.h.b16 %v473
    %v1849 = vunpack.c.l.b16 %v474
    %v1850 = vunpack.c.h.b16 %v474
    %v1851 = vunpack.c.l.b16 %v475
    %v1852 = vunpack.c.h.b16 %v475
    %v1853 = vunpack.c.l.b16 %v476
    %v1854 = vunpack.c.h.b16 %v476
    %v1855 = vunpack.c.l.b16 %v477
    %v1856 = vunpack.c.h.b16 %v477
    %v1857 = vunpack.c.l.b16 %v478
    %v1858 = vunpack.c.h.b16 %v478
    %v1859 = vunpack.c.l.b16 %v479
    %v1860 = vunpack.c.h.b16 %v479
    %v1861 = vunpack.c.l.b16 %v480
    %v1862 = vunpack.c.h.b16 %v480
    %v1863 = vunpack.c.l.b16 %v481
    %v1864 = vunpack.c.h.b16 %v481
    %v1865 = vunpack.c.l.b16 %v482
    %v1866 = vunpack.c.h.b16 %v482
    %v1867 = vunpack.c.l.b16 %v483
    %v1868 = vunpack.c.h.b16 %v483
    %v1869 = vunpack.c.l.b16 %v484
    %v1870 = vunpack.c.h.b16 %v484
    %v1871 = vunpack.c.l.b16 %v485
    %v1872 = vunpack.c.h.b16 %v485
    %v1873 = vunpack.c.l.b16 %v486
    %v1874 = vunpack.c.h.b16 %v486
    %v1875 = vunpack.c.l.b16 %v487
    %v1876 = vunpack.c.h.b16 %v487
    %v1877 = vunpack.c.l.b16 %v488
    %v1878 = vunpack.c.h.b16 %v488
    %v1879 = vunpack.c.l.b16 %v489
    %v1880 = vunpack.c.h.b16 %v489
    %v1881 = vunpack.c.l.b16 %v490
    %v1882 = vunpack.c.h.b16 %v490
    %v1883 = vunpack.c.l.b16 %v491
    %v1884 = vunpack.c.h.b16 %v491
    %v1885 = vunpack.c.l.b16 %v492
    %v1886 = vunpack.c.h.b16 %v492
    %v1887 = vunpack.c.l.b16 %v493
    %v1888 = vunpack.c.h.b16 %v493
    %v1889 = vunpack.c.l.b16 %v494
    %v1890 = vunpack.c.h.b16 %v494
    %v1891 = vunpack.c.l.b16 %v495
    %v1892 = vunpack.c.h.b16 %v495
    %v1893 = vunpack.c.l.b16 %v496
    %v1894 = vunpack.c.h.b16 %v496
    %v1895 = vunpack.c.l.b16 %v497
    %v1896 = vunpack.c.h.b16 %v497
    %v1897 = vunpack.c.l.b16 %v498
    %v1898 = vunpack.c.h.b16 %v498
    %v1899 = vunpack.c.l.b16 %v499
    %v1900 = vunpack.c.h.b16 %v499
    %v1901 = vunpack.c.l.b16 %v500
    %v1902 = vunpack.c.h.b16 %v500
    %v1903 = vunpack.c.l.b16 %v501
    %v1904 = vunpack.c.h.b16 %v501
    %v1905 = vunpack.c.l.b16 %v502
    %v1906 = vunpack.c.h.b16 %v502
    %v1907 = vunpack.c.l.b16 %v503
    %v1908 = vunpack.c.h.b16 %v503
    %v1909 = vunpack.c.l.b16 %v504
    %v1910 = vunpack.c.h.b16 %v504
    %v1911 = vunpack.c.l.b16 %v505
    %v1912 = vunpack.c.h.b16 %v505
    %v1913 = vunpack.c.l.b16 %v506
    %v1914 = vunpack.c.h.b16 %v506
    %v1915 = vunpack.c.l.b16 %v507
    %v1916 = vunpack.c.h.b16 %v507
    %v1917 = vunpack.c.l.b16 %v508
    %v1918 = vunpack.c.h.b16 %v508
    %v1919 = vunpack.c.l.b16 %v509
    %v1920 = vunpack.c.h.b16 %v509
    %v1921 = vunpack.c.l.b16 %v510
    %v1922 = vunpack.c.h.b16 %v510
    %v1923 = vunpack.c.l.b16 %v511
    %v1924 = vunpack.c.h.b16 %v511
    %v1925 = vunpack.c.l.b16 %v512
    %v1926 = vunpack.c.h.b16 %v512
    %v1927 = vunpack.c.l.b16 %v513
    %v1928 = vunpack.c.h.b16 %v513
    %v1929 = vunpack.c.l.b16 %v514
    %v1930 = vunpack.c.h.b16 %v514
    %v1931 = vunpack.c.l.b16 %v515
    %v1932 = vunpack.c.h.b16 %v515
    %v1933 = vunpack.c.l.b16 %v516
    %v1934 = vunpack.c.h.b16 %v516
    %v1935 = vunpack.c.l.b16 %v517
    %v1936 = vunpack.c.h.b16 %v517
    %v1937 = vunpack.c.l.b16 %v518
    %v1938 = vunpack.c.h.b16 %v518
    %v1939 = vunpack.c.l.b16 %v519
    %v1940 = vunpack.c.h.b16 %v519
    %v1941 = vunpack.c.l.b16 %v520
    %v1942 = vunpack.c.h.b16 %v520
    %v1943 = vunpack.c.l.b16 %v521
    %v1944 = vunpack.c.h.b16 %v521
    %v1945 = vunpack.c.l.b16 %v522
    %v1946 = vunpack.c.h.b16 %v522
    %v1947 = vunpack.c.l.b16 %v523
    %v1948 = vunpack.c.h.b16 %v523
    %v1949 = vunpack.c.l.b16 %v524
    %v1950 = vunpack.c.h.b16 %v524
    %v1951 = vunpack.c.l.b16 %v525
    %v1952 = vunpack.c.h.b16 %v525
    %v1953 = vunpack.c.l.b16 %v526
    %v1954 = vunpack.c.h.b16 %v526
    %v1955 = vunpack.c.l.b16 %v527
    %v1956 = vunpack.c.h.b16 %v527
    %v1957 = vunpack.c.l.b16 %v528
    %v1958 = vunpack.c.h.b16 %v528
    %v1959 = vunpack.c.l.b16 %v529
    %v1960 = vunpack.c.h.b16 %v529
    %v1961 = vunpack.c.l.b16 %v530
    %v1962 = vunpack.c.h.b16 %v530
    %v1963 = vunpack.c.l.b16 %v531
    %v1964 = vunpack.c.h.b16 %v531
    %v1965 = vunpack.c.l.b16 %v532
    %v1966 = vunpack.c.h.b16 %v532
    %v1967 = vunpack.c.l.b16 %v533
    %v1968 = vunpack.c.h.b16 %v533
    %v1969 = vunpack.c.l.b16 %v534
    %v1970 = vunpack.c.h.b16 %v534
    %v1971 = vunpack.c.l.b16 %v535
    %v1972 = vunpack.c.h.b16 %v535
    %v1973 = vunpack.c.l.b16 %v536
    %v1974 = vunpack.c.h.b16 %v536
    %v1975 = vunpack.c.l.b16 %v537
    %v1976 = vunpack.c.h.b16 %v537
    %v1977 = vunpack.c.l.b16 %v538
    %v1978 = vunpack.c.h.b16 %v538
    %v1979 = vunpack.c.l.b16 %v539
    %v1980 = vunpack.c.h.b16 %v539
    %v1981 = vunpack.c.l.b16 %v540
    %v1982 = vunpack.c.h.b16 %v540
    %v1983 = vunpack.c.l.b16 %v541
    %v1984 = vunpack.c.h.b16 %v541
    %v1985 = vunpack.c.l.b16 %v542
    %v1986 = vunpack.c.h.b16 %v542
    %v1987 = vunpack.c.l.b16 %v543
    %v1988 = vunpack.c.h.b16 %v543
    %v1989 = vunpack.c.l.b16 %v544
    %v1990 = vunpack.c.h.b16 %v544
    %v1991 = vunpack.c.l.b16 %v545
    %v1992 = vunpack.c.h.b16 %v545
    %v1993 = vunpack.c.l.b16 %v546
    %v1994 = vunpack.c.h.b16 %v546
    %v1995 = vunpack.c.l.b16 %v547
    %v1996 = vunpack.c.h.b16 %v547
    %v1997 = vunpack.c.l.b16 %v548
    %v1998 = vunpack.c.h.b16 %v548
    %v1999 = vunpack.c.l.b16 %v549
    %v2000 = vunpack.c.h.b16 %v549
    %v2001 = vunpack.c.l.b16 %v550
    %v2002 = vunpack.c.h.b16 %v550
    %v2003 = vunpack.c.l.b16 %v551
    %v2004 = vunpack.c.h.b16 %v551
    %v2005 = vunpack.c.l.b16 %v552
    %v2006 = vunpack.c.h.b16 %v552
    %v2007 = vunpack.c.l.b16 %v553
    %v2008 = vunpack.c.h.b16 %v553
    %v2009 = vunpack.c.l.b16 %v554
    %v2010 = vunpack.c.h.b16 %v554
    %v2011 = vunpack.c.l.b16 %v555
    %v2012 = vunpack.c.h.b16 %v555
    %v2013 = vunpack.c.l.b16 %v556
    %v2014 = vunpack.c.h.b16 %v556
    %v2015 = vunpack.c.l.b16 %v557
    %v2016 = vunpack.c.h.b16 %v557
    %v2017 = vunpack.c.l.b16 %v558
    %v2018 = vunpack.c.h.b16 %v558
    %v2019 = vunpack.c.l.b16 %v559
    %v2020 = vunpack.c.h.b16 %v559
    %v2021 = vunpack.c.l.b16 %v560
    %v2022 = vunpack.c.h.b16 %v560
    %v2023 = vunpack.c.l.b16 %v561
    %v2024 = vunpack.c.h.b16 %v561
    %v2025 = vunpack.c.l.b16 %v562
    %v2026 = vunpack.c.h.b16 %v562
    %v2027 = vunpack.c.l.b16 %v563
    %v2028 = vunpack.c.h.b16 %v563
    %v2029 = vunpack.c.l.b16 %v564
    %v2030 = vunpack.c.h.b16 %v564
    %v2031 = vunpack.c.l.b16 %v565
    %v2032 = vunpack.c.h.b16 %v565
    %v2033 = vunpack.c.l.b16 %v566
    %v2034 = vunpack.c.h.b16 %v566
    %v2035 = vunpack.c.l.b16 %v567
    %v2036 = vunpack.c.h.b16 %v567
    %v2037 = vunpack.c.l.b16 %v568
    %v2038 = vunpack.c.h.b16 %v568
    %v2039 = vunpack.c.l.b16 %v569
    %v2040 = vunpack.c.h.b16 %v569
    %v2041 = vunpack.c.l.b16 %v570
    %v2042 = vunpack.c.h.b16 %v570
    %v2043 = vunpack.c.l.b16 %v571
    %v2044 = vunpack.c.h.b16 %v571
    %v2045 = vunpack.c.l.b16 %v572
    %v2046 = vunpack.c.h.b16 %v572
    %v2047 = vunpack.c.l.b16 %v573
    %v2048 = vunpack.c.h.b16 %v573
    %v2049 = vunpack.c.l.b16 %v574
    %v2050 = vunpack.c.h.b16 %v574
    %v2051 = vunpack.c.l.b16 %v575
    %v2052 = vunpack.c.h.b16 %v575
    %v2053 = vunpack.c.l.b16 %v576
    %v2054 = vunpack.c.h.b16 %v576
    %v2055 = vunpack.c.l.b16 %v577
    %v2056 = vunpack.c.h.b16 %v577
    %v2057 = vunpack.c.l.b16 %v578
    %v2058 = vunpack.c.h.b16 %v578
    %v2059 = vunpack.c.l.b16 %v579
    %v2060 = vunpack.c.h.b16 %v579
    %v2061 = vunpack.c.l.b16 %v580
    %v2062 = vunpack.c.h.b16 %v580
    %v2063 = vunpack.c.l.b16 %v581
    %v2064 = vunpack.c.h.b16 %v581
    %v2065 = vunpack.c.l.b16 %v582
    %v2066 = vunpack.c.h.b16 %v582
    %v2067 = vunpack.c.l.b16 %v583
    %v2068 = vunpack.c.h.b16 %v583
    %v2069 = vunpack.c.l.b16 %v584
    %v2070 = vunpack.c.h.b16 %v584
    %v2071 = vunpack.c.l.b16 %v585
    %v2072 = vunpack.c.h.b16 %v585
    %v2073 = vunpack.c.l.b16 %v586
    %v2074 = vunpack.c.h.b16 %v586
    %v2075 = vunpack.c.l.b16 %v587
    %v2076 = vunpack.c.h.b16 %v587
    %v2077 = vunpack.c.l.b16 %v588
    %v2078 = vunpack.c.h.b16 %v588
    %v2079 = vunpack.c.l.b16 %v589
    %v2080 = vunpack.c.h.b16 %v589
    %v2081 = vunpack.c.l.b16 %v590
    %v2082 = vunpack.c.h.b16 %v590
    %v2083 = vunpack.c.l.b16 %v591
    %v2084 = vunpack.c.h.b16 %v591
    %v2085 = vunpack.c.l.b16 %v592
    %v2086 = vunpack.c.h.b16 %v592
    %v2087 = vunpack.c.l.b16 %v593
    %v2088 = vunpack.c.h.b16 %v593
    %v2089 = vunpack.c.l.b16 %v594
    %v2090 = vunpack.c.h.b16 %v594
    %v2091 = vunpack.c.l.b16 %v595
    %v2092 = vunpack.c.h.b16 %v595
    %v2093 = vunpack.c.l.b16 %v596
    %v2094 = vunpack.c.h.b16 %v596
    %v2095 = vunpack.c.l.b16 %v597
    %v2096 = vunpack.c.h.b16 %v597
    %v2097 = vunpack.c.l.b16 %v598
    %v2098 = vunpack.c.h.b16 %v598
    %v2099 = vunpack.c.l.b16 %v599
    %v2100 = vunpack.c.h.b16 %v599
    %v2101 = vunpack.c.l.b16 %v600
    %v2102 = vunpack.c.h.b16 %v600
    %v2103 = vunpack.c.l.b16 %v601
    %v2104 = vunpack.c.h.b16 %v601
    %v2105 = vunpack.c.l.b16 %v602
    %v2106 = vunpack.c.h.b16 %v602
    %v2107 = vunpack.c.l.b16 %v603
    %v2108 = vunpack.c.h.b16 %v603
    %v2109 = vunpack.c.l.b16 %v604
    %v2110 = vunpack.c.h.b16 %v604
    %v2111 = vunpack.c.l.b16 %v605
    %v2112 = vunpack.c.h.b16 %v605
    %v2113 = vunpack.c.l.b16 %v606
    %v2114 = vunpack.c.h.b16 %v606
    %v2115 = vunpack.c.l.b16 %v607
    %v2116 = vunpack.c.h.b16 %v607
    %v2117 = vunpack.c.l.b16 %v608
    %v2118 = vunpack.c.h.b16 %v608
    %v2119 = vunpack.c.l.b16 %v609
    %v2120 = vunpack.c.h.b16 %v609
    %v2121 = vunpack.c.l.b16 %v610
    %v2122 = vunpack.c.h.b16 %v610
    %v2123 = vunpack.c.l.b16 %v611
    %v2124 = vunpack.c.h.b16 %v611
    %v2125 = vunpack.c.l.b16 %v612
    %v2126 = vunpack.c.h.b16 %v612
    %v2127 = vunpack.c.l.b16 %v613
    %v2128 = vunpack.c.h.b16 %v613
    %v2129 = vunpack.c.l.b16 %v614
    %v2130 = vunpack.c.h.b16 %v614
    %v2131 = vunpack.c.l.b16 %v615
    %v2132 = vunpack.c.h.b16 %v615
    %v2133 = vunpack.c.l.b16 %v616
    %v2134 = vunpack.c.h.b16 %v616
    %v2135 = vunpack.c.l.b16 %v617
    %v2136 = vunpack.c.h.b16 %v617
    %v2137 = vunpack.c.l.b16 %v618
    %v2138 = vunpack.c.h.b16 %v618
    %v2139 = vunpack.c.l.b16 %v619
    %v2140 = vunpack.c.h.b16 %v619
    %v2141 = vunpack.c.l.b16 %v620
    %v2142 = vunpack.c.h.b16 %v620
    %v2143 = vunpack.c.l.b16 %v621
    %v2144 = vunpack.c.h.b16 %v621
    %v2145 = vunpack.c.l.b16 %v622
    %v2146 = vunpack.c.h.b16 %v622
    %v2147 = vunpack.c.l.b16 %v623
    %v2148 = vunpack.c.h.b16 %v623
    %v2149 = vunpack.c.l.b16 %v624
    %v2150 = vunpack.c.h.b16 %v624
    %v2151 = vunpack.c.l.b16 %v625
    %v2152 = vunpack.c.h.b16 %v625
    %v2153 = vunpack.c.l.b16 %v626
    %v2154 = vunpack.c.h.b16 %v626
    %v2155 = vunpack.c.l.b16 %v627
    %v2156 = vunpack.c.h.b16 %v627
    %v2157 = vunpack.c.l.b16 %v628
    %v2158 = vunpack.c.h.b16 %v628
    %v2159 = vunpack.c.l.b16 %v629
    %v2160 = vunpack.c.h.b16 %v629
    %v2161 = vunpack.c.l.b16 %v630
    %v2162 = vunpack.c.h.b16 %v630
    %v2163 = vunpack.c.l.b16 %v631
    %v2164 = vunpack.c.h.b16 %v631
    %v2165 = vunpack.c.l.b16 %v632
    %v2166 = vunpack.c.h.b16 %v632
    %v2167 = vunpack.c.l.b16 %v633
    %v2168 = vunpack.c.h.b16 %v633
    %v2169 = vunpack.c.l.b16 %v634
    %v2170 = vunpack.c.h.b16 %v634
    %v2171 = vunpack.c.l.b16 %v635
    %v2172 = vunpack.c.h.b16 %v635
    %v2173 = vunpack.c.l.b16 %v636
    %v2174 = vunpack.c.h.b16 %v636
    %v2175 = vunpack.c.l.b16 %v637
    %v2176 = vunpack.c.h.b16 %v637
    %v2177 = vunpack.c.l.b16 %v638
    %v2178 = vunpack.c.h.b16 %v638
    %v2179 = vunpack.c.l.b16 %v639
    %v2180 = vunpack.c.h.b16 %v639
    %v2181 = vunpack.c.l.b16 %v640
    %v2182 = vunpack.c.h.b16 %v640
    %v2183 = vunpack.c.l.b16 %v641
    %v2184 = vunpack.c.h.b16 %v641
    %v2185 = vunpack.c.l.b16 %v642
    %v2186 = vunpack.c.h.b16 %v642
    %v2187 = vunpack.c.l.b16 %v643
    %v2188 = vunpack.c.h.b16 %v643
    %v2189 = vunpack.c.l.b16 %v644
    %v2190 = vunpack.c.h.b16 %v644
    %v2191 = vunpack.c.l.b16 %v645
    %v2192 = vunpack.c.h.b16 %v645
    %v2193 = vunpack.c.l.b16 %v646
    %v2194 = vunpack.c.h.b16 %v646
    %v2195 = vunpack.c.l.b16 %v647
    %v2196 = vunpack.c.h.b16 %v647
    %v2197 = vunpack.c.l.b16 %v648
    %v2198 = vunpack.c.h.b16 %v648
    %v2199 = vunpack.c.l.b16 %v649
    %v2200 = vunpack.c.h.b16 %v649
    %v2201 = vunpack.c.l.b16 %v650
    %v2202 = vunpack.c.h.b16 %v650
    %v2203 = vunpack.c.l.b16 %v651
    %v2204 = vunpack.c.h.b16 %v651
    %v2205 = vunpack.c.l.b16 %v652
    %v2206 = vunpack.c.h.b16 %v652
    %v2207 = vpack.c.b16 %v1191, %v1183
    %v2208 = vpack.c.b16 %v1192, %v1184
    %v2209 = vpack.c.b16 %v1193, %v1185
    %v2210 = vpack.c.b16 %v1194, %v1186
    %v2211 = vpack.c.b16 %v1195, %v1187
    %v2212 = vpack.c.b16 %v1196, %v1188
    %v2213 = vpack.c.b16 %v1197, %v1189
    %v2214 = vpack.c.b16 %v1198, %v1190
    %v2215 = vpack.c.b16 %v1207, %v1199
    %v2216 = vpack.c.b16 %v1208, %v1200
    %v2217 = vpack.c.b16 %v1209, %v1201
    %v2218 = vpack.c.b16 %v1210, %v1202
    %v2219 = vpack.c.b16 %v1211, %v1203
    %v2220 = vpack.c.b16 %v1212, %v1204
    %v2221 = vpack.c.b16 %v1213, %v1205
    %v2222 = vpack.c.b16 %v1214, %v1206
    %v2223 = vpack.c.b16 %v1223, %v1215
    %v2224 = vpack.c.b16 %v1224, %v1216
    %v2225 = vpack.c.b16 %v1225, %v1217
    %v2226 = vpack.c.b16 %v1226, %v1218
    %v2227 = vpack.c.b16 %v1227, %v1219
    %v2228 = vpack.c.b16 %v1228, %v1220
    %v2229 = vpack.c.b16 %v1229, %v1221
    %v2230 = vpack.c.b16 %v1230, %v1222
    %v2231 = vpack.c.b16 %v1239, %v1231
    %v2232 = vpack.c.b16 %v1240, %v1232
    %v2233 = vpack.c.b16 %v1241, %v1233
    %v2234 = vpack.c.b16 %v1242, %v1234
    %v2235 = vpack.c.b16 %v1243, %v1235
    %v2236 = vpack.c.b16 %v1244, %v1236
    %v2237 = vpack.c.b16 %v1245, %v1237
    %v2238 = vpack.c.b16 %v1246, %v1238
    %v2239 = vpack.c.b16 %v1255, %v1247
    %v2240 = vpack.c.b16 %v1256, %v1248
    %v2241 = vpack.c.b16 %v1257, %v1249
    %v2242 = vpack.c.b16 %v1258, %v1250
    %v2243 = vpack.c.b16 %v1259, %v1251
    %v2244 = vpack.c.b16 %v1260, %v1252
    %v2245 = vpack.c.b16 %v1261, %v1253
    %v2246 = vpack.c.b16 %v1262, %v1254
    %v2247 = vpack.c.b16 %v1271, %v1263
    %v2248 = vpack.c.b16 %v1272, %v1264
    %v2249 = vpack.c.b16 %v1273, %v1265
    %v2250 = vpack.c.b16 %v1274, %v1266
    %v2251 = vpack.c.b16 %v1275, %v1267
    %v2252 = vpack.c.b16 %v1276, %v1268
    %v2253 = vpack.c.b16 %v1277, %v1269
    %v2254 = vpack.c.b16 %v1278, %v1270
    %v2255 = vpack.c.b16 %v1287, %v1279
    %v2256 = vpack.c.b16 %v1288, %v1280
    %v2257 = vpack.c.b16 %v1289, %v1281
    %v2258 = vpack.c.b16 %v1290, %v1282
    %v2259 = vpack.c.b16 %v1291, %v1283
    %v2260 = vpack.c.b16 %v1292, %v1284
    %v2261 = vpack.c.b16 %v1293, %v1285
    %v2262 = vpack.c.b16 %v1294, %v1286
    %v2263 = vpack.c.b16 %v1303, %v1295
    %v2264 = vpack.c.b16 %v1304, %v1296
    %v2265 = vpack.c.b16 %v1305, %v1297
    %v2266 = vpack.c.b16 %v1306, %v1298
    %v2267 = vpack.c.b16 %v1307, %v1299
    %v2268 = vpack.c.b16 %v1308, %v1300
    %v2269 = vpack.c.b16 %v1309, %v1301
    %v2270 = vpack.c.b16 %v1310, %v1302
    %v2271 = vpack.c.b16 %v1319, %v1311
    %v2272 = vpack.c.b16 %v1320, %v1312
    %v2273 = vpack.c.b16 %v1321, %v1313
    %v2274 = vpack.c.b16 %v1322, %v1314
    %v2275 = vpack.c.b16 %v1323, %v1315
    %v2276 = vpack.c.b16 %v1324, %v1316
    %v2277 = vpack.c.b16 %v1325, %v1317
    %v2278 = vpack.c.b16 %v1326, %v1318
    %v2279 = vpack.c.b16 %v1335, %v1327
    %v2280 = vpack.c.b16 %v1336, %v1328
    %v2281 = vpack.c.b16 %v1337, %v1329
    %v2282 = vpack.c.b16 %v1338, %v1330
    %v2283 = vpack.c.b16 %v1339, %v1331
    %v2284 = vpack.c.b16 %v1340, %v1332
    %v2285 = vpack.c.b16 %v1341, %v1333
    %v2286 = vpack.c.b16 %v1342, %v1334
    %v2287 = vpack.c.b16 %v1351, %v1343
    %v2288 = vpack.c.b16 %v1352, %v1344
    %v2289 = vpack.c.b16 %v1353, %v1345
    %v2290 = vpack.c.b16 %v1354, %v1346
    %v2291 = vpack.c.b16 %v1355, %v1347
    %v2292 = vpack.c.b16 %v1356, %v1348
    %v2293 = vpack.c.b16 %v1357, %v1349
    %v2294 = vpack.c.b16 %v1358, %v1350
    %v2295 = vpack.c.b16 %v1367, %v1359
    %v2296 = vpack.c.b16 %v1368, %v1360
    %v2297 = vpack.c.b16 %v1369, %v1361
    %v2298 = vpack.c.b16 %v1370, %v1362
    %v2299 = vpack.c.b16 %v1371, %v1363
    %v2300 = vpack.c.b16 %v1372, %v1364
    %v2301 = vpack.c.b16 %v1373, %v1365
    %v2302 = vpack.c.b16 %v1374, %v1366
    %v2303 = vpack.c.b16 %v1383, %v1375
    %v2304 = vpack.c.b16 %v1384, %v1376
    %v2305 = vpack.c.b16 %v1385, %v1377
    %v2306 = vpack.c.b16 %v1386, %v1378
    %v2307 = vpack.c.b16 %v1387, %v1379
    %v2308 = vpack.c.b16 %v1388, %v1380
    %v2309 = vpack.c.b16 %v1389, %v1381
    %v2310 = vpack.c.b16 %v1390, %v1382
    %v2311 = vpack.c.b16 %v1399, %v1391
    %v2312 = vpack.c.b16 %v1400, %v1392
    %v2313 = vpack.c.b16 %v1401, %v1393
    %v2314 = vpack.c.b16 %v1402, %v1394
    %v2315 = vpack.c.b16 %v1403, %v1395
    %v2316 = vpack.c.b16 %v1404, %v1396
    %v2317 = vpack.c.b16 %v1405, %v1397
    %v2318 = vpack.c.b16 %v1406, %v1398
    %v2319 = vpack.c.b16 %v1415, %v1407
    %v2320 = vpack.c.b16 %v1416, %v1408
    %v2321 = vpack.c.b16 %v1417, %v1409
    %v2322 = vpack.c.b16 %v1418, %v1410
    %v2323 = vpack.c.b16 %v1419, %v1411
    %v2324 = vpack.c.b16 %v1420, %v1412
    %v2325 = vpack.c.b16 %v1421, %v1413
    %v2326 = vpack.c.b16 %v1422, %v1414
    %v2327 = vpack.c.b16 %v1431, %v1423
    %v2328 = vpack.c.b16 %v1432, %v1424
    %v2329 = vpack.c.b16 %v1433, %v1425
    %v2330 = vpack.c.b16 %v1434, %v1426
    %v2331 = vpack.c.b16 %v1435, %v1427
    %v2332 = vpack.c.b16 %v1436, %v1428
    %v2333 = vpack.c.b16 %v1437, %v1429
    %v2334 = vpack.c.b16 %v1438, %v1430
    %v2335 = vpack.c.b16 %v1447, %v1439
    %v2336 = vpack.c.b16 %v1448, %v1440
    %v2337 = vpack.c.b16 %v1449, %v1441
    %v2338 = vpack.c.b16 %v1450, %v1442
    %v2339 = vpack.c.b16 %v1451, %v1443
    %v2340 = vpack.c.b16 %v1452, %v1444
    %v2341 = vpack.c.b16 %v1453, %v1445
    %v2342 = vpack.c.b16 %v1454, %v1446
    %v2343 = vpack.c.b16 %v1463, %v1455
    %v2344 = vpack.c.b16 %v1464, %v1456
    %v2345 = vpack.c.b16 %v1465, %v1457
    %v2346 = vpack.c.b16 %v1466, %v1458
    %v2347 = vpack.c.b16 %v1467, %v1459
    %v2348 = vpack.c.b16 %v1468, %v1460
    %v2349 = vpack.c.b16 %v1469, %v1461
    %v2350 = vpack.c.b16 %v1470, %v1462
    %v2351 = vpack.c.b16 %v1479, %v1471
    %v2352 = vpack.c.b16 %v1480, %v1472
    %v2353 = vpack.c.b16 %v1481, %v1473
    %v2354 = vpack.c.b16 %v1482, %v1474
    %v2355 = vpack.c.b16 %v1483, %v1475
    %v2356 = vpack.c.b16 %v1484, %v1476
    %v2357 = vpack.c.b16 %v1485, %v1477
    %v2358 = vpack.c.b16 %v1486, %v1478
    %v2359 = vpack.c.b16 %v1495, %v1487
    %v2360 = vpack.c.b16 %v1496, %v1488
    %v2361 = vpack.c.b16 %v1497, %v1489
    %v2362 = vpack.c.b16 %v1498, %v1490
    %v2363 = vpack.c.b16 %v1499, %v1491
    %v2364 = vpack.c.b16 %v1500, %v1492
    %v2365 = vpack.c.b16 %v1501, %v1493
    %v2366 = vpack.c.b16 %v1502, %v1494
    %v2367 = vpack.c.b16 %v1511, %v1503
    %v2368 = vpack.c.b16 %v1512, %v1504
    %v2369 = vpack.c.b16 %v1513, %v1505
    %v2370 = vpack.c.b16 %v1514, %v1506
    %v2371 = vpack.c.b16 %v1515, %v1507
    %v2372 = vpack.c.b16 %v1516, %v1508
    %v2373 = vpack.c.b16 %v1517, %v1509
    %v2374 = vpack.c.b16 %v1518, %v1510
    %v2375 = vpack.c.b16 %v1527, %v1519
    %v2376 = vpack.c.b16 %v1528, %v1520
    %v2377 = vpack.c.b16 %v1529, %v1521
    %v2378 = vpack.c.b16 %v1530, %v1522
    %v2379 = vpack.c.b16 %v1531, %v1523
    %v2380 = vpack.c.b16 %v1532, %v1524
    %v2381 = vpack.c.b16 %v1533, %v1525
    %v2382 = vpack.c.b16 %v1534, %v1526
    %v2383 = vpack.c.b16 %v1543, %v1535
    %v2384 = vpack.c.b16 %v1544, %v1536
    %v2385 = vpack.c.b16 %v1545, %v1537
    %v2386 = vpack.c.b16 %v1546, %v1538
    %v2387 = vpack.c.b16 %v1547, %v1539
    %v2388 = vpack.c.b16 %v1548, %v1540
    %v2389 = vpack.c.b16 %v1549, %v1541
    %v2390 = vpack.c.b16 %v1550, %v1542
    %v2391 = vpack.c.b16 %v1559, %v1551
    %v2392 = vpack.c.b16 %v1560, %v1552
    %v2393 = vpack.c.b16 %v1561, %v1553
    %v2394 = vpack.c.b16 %v1562, %v1554
    %v2395 = vpack.c.b16 %v1563, %v1555
    %v2396 = vpack.c.b16 %v1564, %v1556
    %v2397 = vpack.c.b16 %v1565, %v1557
    %v2398 = vpack.c.b16 %v1566, %v1558
    %v2399 = vpack.c.b16 %v1575, %v1567
    %v2400 = vpack.c.b16 %v1576, %v1568
    %v2401 = vpack.c.b16 %v1577, %v1569
    %v2402 = vpack.c.b16 %v1578, %v1570
    %v2403 = vpack.c.b16 %v1579, %v1571
    %v2404 = vpack.c.b16 %v1580, %v1572
    %v2405 = vpack.c.b16 %v1581, %v1573
    %v2406 = vpack.c.b16 %v1582, %v1574
    %v2407 = vpack.c.b16 %v1591, %v1583
    %v2408 = vpack.c.b16 %v1592, %v1584
    %v2409 = vpack.c.b16 %v1593, %v1585
    %v2410 = vpack.c.b16 %v1594, %v1586
    %v2411 = vpack.c.b16 %v1595, %v1587
    %v2412 = vpack.c.b16 %v1596, %v1588
    %v2413 = vpack.c.b16 %v1597, %v1589
    %v2414 = vpack.c.b16 %v1598, %v1590
    %v2415 = vpack.c.b16 %v1607, %v1599
    %v2416 = vpack.c.b16 %v1608, %v1600
    %v2417 = vpack.c.b16 %v1609, %v1601
    %v2418 = vpack.c.b16 %v1610, %v1602
    %v2419 = vpack.c.b16 %v1611, %v1603
    %v2420 = vpack.c.b16 %v1612, %v1604
    %v2421 = vpack.c.b16 %v1613, %v1605
    %v2422 = vpack.c.b16 %v1614, %v1606
    %v2423 = vpack.c.b16 %v1623, %v1615
    %v2424 = vpack.c.b16 %v1624, %v1616
    %v2425 = vpack.c.b16 %v1625, %v1617
    %v2426 = vpack.c.b16 %v1626, %v1618
    %v2427 = vpack.c.b16 %v1627, %v1619
    %v2428 = vpack.c.b16 %v1628, %v1620
    %v2429 = vpack.c.b16 %v1629, %v1621
    %v2430 = vpack.c.b16 %v1630, %v1622
    %v2431 = vpack.c.b16 %v1639, %v1631
    %v2432 = vpack.c.b16 %v1640, %v1632
    %v2433 = vpack.c.b16 %v1641, %v1633
    %v2434 = vpack.c.b16 %v1642, %v1634
    %v2435 = vpack.c.b16 %v1643, %v1635
    %v2436 = vpack.c.b16 %v1644, %v1636
    %v2437 = vpack.c.b16 %v1645, %v1637
    %v2438 = vpack.c.b16 %v1646, %v1638
    %v2439 = vpack.c.b16 %v1655, %v1647
    %v2440 = vpack.c.b16 %v1656, %v1648
    %v2441 = vpack.c.b16 %v1657, %v1649
    %v2442 = vpack.c.b16 %v1658, %v1650
    %v2443 = vpack.c.b16 %v1659, %v1651
    %v2444 = vpack.c.b16 %v1660, %v1652
    %v2445 = vpack.c.b16 %v1661, %v1653
    %v2446 = vpack.c.b16 %v1662, %v1654
    %v2447 = vpack.c.b16 %v1671, %v1663
    %v2448 = vpack.c.b16 %v1672, %v1664
    %v2449 = vpack.c.b16 %v1673, %v1665
    %v2450 = vpack.c.b16 %v1674, %v1666
    %v2451 = vpack.c.b16 %v1675, %v1667
    %v2452 = vpack.c.b16 %v1676, %v1668
    %v2453 = vpack.c.b16 %v1677, %v1669
    %v2454 = vpack.c.b16 %v1678, %v1670
    %v2455 = vpack.c.b16 %v1687, %v1679
    %v2456 = vpack.c.b16 %v1688, %v1680
    %v2457 = vpack.c.b16 %v1689, %v1681
    %v2458 = vpack.c.b16 %v1690, %v1682
    %v2459 = vpack.c.b16 %v1691, %v1683
    %v2460 = vpack.c.b16 %v1692, %v1684
    %v2461 = vpack.c.b16 %v1693, %v1685
    %v2462 = vpack.c.b16 %v1694, %v1686
    %v2463 = vpack.c.b16 %v1703, %v1695
    %v2464 = vpack.c.b16 %v1704, %v1696
    %v2465 = vpack.c.b16 %v1705, %v1697
    %v2466 = vpack.c.b16 %v1706, %v1698
    %v2467 = vpack.c.b16 %v1707, %v1699
    %v2468 = vpack.c.b16 %v1708, %v1700
    %v2469 = vpack.c.b16 %v1709, %v1701
    %v2470 = vpack.c.b16 %v1710, %v1702
    %v2471 = vpack.c.b16 %v1719, %v1711
    %v2472 = vpack.c.b16 %v1720, %v1712
    %v2473 = vpack.c.b16 %v1721, %v1713
    %v2474 = vpack.c.b16 %v1722, %v1714
    %v2475 = vpack.c.b16 %v1723, %v1715
    %v2476 = vpack.c.b16 %v1724, %v1716
    %v2477 = vpack.c.b16 %v1725, %v1717
    %v2478 = vpack.c.b16 %v1726, %v1718
    %v2479 = vpack.c.b16 %v1735, %v1727
    %v2480 = vpack.c.b16 %v1736, %v1728
    %v2481 = vpack.c.b16 %v1737, %v1729
    %v2482 = vpack.c.b16 %v1738, %v1730
    %v2483 = vpack.c.b16 %v1739, %v1731
    %v2484 = vpack.c.b16 %v1740, %v1732
    %v2485 = vpack.c.b16 %v1741, %v1733
    %v2486 = vpack.c.b16 %v1742, %v1734
    %v2487 = vpack.c.b16 %v1751, %v1743
    %v2488 = vpack.c.b16 %v1752, %v1744
    %v2489 = vpack.c.b16 %v1753, %v1745
    %v2490 = vpack.c.b16 %v1754, %v1746
    %v2491 = vpack.c.b16 %v1755, %v1747
    %v2492 = vpack.c.b16 %v1756, %v1748
    %v2493 = vpack.c.b16 %v1757, %v1749
    %v2494 = vpack.c.b16 %v1758, %v1750
    %v2495 = vpack.c.b16 %v1767, %v1759
    %v2496 = vpack.c.b16 %v1768, %v1760
    %v2497 = vpack.c.b16 %v1769, %v1761
    %v2498 = vpack.c.b16 %v1770, %v1762
    %v2499 = vpack.c.b16 %v1771, %v1763
    %v2500 = vpack.c.b16 %v1772, %v1764
    %v2501 = vpack.c.b16 %v1773, %v1765
    %v2502 = vpack.c.b16 %v1774, %v1766
    %v2503 = vpack.c.b16 %v1783, %v1775
    %v2504 = vpack.c.b16 %v1784, %v1776
    %v2505 = vpack.c.b16 %v1785, %v1777
    %v2506 = vpack.c.b16 %v1786, %v1778
    %v2507 = vpack.c.b16 %v1787, %v1779
    %v2508 = vpack.c.b16 %v1788, %v1780
    %v2509 = vpack.c.b16 %v1789, %v1781
    %v2510 = vpack.c.b16 %v1790, %v1782
    %v2511 = vpack.c.b16 %v1799, %v1791
    %v2512 = vpack.c.b16 %v1800, %v1792
    %v2513 = vpack.c.b16 %v1801, %v1793
    %v2514 = vpack.c.b16 %v1802, %v1794
    %v2515 = vpack.c.b16 %v1803, %v1795
    %v2516 = vpack.c.b16 %v1804, %v1796
    %v2517 = vpack.c.b16 %v1805, %v1797
    %v2518 = vpack.c.b16 %v1806, %v1798
    %v2519 = vpack.c.b16 %v1815, %v1807
    %v2520 = vpack.c.b16 %v1816, %v1808
    %v2521 = vpack.c.b16 %v1817, %v1809
    %v2522 = vpack.c.b16 %v1818, %v1810
    %v2523 = vpack.c.b16 %v1819, %v1811
    %v2524 = vpack.c.b16 %v1820, %v1812
    %v2525 = vpack.c.b16 %v1821, %v1813
    %v2526 = vpack.c.b16 %v1822, %v1814
    %v2527 = vpack.c.b16 %v1831, %v1823
    %v2528 = vpack.c.b16 %v1832, %v1824
    %v2529 = vpack.c.b16 %v1833, %v1825
    %v2530 = vpack.c.b16 %v1834, %v1826
    %v2531 = vpack.c.b16 %v1835, %v1827
    %v2532 = vpack.c.b16 %v1836, %v1828
    %v2533 = vpack.c.b16 %v1837, %v1829
    %v2534 = vpack.c.b16 %v1838, %v1830
    %v2535 = vpack.c.b16 %v1847, %v1839
    %v2536 = vpack.c.b16 %v1848, %v1840
    %v2537 = vpack.c.b16 %v1849, %v1841
    %v2538 = vpack.c.b16 %v1850, %v1842
    %v2539 = vpack.c.b16 %v1851, %v1843
    %v2540 = vpack.c.b16 %v1852, %v1844
    %v2541 = vpack.c.b16 %v1853, %v1845
    %v2542 = vpack.c.b16 %v1854, %v1846
    %v2543 = vpack.c.b16 %v1863, %v1855
    %v2544 = vpack.c.b16 %v1864, %v1856
    %v2545 = vpack.c.b16 %v1865, %v1857
    %v2546 = vpack.c.b16 %v1866, %v1858
    %v2547 = vpack.c.b16 %v1867, %v1859
    %v2548 = vpack.c.b16 %v1868, %v1860
    %v2549 = vpack.c.b16 %v1869, %v1861
    %v2550 = vpack.c.b16 %v1870, %v1862
    %v2551 = vpack.c.b16 %v1879, %v1871
    %v2552 = vpack.c.b16 %v1880, %v1872
    %v2553 = vpack.c.b16 %v1881, %v1873
    %v2554 = vpack.c.b16 %v1882, %v1874
    %v2555 = vpack.c.b16 %v1883, %v1875
    %v2556 = vpack.c.b16 %v1884, %v1876
    %v2557 = vpack.c.b16 %v1885, %v1877
    %v2558 = vpack.c.b16 %v1886, %v1878
    %v2559 = vpack.c.b16 %v1895, %v1887
    %v2560 = vpack.c.b16 %v1896, %v1888
    %v2561 = vpack.c.b16 %v1897, %v1889
    %v2562 = vpack.c.b16 %v1898, %v1890
    %v2563 = vpack.c.b16 %v1899, %v1891
    %v2564 = vpack.c.b16 %v1900, %v1892
    %v2565 = vpack.c.b16 %v1901, %v1893
    %v2566 = vpack.c.b16 %v1902, %v1894
    %v2567 = vpack.c.b16 %v1911, %v1903
    %v2568 = vpack.c.b16 %v1912, %v1904
    %v2569 = vpack.c.b16 %v1913, %v1905
    %v2570 = vpack.c.b16 %v1914, %v1906
    %v2571 = vpack.c.b16 %v1915, %v1907
    %v2572 = vpack.c.b16 %v1916, %v1908
    %v2573 = vpack.c.b16 %v1917, %v1909
    %v2574 = vpack.c.b16 %v1918, %v1910
    %v2575 = vpack.c.b16 %v1927, %v1919
    %v2576 = vpack.c.b16 %v1928, %v1920
    %v2577 = vpack.c.b16 %v1929, %v1921
    %v2578 = vpack.c.b16 %v1930, %v1922
    %v2579 = vpack.c.b16 %v1931, %v1923
    %v2580 = vpack.c.b16 %v1932, %v1924
    %v2581 = vpack.c.b16 %v1933, %v1925
    %v2582 = vpack.c.b16 %v1934, %v1926
    %v2583 = vpack.c.b16 %v1943, %v1935
    %v2584 = vpack.c.b16 %v1944, %v1936
    %v2585 = vpack.c.b16 %v1945, %v1937
    %v2586 = vpack.c.b16 %v1946, %v1938
    %v2587 = vpack.c.b16 %v1947, %v1939
    %v2588 = vpack.c.b16 %v1948, %v1940
    %v2589 = vpack.c.b16 %v1949, %v1941
    %v2590 = vpack.c.b16 %v1950, %v1942
    %v2591 = vpack.c.b16 %v1959, %v1951
    %v2592 = vpack.c.b16 %v1960, %v1952
    %v2593 = vpack.c.b16 %v1961, %v1953
    %v2594 = vpack.c.b16 %v1962, %v1954
    %v2595 = vpack.c.b16 %v1963, %v1955
    %v2596 = vpack.c.b16 %v1964, %v1956
    %v2597 = vpack.c.b16 %v1965, %v1957
    %v2598 = vpack.c.b16 %v1966, %v1958
    %v2599 = vpack.c.b16 %v1975, %v1967
    %v2600 = vpack.c.b16 %v1976, %v1968
    %v2601 = vpack.c.b16 %v1977, %v1969
    %v2602 = vpack.c.b16 %v1978, %v1970
    %v2603 = vpack.c.b16 %v1979, %v1971
    %v2604 = vpack.c.b16 %v1980, %v1972
    %v2605 = vpack.c.b16 %v1981, %v1973
    %v2606 = vpack.c.b16 %v1982, %v1974
    %v2607 = vpack.c.b16 %v1991, %v1983
    %v2608 = vpack.c.b16 %v1992, %v1984
    %v2609 = vpack.c.b16 %v1993, %v1985
    %v2610 = vpack.c.b16 %v1994, %v1986
    %v2611 = vpack.c.b16 %v1995, %v1987
    %v2612 = vpack.c.b16 %v1996, %v1988
    %v2613 = vpack.c.b16 %v1997, %v1989
    %v2614 = vpack.c.b16 %v1998, %v1990
    %v2615 = vpack.c.b16 %v2007, %v1999
    %v2616 = vpack.c.b16 %v2008, %v2000
    %v2617 = vpack.c.b16 %v2009, %v2001
    %v2618 = vpack.c.b16 %v2010, %v2002
    %v2619 = vpack.c.b16 %v2011, %v2003
    %v2620 = vpack.c.b16 %v2012, %v2004
    %v2621 = vpack.c.b16 %v2013, %v2005
    %v2622 = vpack.c.b16 %v2014, %v2006
    %v2623 = vpack.c.b16 %v2023, %v2015
    %v2624 = vpack.c.b16 %v2024, %v2016
    %v2625 = vpack.c.b16 %v2025, %v2017
    %v2626 = vpack.c.b16 %v2026, %v2018
    %v2627 = vpack.c.b16 %v2027, %v2019
    %v2628 = vpack.c.b16 %v2028, %v2020
    %v2629 = vpack.c.b16 %v2029, %v2021
    %v2630 = vpack.c.b16 %v2030, %v2022
    %v2631 = vpack.c.b16 %v2039, %v2031
    %v2632 = vpack.c.b16 %v2040, %v2032
    %v2633 = vpack.c.b16 %v2041, %v2033
    %v2634 = vpack.c.b16 %v2042, %v2034
    %v2635 = vpack.c.b16 %v2043, %v2035
    %v2636 = vpack.c.b16 %v2044, %v2036
    %v2637 = vpack.c.b16 %v2045, %v2037
    %v2638 = vpack.c.b16 %v2046, %v2038
    %v2639 = vpack.c.b16 %v2055, %v2047
    %v2640 = vpack.c.b16 %v2056, %v2048
    %v2641 = vpack.c.b16 %v2057, %v2049
    %v2642 = vpack.c.b16 %v2058, %v2050
    %v2643 = vpack.c.b16 %v2059, %v2051
    %v2644 = vpack.c.b16 %v2060, %v2052
    %v2645 = vpack.c.b16 %v2061, %v2053
    %v2646 = vpack.c.b16 %v2062, %v2054
    %v2647 = vpack.c.b16 %v2071, %v2063
    %v2648 = vpack.c.b16 %v2072, %v2064
    %v2649 = vpack.c.b16 %v2073, %v2065
    %v2650 = vpack.c.b16 %v2074, %v2066
    %v2651 = vpack.c.b16 %v2075, %v2067
    %v2652 = vpack.c.b16 %v2076, %v2068
    %v2653 = vpack.c.b16 %v2077, %v2069
    %v2654 = vpack.c.b16 %v2078, %v2070
    %v2655 = vpack.c.b16 %v2087, %v2079
    %v2656 = vpack.c.b16 %v2088, %v2080
    %v2657 = vpack.c.b16 %v2089, %v2081
    %v2658 = vpack.c.b16 %v2090, %v2082
    %v2659 = vpack.c.b16 %v2091, %v2083
    %v2660 = vpack.c.b16 %v2092, %v2084
    %v2661 = vpack.c.b16 %v2093, %v2085
    %v2662 = vpack.c.b16 %v2094, %v2086
    %v2663 = vpack.c.b16 %v2103, %v2095
    %v2664 = vpack.c.b16 %v2104, %v2096
    %v2665 = vpack.c.b16 %v2105, %v2097
    %v2666 = vpack.c.b16 %v2106, %v2098
    %v2667 = vpack.c.b16 %v2107, %v2099
    %v2668 = vpack.c.b16 %v2108, %v2100
    %v2669 = vpack.c.b16 %v2109, %v2101
    %v2670 = vpack.c.b16 %v2110, %v2102
    %v2671 = vpack.c.b16 %v2119, %v2111
    %v2672 = vpack.c.b16 %v2120, %v2112
    %v2673 = vpack.c.b16 %v2121, %v2113
    %v2674 = vpack.c.b16 %v2122, %v2114
    %v2675 = vpack.c.b16 %v2123, %v2115
    %v2676 = vpack.c.b16 %v2124, %v2116
    %v2677 = vpack.c.b16 %v2125, %v2117
    %v2678 = vpack.c.b16 %v2126, %v2118
    %v2679 = vpack.c.b16 %v2135, %v2127
    %v2680 = vpack.c.b16 %v2136, %v2128
    %v2681 = vpack.c.b16 %v2137, %v2129
    %v2682 = vpack.c.b16 %v2138, %v2130
    %v2683 = vpack.c.b16 %v2139, %v2131
    %v2684 = vpack.c.b16 %v2140, %v2132
    %v2685 = vpack.c.b16 %v2141, %v2133
    %v2686 = vpack.c.b16 %v2142, %v2134
    %v2687 = vpack.c.b16 %v2151, %v2143
    %v2688 = vpack.c.b16 %v2152, %v2144
    %v2689 = vpack.c.b16 %v2153, %v2145
    %v2690 = vpack.c.b16 %v2154, %v2146
    %v2691 = vpack.c.b16 %v2155, %v2147
    %v2692 = vpack.c.b16 %v2156, %v2148
    %v2693 = vpack.c.b16 %v2157, %v2149
    %v2694 = vpack.c.b16 %v2158, %v2150
    %v2695 = vpack.c.b16 %v2167, %v2159
    %v2696 = vpack.c.b16 %v2168, %v2160
    %v2697 = vpack.c.b16 %v2169, %v2161
    %v2698 = vpack.c.b16 %v2170, %v2162
    %v2699 = vpack.c.b16 %v2171, %v2163
    %v2700 = vpack.c.b16 %v2172, %v2164
    %v2701 = vpack.c.b16 %v2173, %v2165
    %v2702 = vpack.c.b16 %v2174, %v2166
    %v2703 = vpack.c.b16 %v2183, %v2175
    %v2704 = vpack.c.b16 %v2184, %v2176
    %v2705 = vpack.c.b16 %v2185, %v2177
    %v2706 = vpack.c.b16 %v2186, %v2178
    %v2707 = vpack.c.b16 %v2187, %v2179
    %v2708 = vpack.c.b16 %v2188, %v2180
    %v2709 = vpack.c.b16 %v2189, %v2181
    %v2710 = vpack.c.b16 %v2190, %v2182
    %v2711 = vpack.c.b16 %v2199, %v2191
    %v2712 = vpack.c.b16 %v2200, %v2192
    %v2713 = vpack.c.b16 %v2201, %v2193
    %v2714 = vpack.c.b16 %v2202, %v2194
    %v2715 = vpack.c.b16 %v2203, %v2195
    %v2716 = vpack.c.b16 %v2204, %v2196
    %v2717 = vpack.c.b16 %v2205, %v2197
    %v2718 = vpack.c.b16 %v2206, %v2198
    %3231 = vmatpush.bf16.msra.mxu0 %v2263
    %3232 = vmatpush.bf16.msra.mxu0 %v2255
    %3233 = vmatpush.bf16.msra.mxu0 %v2247
    %3234 = vmatpush.bf16.msra.mxu0 %v2239
    %3235 = vmatpush.bf16.msra.mxu0 %v2231
    %3236 = vmatpush.bf16.msra.mxu0 %v2223
    %3237 = vmatpush.bf16.msra.mxu0 %v2215
    %3238 = vmatpush.bf16.msra.mxu0 %v2207
    %3239 = vmatmul.bf16.gmra.mxu0 %v655
    %v3240 = vpop.f32.mrf.mxu0
    %v3241 = vadd.f32 0.0, %v3240
    %v3242 = vpop.f32.mrf.mxu0
    %3243 = vdwg.mxu0
    %3244 = vmatpush.bf16.msra.mxu0 %v2327
    %3245 = vmatpush.bf16.msra.mxu0 %v2319
    %3246 = vmatpush.bf16.msra.mxu0 %v2311
    %3247 = vmatpush.bf16.msra.mxu0 %v2303
    %3248 = vmatpush.bf16.msra.mxu0 %v2295
    %3249 = vmatpush.bf16.msra.mxu0 %v2287
    %3250 = vmatpush.bf16.msra.mxu0 %v2279
    %3251 = vmatpush.bf16.msra.mxu0 %v2271
    %3252 = vmatmul.bf16.gmra.mxu0 %v656
    %v3253 = vpop.f32.mrf.mxu0
    %v3254 = vadd.f32 %v3241, %v3253
    %v3255 = vpop.f32.mrf.mxu0
    %3256 = vdwg.mxu0
    %3257 = vmatpush.bf16.msra.mxu0 %v2391
    %3258 = vmatpush.bf16.msra.mxu0 %v2383
    %3259 = vmatpush.bf16.msra.mxu0 %v2375
    %3260 = vmatpush.bf16.msra.mxu0 %v2367
    %3261 = vmatpush.bf16.msra.mxu0 %v2359
    %3262 = vmatpush.bf16.msra.mxu0 %v2351
    %3263 = vmatpush.bf16.msra.mxu0 %v2343
    %3264 = vmatpush.bf16.msra.mxu0 %v2335
    %3265 = vmatmul.bf16.gmra.mxu0 %v657
    %v3266 = vpop.f32.mrf.mxu0
    %v3267 = vadd.f32 %v3254, %v3266
    %v3268 = vpop.f32.mrf.mxu0
    %3269 = vdwg.mxu0
    %3270 = vmatpush.bf16.msra.mxu0 %v2455
    %3271 = vmatpush.bf16.msra.mxu0 %v2447
    %3272 = vmatpush.bf16.msra.mxu0 %v2439
    %3273 = vmatpush.bf16.msra.mxu0 %v2431
    %3274 = vmatpush.bf16.msra.mxu0 %v2423
    %3275 = vmatpush.bf16.msra.mxu0 %v2415
    %3276 = vmatpush.bf16.msra.mxu0 %v2407
    %3277 = vmatpush.bf16.msra.mxu0 %v2399
    %3278 = vmatmul.bf16.gmra.mxu0 %v658
    %v3279 = vpop.f32.mrf.mxu0
    %v3280 = vadd.f32 %v3267, %v3279
    %v3281 = vpop.f32.mrf.mxu0
    %3282 = vdwg.mxu0
    %3283 = vmatpush.bf16.msra.mxu0 %v2519
    %3284 = vmatpush.bf16.msra.mxu0 %v2511
    %3285 = vmatpush.bf16.msra.mxu0 %v2503
    %3286 = vmatpush.bf16.msra.mxu0 %v2495
    %3287 = vmatpush.bf16.msra.mxu0 %v2487
    %3288 = vmatpush.bf16.msra.mxu0 %v2479
    %3289 = vmatpush.bf16.msra.mxu0 %v2471
    %3290 = vmatpush.bf16.msra.mxu0 %v2463
    %3291 = vmatmul.bf16.gmra.mxu0 %v659
    %v3292 = vpop.f32.mrf.mxu0
    %v3293 = vadd.f32 %v3280, %v3292
    %v3294 = vpop.f32.mrf.mxu0
    %3295 = vdwg.mxu0
    %3296 = vmatpush.bf16.msra.mxu0 %v2583
    %3297 = vmatpush.bf16.msra.mxu0 %v2575
    %3298 = vmatpush.bf16.msra.mxu0 %v2567
    %3299 = vmatpush.bf16.msra.mxu0 %v2559
    %3300 = vmatpush.bf16.msra.mxu0 %v2551
    %3301 = vmatpush.bf16.msra.mxu0 %v2543
    %3302 = vmatpush.bf16.msra.mxu0 %v2535
    %3303 = vmatpush.bf16.msra.mxu0 %v2527
    %3304 = vmatmul.bf16.gmra.mxu0 %v660
    %v3305 = vpop.f32.mrf.mxu0
    %v3306 = vadd.f32 %v3293, %v3305
    %v3307 = vpop.f32.mrf.mxu0
    %3308 = vdwg.mxu0
    %3309 = vmatpush.bf16.msra.mxu0 %v2647
    %3310 = vmatpush.bf16.msra.mxu0 %v2639
    %3311 = vmatpush.bf16.msra.mxu0 %v2631
    %3312 = vmatpush.bf16.msra.mxu0 %v2623
    %3313 = vmatpush.bf16.msra.mxu0 %v2615
    %3314 = vmatpush.bf16.msra.mxu0 %v2607
    %3315 = vmatpush.bf16.msra.mxu0 %v2599
    %3316 = vmatpush.bf16.msra.mxu0 %v2591
    %3317 = vmatmul.bf16.gmra.mxu0 %v661
    %v3318 = vpop.f32.mrf.mxu0
    %v3319 = vadd.f32 %v3306, %v3318
    %v3320 = vpop.f32.mrf.mxu0
    %3321 = vdwg.mxu0
    %3322 = vmatpush.bf16.msra.mxu0 %v2711
    %3323 = vmatpush.bf16.msra.mxu0 %v2703
    %3324 = vmatpush.bf16.msra.mxu0 %v2695
    %3325 = vmatpush.bf16.msra.mxu0 %v2687
    %3326 = vmatpush.bf16.msra.mxu0 %v2679
    %3327 = vmatpush.bf16.msra.mxu0 %v2671
    %3328 = vmatpush.bf16.msra.mxu0 %v2663
    %3329 = vmatpush.bf16.msra.mxu0 %v2655
    %3330 = vmatmul.bf16.gmra.mxu0 %v662
    %v3331 = vpop.f32.mrf.mxu0
    %v3332 = vadd.f32 %v3319, %v3331
    %v3333 = vpop.f32.mrf.mxu0
    %3334 = vdwg.mxu0
    %3335 = vmatpush.bf16.msra.mxu0 %v2264
    %3336 = vmatpush.bf16.msra.mxu0 %v2256
    %3337 = vmatpush.bf16.msra.mxu0 %v2248
    %3338 = vmatpush.bf16.msra.mxu0 %v2240
    %3339 = vmatpush.bf16.msra.mxu0 %v2232
    %3340 = vmatpush.bf16.msra.mxu0 %v2224
    %3341 = vmatpush.bf16.msra.mxu0 %v2216
    %3342 = vmatpush.bf16.msra.mxu0 %v2208
    %3343 = vmatmul.bf16.gmra.mxu0 %v655
    %v3344 = vpop.f32.mrf.mxu0
    %v3345 = vadd.f32 0.0, %v3344
    %v3346 = vpop.f32.mrf.mxu0
    %3347 = vdwg.mxu0
    %3348 = vmatpush.bf16.msra.mxu0 %v2328
    %3349 = vmatpush.bf16.msra.mxu0 %v2320
    %3350 = vmatpush.bf16.msra.mxu0 %v2312
    %3351 = vmatpush.bf16.msra.mxu0 %v2304
    %3352 = vmatpush.bf16.msra.mxu0 %v2296
    %3353 = vmatpush.bf16.msra.mxu0 %v2288
    %3354 = vmatpush.bf16.msra.mxu0 %v2280
    %3355 = vmatpush.bf16.msra.mxu0 %v2272
    %3356 = vmatmul.bf16.gmra.mxu0 %v656
    %v3357 = vpop.f32.mrf.mxu0
    %v3358 = vadd.f32 %v3345, %v3357
    %v3359 = vpop.f32.mrf.mxu0
    %3360 = vdwg.mxu0
    %3361 = vmatpush.bf16.msra.mxu0 %v2392
    %3362 = vmatpush.bf16.msra.mxu0 %v2384
    %3363 = vmatpush.bf16.msra.mxu0 %v2376
    %3364 = vmatpush.bf16.msra.mxu0 %v2368
    %3365 = vmatpush.bf16.msra.mxu0 %v2360
    %3366 = vmatpush.bf16.msra.mxu0 %v2352
    %3367 = vmatpush.bf16.msra.mxu0 %v2344
    %3368 = vmatpush.bf16.msra.mxu0 %v2336
    %3369 = vmatmul.bf16.gmra.mxu0 %v657
    %v3370 = vpop.f32.mrf.mxu0
    %v3371 = vadd.f32 %v3358, %v3370
    %v3372 = vpop.f32.mrf.mxu0
    %3373 = vdwg.mxu0
    %3374 = vmatpush.bf16.msra.mxu0 %v2456
    %3375 = vmatpush.bf16.msra.mxu0 %v2448
    %3376 = vmatpush.bf16.msra.mxu0 %v2440
    %3377 = vmatpush.bf16.msra.mxu0 %v2432
    %3378 = vmatpush.bf16.msra.mxu0 %v2424
    %3379 = vmatpush.bf16.msra.mxu0 %v2416
    %3380 = vmatpush.bf16.msra.mxu0 %v2408
    %3381 = vmatpush.bf16.msra.mxu0 %v2400
    %3382 = vmatmul.bf16.gmra.mxu0 %v658
    %v3383 = vpop.f32.mrf.mxu0
    %v3384 = vadd.f32 %v3371, %v3383
    %v3385 = vpop.f32.mrf.mxu0
    %3386 = vdwg.mxu0
    %3387 = vmatpush.bf16.msra.mxu0 %v2520
    %3388 = vmatpush.bf16.msra.mxu0 %v2512
    %3389 = vmatpush.bf16.msra.mxu0 %v2504
    %3390 = vmatpush.bf16.msra.mxu0 %v2496
    %3391 = vmatpush.bf16.msra.mxu0 %v2488
    %3392 = vmatpush.bf16.msra.mxu0 %v2480
    %3393 = vmatpush.bf16.msra.mxu0 %v2472
    %3394 = vmatpush.bf16.msra.mxu0 %v2464
    %3395 = vmatmul.bf16.gmra.mxu0 %v659
    %v3396 = vpop.f32.mrf.mxu0
    %v3397 = vadd.f32 %v3384, %v3396
    %v3398 = vpop.f32.mrf.mxu0
    %3399 = vdwg.mxu0
    %3400 = vmatpush.bf16.msra.mxu0 %v2584
    %3401 = vmatpush.bf16.msra.mxu0 %v2576
    %3402 = vmatpush.bf16.msra.mxu0 %v2568
    %3403 = vmatpush.bf16.msra.mxu0 %v2560
    %3404 = vmatpush.bf16.msra.mxu0 %v2552
    %3405 = vmatpush.bf16.msra.mxu0 %v2544
    %3406 = vmatpush.bf16.msra.mxu0 %v2536
    %3407 = vmatpush.bf16.msra.mxu0 %v2528
    %3408 = vmatmul.bf16.gmra.mxu0 %v660
    %v3409 = vpop.f32.mrf.mxu0
    %v3410 = vadd.f32 %v3397, %v3409
    %v3411 = vpop.f32.mrf.mxu0
    %3412 = vdwg.mxu0
    %3413 = vmatpush.bf16.msra.mxu0 %v2648
    %3414 = vmatpush.bf16.msra.mxu0 %v2640
    %3415 = vmatpush.bf16.msra.mxu0 %v2632
    %3416 = vmatpush.bf16.msra.mxu0 %v2624
    %3417 = vmatpush.bf16.msra.mxu0 %v2616
    %3418 = vmatpush.bf16.msra.mxu0 %v2608
    %3419 = vmatpush.bf16.msra.mxu0 %v2600
    %3420 = vmatpush.bf16.msra.mxu0 %v2592
    %3421 = vmatmul.bf16.gmra.mxu0 %v661
    %v3422 = vpop.f32.mrf.mxu0
    %v3423 = vadd.f32 %v3410, %v3422
    %v3424 = vpop.f32.mrf.mxu0
    %3425 = vdwg.mxu0
    %3426 = vmatpush.bf16.msra.mxu0 %v2712
    %3427 = vmatpush.bf16.msra.mxu0 %v2704
    %3428 = vmatpush.bf16.msra.mxu0 %v2696
    %3429 = vmatpush.bf16.msra.mxu0 %v2688
    %3430 = vmatpush.bf16.msra.mxu0 %v2680
    %3431 = vmatpush.bf16.msra.mxu0 %v2672
    %3432 = vmatpush.bf16.msra.mxu0 %v2664
    %3433 = vmatpush.bf16.msra.mxu0 %v2656
    %3434 = vmatmul.bf16.gmra.mxu0 %v662
    %v3435 = vpop.f32.mrf.mxu0
    %v3436 = vadd.f32 %v3423, %v3435
    %v3437 = vpop.f32.mrf.mxu0
    %3438 = vdwg.mxu0
    %3439 = vmatpush.bf16.msra.mxu0 %v2265
    %3440 = vmatpush.bf16.msra.mxu0 %v2257
    %3441 = vmatpush.bf16.msra.mxu0 %v2249
    %3442 = vmatpush.bf16.msra.mxu0 %v2241
    %3443 = vmatpush.bf16.msra.mxu0 %v2233
    %3444 = vmatpush.bf16.msra.mxu0 %v2225
    %3445 = vmatpush.bf16.msra.mxu0 %v2217
    %3446 = vmatpush.bf16.msra.mxu0 %v2209
    %3447 = vmatmul.bf16.gmra.mxu0 %v655
    %v3448 = vpop.f32.mrf.mxu0
    %v3449 = vadd.f32 0.0, %v3448
    %v3450 = vpop.f32.mrf.mxu0
    %3451 = vdwg.mxu0
    %3452 = vmatpush.bf16.msra.mxu0 %v2329
    %3453 = vmatpush.bf16.msra.mxu0 %v2321
    %3454 = vmatpush.bf16.msra.mxu0 %v2313
    %3455 = vmatpush.bf16.msra.mxu0 %v2305
    %3456 = vmatpush.bf16.msra.mxu0 %v2297
    %3457 = vmatpush.bf16.msra.mxu0 %v2289
    %3458 = vmatpush.bf16.msra.mxu0 %v2281
    %3459 = vmatpush.bf16.msra.mxu0 %v2273
    %3460 = vmatmul.bf16.gmra.mxu0 %v656
    %v3461 = vpop.f32.mrf.mxu0
    %v3462 = vadd.f32 %v3449, %v3461
    %v3463 = vpop.f32.mrf.mxu0
    %3464 = vdwg.mxu0
    %3465 = vmatpush.bf16.msra.mxu0 %v2393
    %3466 = vmatpush.bf16.msra.mxu0 %v2385
    %3467 = vmatpush.bf16.msra.mxu0 %v2377
    %3468 = vmatpush.bf16.msra.mxu0 %v2369
    %3469 = vmatpush.bf16.msra.mxu0 %v2361
    %3470 = vmatpush.bf16.msra.mxu0 %v2353
    %3471 = vmatpush.bf16.msra.mxu0 %v2345
    %3472 = vmatpush.bf16.msra.mxu0 %v2337
    %3473 = vmatmul.bf16.gmra.mxu0 %v657
    %v3474 = vpop.f32.mrf.mxu0
    %v3475 = vadd.f32 %v3462, %v3474
    %v3476 = vpop.f32.mrf.mxu0
    %3477 = vdwg.mxu0
    %3478 = vmatpush.bf16.msra.mxu0 %v2457
    %3479 = vmatpush.bf16.msra.mxu0 %v2449
    %3480 = vmatpush.bf16.msra.mxu0 %v2441
    %3481 = vmatpush.bf16.msra.mxu0 %v2433
    %3482 = vmatpush.bf16.msra.mxu0 %v2425
    %3483 = vmatpush.bf16.msra.mxu0 %v2417
    %3484 = vmatpush.bf16.msra.mxu0 %v2409
    %3485 = vmatpush.bf16.msra.mxu0 %v2401
    %3486 = vmatmul.bf16.gmra.mxu0 %v658
    %v3487 = vpop.f32.mrf.mxu0
    %v3488 = vadd.f32 %v3475, %v3487
    %v3489 = vpop.f32.mrf.mxu0
    %3490 = vdwg.mxu0
    %3491 = vmatpush.bf16.msra.mxu0 %v2521
    %3492 = vmatpush.bf16.msra.mxu0 %v2513
    %3493 = vmatpush.bf16.msra.mxu0 %v2505
    %3494 = vmatpush.bf16.msra.mxu0 %v2497
    %3495 = vmatpush.bf16.msra.mxu0 %v2489
    %3496 = vmatpush.bf16.msra.mxu0 %v2481
    %3497 = vmatpush.bf16.msra.mxu0 %v2473
    %3498 = vmatpush.bf16.msra.mxu0 %v2465
    %3499 = vmatmul.bf16.gmra.mxu0 %v659
    %v3500 = vpop.f32.mrf.mxu0
    %v3501 = vadd.f32 %v3488, %v3500
    %v3502 = vpop.f32.mrf.mxu0
    %3503 = vdwg.mxu0
    %3504 = vmatpush.bf16.msra.mxu0 %v2585
    %3505 = vmatpush.bf16.msra.mxu0 %v2577
    %3506 = vmatpush.bf16.msra.mxu0 %v2569
    %3507 = vmatpush.bf16.msra.mxu0 %v2561
    %3508 = vmatpush.bf16.msra.mxu0 %v2553
    %3509 = vmatpush.bf16.msra.mxu0 %v2545
    %3510 = vmatpush.bf16.msra.mxu0 %v2537
    %3511 = vmatpush.bf16.msra.mxu0 %v2529
    %3512 = vmatmul.bf16.gmra.mxu0 %v660
    %v3513 = vpop.f32.mrf.mxu0
    %v3514 = vadd.f32 %v3501, %v3513
    %v3515 = vpop.f32.mrf.mxu0
    %3516 = vdwg.mxu0
    %3517 = vmatpush.bf16.msra.mxu0 %v2649
    %3518 = vmatpush.bf16.msra.mxu0 %v2641
    %3519 = vmatpush.bf16.msra.mxu0 %v2633
    %3520 = vmatpush.bf16.msra.mxu0 %v2625
    %3521 = vmatpush.bf16.msra.mxu0 %v2617
    %3522 = vmatpush.bf16.msra.mxu0 %v2609
    %3523 = vmatpush.bf16.msra.mxu0 %v2601
    %3524 = vmatpush.bf16.msra.mxu0 %v2593
    %3525 = vmatmul.bf16.gmra.mxu0 %v661
    %v3526 = vpop.f32.mrf.mxu0
    %v3527 = vadd.f32 %v3514, %v3526
    %v3528 = vpop.f32.mrf.mxu0
    %3529 = vdwg.mxu0
    %3530 = vmatpush.bf16.msra.mxu0 %v2713
    %3531 = vmatpush.bf16.msra.mxu0 %v2705
    %3532 = vmatpush.bf16.msra.mxu0 %v2697
    %3533 = vmatpush.bf16.msra.mxu0 %v2689
    %3534 = vmatpush.bf16.msra.mxu0 %v2681
    %3535 = vmatpush.bf16.msra.mxu0 %v2673
    %3536 = vmatpush.bf16.msra.mxu0 %v2665
    %3537 = vmatpush.bf16.msra.mxu0 %v2657
    %3538 = vmatmul.bf16.gmra.mxu0 %v662
    %v3539 = vpop.f32.mrf.mxu0
    %v3540 = vadd.f32 %v3527, %v3539
    %v3541 = vpop.f32.mrf.mxu0
    %3542 = vdwg.mxu0
    %3543 = vmatpush.bf16.msra.mxu0 %v2266
    %3544 = vmatpush.bf16.msra.mxu0 %v2258
    %3545 = vmatpush.bf16.msra.mxu0 %v2250
    %3546 = vmatpush.bf16.msra.mxu0 %v2242
    %3547 = vmatpush.bf16.msra.mxu0 %v2234
    %3548 = vmatpush.bf16.msra.mxu0 %v2226
    %3549 = vmatpush.bf16.msra.mxu0 %v2218
    %3550 = vmatpush.bf16.msra.mxu0 %v2210
    %3551 = vmatmul.bf16.gmra.mxu0 %v655
    %v3552 = vpop.f32.mrf.mxu0
    %v3553 = vadd.f32 0.0, %v3552
    %v3554 = vpop.f32.mrf.mxu0
    %3555 = vdwg.mxu0
    %3556 = vmatpush.bf16.msra.mxu0 %v2330
    %3557 = vmatpush.bf16.msra.mxu0 %v2322
    %3558 = vmatpush.bf16.msra.mxu0 %v2314
    %3559 = vmatpush.bf16.msra.mxu0 %v2306
    %3560 = vmatpush.bf16.msra.mxu0 %v2298
    %3561 = vmatpush.bf16.msra.mxu0 %v2290
    %3562 = vmatpush.bf16.msra.mxu0 %v2282
    %3563 = vmatpush.bf16.msra.mxu0 %v2274
    %3564 = vmatmul.bf16.gmra.mxu0 %v656
    %v3565 = vpop.f32.mrf.mxu0
    %v3566 = vadd.f32 %v3553, %v3565
    %v3567 = vpop.f32.mrf.mxu0
    %3568 = vdwg.mxu0
    %3569 = vmatpush.bf16.msra.mxu0 %v2394
    %3570 = vmatpush.bf16.msra.mxu0 %v2386
    %3571 = vmatpush.bf16.msra.mxu0 %v2378
    %3572 = vmatpush.bf16.msra.mxu0 %v2370
    %3573 = vmatpush.bf16.msra.mxu0 %v2362
    %3574 = vmatpush.bf16.msra.mxu0 %v2354
    %3575 = vmatpush.bf16.msra.mxu0 %v2346
    %3576 = vmatpush.bf16.msra.mxu0 %v2338
    %3577 = vmatmul.bf16.gmra.mxu0 %v657
    %v3578 = vpop.f32.mrf.mxu0
    %v3579 = vadd.f32 %v3566, %v3578
    %v3580 = vpop.f32.mrf.mxu0
    %3581 = vdwg.mxu0
    %3582 = vmatpush.bf16.msra.mxu0 %v2458
    %3583 = vmatpush.bf16.msra.mxu0 %v2450
    %3584 = vmatpush.bf16.msra.mxu0 %v2442
    %3585 = vmatpush.bf16.msra.mxu0 %v2434
    %3586 = vmatpush.bf16.msra.mxu0 %v2426
    %3587 = vmatpush.bf16.msra.mxu0 %v2418
    %3588 = vmatpush.bf16.msra.mxu0 %v2410
    %3589 = vmatpush.bf16.msra.mxu0 %v2402
    %3590 = vmatmul.bf16.gmra.mxu0 %v658
    %v3591 = vpop.f32.mrf.mxu0
    %v3592 = vadd.f32 %v3579, %v3591
    %v3593 = vpop.f32.mrf.mxu0
    %3594 = vdwg.mxu0
    %3595 = vmatpush.bf16.msra.mxu0 %v2522
    %3596 = vmatpush.bf16.msra.mxu0 %v2514
    %3597 = vmatpush.bf16.msra.mxu0 %v2506
    %3598 = vmatpush.bf16.msra.mxu0 %v2498
    %3599 = vmatpush.bf16.msra.mxu0 %v2490
    %3600 = vmatpush.bf16.msra.mxu0 %v2482
    %3601 = vmatpush.bf16.msra.mxu0 %v2474
    %3602 = vmatpush.bf16.msra.mxu0 %v2466
    %3603 = vmatmul.bf16.gmra.mxu0 %v659
    %v3604 = vpop.f32.mrf.mxu0
    %v3605 = vadd.f32 %v3592, %v3604
    %v3606 = vpop.f32.mrf.mxu0
    %3607 = vdwg.mxu0
    %3608 = vmatpush.bf16.msra.mxu0 %v2586
    %3609 = vmatpush.bf16.msra.mxu0 %v2578
    %3610 = vmatpush.bf16.msra.mxu0 %v2570
    %3611 = vmatpush.bf16.msra.mxu0 %v2562
    %3612 = vmatpush.bf16.msra.mxu0 %v2554
    %3613 = vmatpush.bf16.msra.mxu0 %v2546
    %3614 = vmatpush.bf16.msra.mxu0 %v2538
    %3615 = vmatpush.bf16.msra.mxu0 %v2530
    %3616 = vmatmul.bf16.gmra.mxu0 %v660
    %v3617 = vpop.f32.mrf.mxu0
    %v3618 = vadd.f32 %v3605, %v3617
    %v3619 = vpop.f32.mrf.mxu0
    %3620 = vdwg.mxu0
    %3621 = vmatpush.bf16.msra.mxu0 %v2650
    %3622 = vmatpush.bf16.msra.mxu0 %v2642
    %3623 = vmatpush.bf16.msra.mxu0 %v2634
    %3624 = vmatpush.bf16.msra.mxu0 %v2626
    %3625 = vmatpush.bf16.msra.mxu0 %v2618
    %3626 = vmatpush.bf16.msra.mxu0 %v2610
    %3627 = vmatpush.bf16.msra.mxu0 %v2602
    %3628 = vmatpush.bf16.msra.mxu0 %v2594
    %3629 = vmatmul.bf16.gmra.mxu0 %v661
    %v3630 = vpop.f32.mrf.mxu0
    %v3631 = vadd.f32 %v3618, %v3630
    %v3632 = vpop.f32.mrf.mxu0
    %3633 = vdwg.mxu0
    %3634 = vmatpush.bf16.msra.mxu0 %v2714
    %3635 = vmatpush.bf16.msra.mxu0 %v2706
    %3636 = vmatpush.bf16.msra.mxu0 %v2698
    %3637 = vmatpush.bf16.msra.mxu0 %v2690
    %3638 = vmatpush.bf16.msra.mxu0 %v2682
    %3639 = vmatpush.bf16.msra.mxu0 %v2674
    %3640 = vmatpush.bf16.msra.mxu0 %v2666
    %3641 = vmatpush.bf16.msra.mxu0 %v2658
    %3642 = vmatmul.bf16.gmra.mxu0 %v662
    %v3643 = vpop.f32.mrf.mxu0
    %v3644 = vadd.f32 %v3631, %v3643
    %v3645 = vpop.f32.mrf.mxu0
    %3646 = vdwg.mxu0
    %3647 = vmatpush.bf16.msra.mxu0 %v2267
    %3648 = vmatpush.bf16.msra.mxu0 %v2259
    %3649 = vmatpush.bf16.msra.mxu0 %v2251
    %3650 = vmatpush.bf16.msra.mxu0 %v2243
    %3651 = vmatpush.bf16.msra.mxu0 %v2235
    %3652 = vmatpush.bf16.msra.mxu0 %v2227
    %3653 = vmatpush.bf16.msra.mxu0 %v2219
    %3654 = vmatpush.bf16.msra.mxu0 %v2211
    %3655 = vmatmul.bf16.gmra.mxu0 %v655
    %v3656 = vpop.f32.mrf.mxu0
    %v3657 = vadd.f32 0.0, %v3656
    %v3658 = vpop.f32.mrf.mxu0
    %3659 = vdwg.mxu0
    %3660 = vmatpush.bf16.msra.mxu0 %v2331
    %3661 = vmatpush.bf16.msra.mxu0 %v2323
    %3662 = vmatpush.bf16.msra.mxu0 %v2315
    %3663 = vmatpush.bf16.msra.mxu0 %v2307
    %3664 = vmatpush.bf16.msra.mxu0 %v2299
    %3665 = vmatpush.bf16.msra.mxu0 %v2291
    %3666 = vmatpush.bf16.msra.mxu0 %v2283
    %3667 = vmatpush.bf16.msra.mxu0 %v2275
    %3668 = vmatmul.bf16.gmra.mxu0 %v656
    %v3669 = vpop.f32.mrf.mxu0
    %v3670 = vadd.f32 %v3657, %v3669
    %v3671 = vpop.f32.mrf.mxu0
    %3672 = vdwg.mxu0
    %3673 = vmatpush.bf16.msra.mxu0 %v2395
    %3674 = vmatpush.bf16.msra.mxu0 %v2387
    %3675 = vmatpush.bf16.msra.mxu0 %v2379
    %3676 = vmatpush.bf16.msra.mxu0 %v2371
    %3677 = vmatpush.bf16.msra.mxu0 %v2363
    %3678 = vmatpush.bf16.msra.mxu0 %v2355
    %3679 = vmatpush.bf16.msra.mxu0 %v2347
    %3680 = vmatpush.bf16.msra.mxu0 %v2339
    %3681 = vmatmul.bf16.gmra.mxu0 %v657
    %v3682 = vpop.f32.mrf.mxu0
    %v3683 = vadd.f32 %v3670, %v3682
    %v3684 = vpop.f32.mrf.mxu0
    %3685 = vdwg.mxu0
    %3686 = vmatpush.bf16.msra.mxu0 %v2459
    %3687 = vmatpush.bf16.msra.mxu0 %v2451
    %3688 = vmatpush.bf16.msra.mxu0 %v2443
    %3689 = vmatpush.bf16.msra.mxu0 %v2435
    %3690 = vmatpush.bf16.msra.mxu0 %v2427
    %3691 = vmatpush.bf16.msra.mxu0 %v2419
    %3692 = vmatpush.bf16.msra.mxu0 %v2411
    %3693 = vmatpush.bf16.msra.mxu0 %v2403
    %3694 = vmatmul.bf16.gmra.mxu0 %v658
    %v3695 = vpop.f32.mrf.mxu0
    %v3696 = vadd.f32 %v3683, %v3695
    %v3697 = vpop.f32.mrf.mxu0
    %3698 = vdwg.mxu0
    %3699 = vmatpush.bf16.msra.mxu0 %v2523
    %3700 = vmatpush.bf16.msra.mxu0 %v2515
    %3701 = vmatpush.bf16.msra.mxu0 %v2507
    %3702 = vmatpush.bf16.msra.mxu0 %v2499
    %3703 = vmatpush.bf16.msra.mxu0 %v2491
    %3704 = vmatpush.bf16.msra.mxu0 %v2483
    %3705 = vmatpush.bf16.msra.mxu0 %v2475
    %3706 = vmatpush.bf16.msra.mxu0 %v2467
    %3707 = vmatmul.bf16.gmra.mxu0 %v659
    %v3708 = vpop.f32.mrf.mxu0
    %v3709 = vadd.f32 %v3696, %v3708
    %v3710 = vpop.f32.mrf.mxu0
    %3711 = vdwg.mxu0
    %3712 = vmatpush.bf16.msra.mxu0 %v2587
    %3713 = vmatpush.bf16.msra.mxu0 %v2579
    %3714 = vmatpush.bf16.msra.mxu0 %v2571
    %3715 = vmatpush.bf16.msra.mxu0 %v2563
    %3716 = vmatpush.bf16.msra.mxu0 %v2555
    %3717 = vmatpush.bf16.msra.mxu0 %v2547
    %3718 = vmatpush.bf16.msra.mxu0 %v2539
    %3719 = vmatpush.bf16.msra.mxu0 %v2531
    %3720 = vmatmul.bf16.gmra.mxu0 %v660
    %v3721 = vpop.f32.mrf.mxu0
    %v3722 = vadd.f32 %v3709, %v3721
    %v3723 = vpop.f32.mrf.mxu0
    %3724 = vdwg.mxu0
    %3725 = vmatpush.bf16.msra.mxu0 %v2651
    %3726 = vmatpush.bf16.msra.mxu0 %v2643
    %3727 = vmatpush.bf16.msra.mxu0 %v2635
    %3728 = vmatpush.bf16.msra.mxu0 %v2627
    %3729 = vmatpush.bf16.msra.mxu0 %v2619
    %3730 = vmatpush.bf16.msra.mxu0 %v2611
    %3731 = vmatpush.bf16.msra.mxu0 %v2603
    %3732 = vmatpush.bf16.msra.mxu0 %v2595
    %3733 = vmatmul.bf16.gmra.mxu0 %v661
    %v3734 = vpop.f32.mrf.mxu0
    %v3735 = vadd.f32 %v3722, %v3734
    %v3736 = vpop.f32.mrf.mxu0
    %3737 = vdwg.mxu0
    %3738 = vmatpush.bf16.msra.mxu0 %v2715
    %3739 = vmatpush.bf16.msra.mxu0 %v2707
    %3740 = vmatpush.bf16.msra.mxu0 %v2699
    %3741 = vmatpush.bf16.msra.mxu0 %v2691
    %3742 = vmatpush.bf16.msra.mxu0 %v2683
    %3743 = vmatpush.bf16.msra.mxu0 %v2675
    %3744 = vmatpush.bf16.msra.mxu0 %v2667
    %3745 = vmatpush.bf16.msra.mxu0 %v2659
    %3746 = vmatmul.bf16.gmra.mxu0 %v662
    %v3747 = vpop.f32.mrf.mxu0
    %v3748 = vadd.f32 %v3735, %v3747
    %v3749 = vpop.f32.mrf.mxu0
    %3750 = vdwg.mxu0
    %3751 = vmatpush.bf16.msra.mxu0 %v2268
    %3752 = vmatpush.bf16.msra.mxu0 %v2260
    %3753 = vmatpush.bf16.msra.mxu0 %v2252
    %3754 = vmatpush.bf16.msra.mxu0 %v2244
    %3755 = vmatpush.bf16.msra.mxu0 %v2236
    %3756 = vmatpush.bf16.msra.mxu0 %v2228
    %3757 = vmatpush.bf16.msra.mxu0 %v2220
    %3758 = vmatpush.bf16.msra.mxu0 %v2212
    %3759 = vmatmul.bf16.gmra.mxu0 %v655
    %v3760 = vpop.f32.mrf.mxu0
    %v3761 = vadd.f32 0.0, %v3760
    %v3762 = vpop.f32.mrf.mxu0
    %3763 = vdwg.mxu0
    %3764 = vmatpush.bf16.msra.mxu0 %v2332
    %3765 = vmatpush.bf16.msra.mxu0 %v2324
    %3766 = vmatpush.bf16.msra.mxu0 %v2316
    %3767 = vmatpush.bf16.msra.mxu0 %v2308
    %3768 = vmatpush.bf16.msra.mxu0 %v2300
    %3769 = vmatpush.bf16.msra.mxu0 %v2292
    %3770 = vmatpush.bf16.msra.mxu0 %v2284
    %3771 = vmatpush.bf16.msra.mxu0 %v2276
    %3772 = vmatmul.bf16.gmra.mxu0 %v656
    %v3773 = vpop.f32.mrf.mxu0
    %v3774 = vadd.f32 %v3761, %v3773
    %v3775 = vpop.f32.mrf.mxu0
    %3776 = vdwg.mxu0
    %3777 = vmatpush.bf16.msra.mxu0 %v2396
    %3778 = vmatpush.bf16.msra.mxu0 %v2388
    %3779 = vmatpush.bf16.msra.mxu0 %v2380
    %3780 = vmatpush.bf16.msra.mxu0 %v2372
    %3781 = vmatpush.bf16.msra.mxu0 %v2364
    %3782 = vmatpush.bf16.msra.mxu0 %v2356
    %3783 = vmatpush.bf16.msra.mxu0 %v2348
    %3784 = vmatpush.bf16.msra.mxu0 %v2340
    %3785 = vmatmul.bf16.gmra.mxu0 %v657
    %v3786 = vpop.f32.mrf.mxu0
    %v3787 = vadd.f32 %v3774, %v3786
    %v3788 = vpop.f32.mrf.mxu0
    %3789 = vdwg.mxu0
    %3790 = vmatpush.bf16.msra.mxu0 %v2460
    %3791 = vmatpush.bf16.msra.mxu0 %v2452
    %3792 = vmatpush.bf16.msra.mxu0 %v2444
    %3793 = vmatpush.bf16.msra.mxu0 %v2436
    %3794 = vmatpush.bf16.msra.mxu0 %v2428
    %3795 = vmatpush.bf16.msra.mxu0 %v2420
    %3796 = vmatpush.bf16.msra.mxu0 %v2412
    %3797 = vmatpush.bf16.msra.mxu0 %v2404
    %3798 = vmatmul.bf16.gmra.mxu0 %v658
    %v3799 = vpop.f32.mrf.mxu0
    %v3800 = vadd.f32 %v3787, %v3799
    %v3801 = vpop.f32.mrf.mxu0
    %3802 = vdwg.mxu0
    %3803 = vmatpush.bf16.msra.mxu0 %v2524
    %3804 = vmatpush.bf16.msra.mxu0 %v2516
    %3805 = vmatpush.bf16.msra.mxu0 %v2508
    %3806 = vmatpush.bf16.msra.mxu0 %v2500
    %3807 = vmatpush.bf16.msra.mxu0 %v2492
    %3808 = vmatpush.bf16.msra.mxu0 %v2484
    %3809 = vmatpush.bf16.msra.mxu0 %v2476
    %3810 = vmatpush.bf16.msra.mxu0 %v2468
    %3811 = vmatmul.bf16.gmra.mxu0 %v659
    %v3812 = vpop.f32.mrf.mxu0
    %v3813 = vadd.f32 %v3800, %v3812
    %v3814 = vpop.f32.mrf.mxu0
    %3815 = vdwg.mxu0
    %3816 = vmatpush.bf16.msra.mxu0 %v2588
    %3817 = vmatpush.bf16.msra.mxu0 %v2580
    %3818 = vmatpush.bf16.msra.mxu0 %v2572
    %3819 = vmatpush.bf16.msra.mxu0 %v2564
    %3820 = vmatpush.bf16.msra.mxu0 %v2556
    %3821 = vmatpush.bf16.msra.mxu0 %v2548
    %3822 = vmatpush.bf16.msra.mxu0 %v2540
    %3823 = vmatpush.bf16.msra.mxu0 %v2532
    %3824 = vmatmul.bf16.gmra.mxu0 %v660
    %v3825 = vpop.f32.mrf.mxu0
    %v3826 = vadd.f32 %v3813, %v3825
    %v3827 = vpop.f32.mrf.mxu0
    %3828 = vdwg.mxu0
    %3829 = vmatpush.bf16.msra.mxu0 %v2652
    %3830 = vmatpush.bf16.msra.mxu0 %v2644
    %3831 = vmatpush.bf16.msra.mxu0 %v2636
    %3832 = vmatpush.bf16.msra.mxu0 %v2628
    %3833 = vmatpush.bf16.msra.mxu0 %v2620
    %3834 = vmatpush.bf16.msra.mxu0 %v2612
    %3835 = vmatpush.bf16.msra.mxu0 %v2604
    %3836 = vmatpush.bf16.msra.mxu0 %v2596
    %3837 = vmatmul.bf16.gmra.mxu0 %v661
    %v3838 = vpop.f32.mrf.mxu0
    %v3839 = vadd.f32 %v3826, %v3838
    %v3840 = vpop.f32.mrf.mxu0
    %3841 = vdwg.mxu0
    %3842 = vmatpush.bf16.msra.mxu0 %v2716
    %3843 = vmatpush.bf16.msra.mxu0 %v2708
    %3844 = vmatpush.bf16.msra.mxu0 %v2700
    %3845 = vmatpush.bf16.msra.mxu0 %v2692
    %3846 = vmatpush.bf16.msra.mxu0 %v2684
    %3847 = vmatpush.bf16.msra.mxu0 %v2676
    %3848 = vmatpush.bf16.msra.mxu0 %v2668
    %3849 = vmatpush.bf16.msra.mxu0 %v2660
    %3850 = vmatmul.bf16.gmra.mxu0 %v662
    %v3851 = vpop.f32.mrf.mxu0
    %v3852 = vadd.f32 %v3839, %v3851
    %v3853 = vpop.f32.mrf.mxu0
    %3854 = vdwg.mxu0
    %3855 = vmatpush.bf16.msra.mxu0 %v2269
    %3856 = vmatpush.bf16.msra.mxu0 %v2261
    %3857 = vmatpush.bf16.msra.mxu0 %v2253
    %3858 = vmatpush.bf16.msra.mxu0 %v2245
    %3859 = vmatpush.bf16.msra.mxu0 %v2237
    %3860 = vmatpush.bf16.msra.mxu0 %v2229
    %3861 = vmatpush.bf16.msra.mxu0 %v2221
    %3862 = vmatpush.bf16.msra.mxu0 %v2213
    %3863 = vmatmul.bf16.gmra.mxu0 %v655
    %v3864 = vpop.f32.mrf.mxu0
    %v3865 = vadd.f32 0.0, %v3864
    %v3866 = vpop.f32.mrf.mxu0
    %3867 = vdwg.mxu0
    %3868 = vmatpush.bf16.msra.mxu0 %v2333
    %3869 = vmatpush.bf16.msra.mxu0 %v2325
    %3870 = vmatpush.bf16.msra.mxu0 %v2317
    %3871 = vmatpush.bf16.msra.mxu0 %v2309
    %3872 = vmatpush.bf16.msra.mxu0 %v2301
    %3873 = vmatpush.bf16.msra.mxu0 %v2293
    %3874 = vmatpush.bf16.msra.mxu0 %v2285
    %3875 = vmatpush.bf16.msra.mxu0 %v2277
    %3876 = vmatmul.bf16.gmra.mxu0 %v656
    %v3877 = vpop.f32.mrf.mxu0
    %v3878 = vadd.f32 %v3865, %v3877
    %v3879 = vpop.f32.mrf.mxu0
    %3880 = vdwg.mxu0
    %3881 = vmatpush.bf16.msra.mxu0 %v2397
    %3882 = vmatpush.bf16.msra.mxu0 %v2389
    %3883 = vmatpush.bf16.msra.mxu0 %v2381
    %3884 = vmatpush.bf16.msra.mxu0 %v2373
    %3885 = vmatpush.bf16.msra.mxu0 %v2365
    %3886 = vmatpush.bf16.msra.mxu0 %v2357
    %3887 = vmatpush.bf16.msra.mxu0 %v2349
    %3888 = vmatpush.bf16.msra.mxu0 %v2341
    %3889 = vmatmul.bf16.gmra.mxu0 %v657
    %v3890 = vpop.f32.mrf.mxu0
    %v3891 = vadd.f32 %v3878, %v3890
    %v3892 = vpop.f32.mrf.mxu0
    %3893 = vdwg.mxu0
    %3894 = vmatpush.bf16.msra.mxu0 %v2461
    %3895 = vmatpush.bf16.msra.mxu0 %v2453
    %3896 = vmatpush.bf16.msra.mxu0 %v2445
    %3897 = vmatpush.bf16.msra.mxu0 %v2437
    %3898 = vmatpush.bf16.msra.mxu0 %v2429
    %3899 = vmatpush.bf16.msra.mxu0 %v2421
    %3900 = vmatpush.bf16.msra.mxu0 %v2413
    %3901 = vmatpush.bf16.msra.mxu0 %v2405
    %3902 = vmatmul.bf16.gmra.mxu0 %v658
    %v3903 = vpop.f32.mrf.mxu0
    %v3904 = vadd.f32 %v3891, %v3903
    %v3905 = vpop.f32.mrf.mxu0
    %3906 = vdwg.mxu0
    %3907 = vmatpush.bf16.msra.mxu0 %v2525
    %3908 = vmatpush.bf16.msra.mxu0 %v2517
    %3909 = vmatpush.bf16.msra.mxu0 %v2509
    %3910 = vmatpush.bf16.msra.mxu0 %v2501
    %3911 = vmatpush.bf16.msra.mxu0 %v2493
    %3912 = vmatpush.bf16.msra.mxu0 %v2485
    %3913 = vmatpush.bf16.msra.mxu0 %v2477
    %3914 = vmatpush.bf16.msra.mxu0 %v2469
    %3915 = vmatmul.bf16.gmra.mxu0 %v659
    %v3916 = vpop.f32.mrf.mxu0
    %v3917 = vadd.f32 %v3904, %v3916
    %v3918 = vpop.f32.mrf.mxu0
    %3919 = vdwg.mxu0
    %3920 = vmatpush.bf16.msra.mxu0 %v2589
    %3921 = vmatpush.bf16.msra.mxu0 %v2581
    %3922 = vmatpush.bf16.msra.mxu0 %v2573
    %3923 = vmatpush.bf16.msra.mxu0 %v2565
    %3924 = vmatpush.bf16.msra.mxu0 %v2557
    %3925 = vmatpush.bf16.msra.mxu0 %v2549
    %3926 = vmatpush.bf16.msra.mxu0 %v2541
    %3927 = vmatpush.bf16.msra.mxu0 %v2533
    %3928 = vmatmul.bf16.gmra.mxu0 %v660
    %v3929 = vpop.f32.mrf.mxu0
    %v3930 = vadd.f32 %v3917, %v3929
    %v3931 = vpop.f32.mrf.mxu0
    %3932 = vdwg.mxu0
    %3933 = vmatpush.bf16.msra.mxu0 %v2653
    %3934 = vmatpush.bf16.msra.mxu0 %v2645
    %3935 = vmatpush.bf16.msra.mxu0 %v2637
    %3936 = vmatpush.bf16.msra.mxu0 %v2629
    %3937 = vmatpush.bf16.msra.mxu0 %v2621
    %3938 = vmatpush.bf16.msra.mxu0 %v2613
    %3939 = vmatpush.bf16.msra.mxu0 %v2605
    %3940 = vmatpush.bf16.msra.mxu0 %v2597
    %3941 = vmatmul.bf16.gmra.mxu0 %v661
    %v3942 = vpop.f32.mrf.mxu0
    %v3943 = vadd.f32 %v3930, %v3942
    %v3944 = vpop.f32.mrf.mxu0
    %3945 = vdwg.mxu0
    %3946 = vmatpush.bf16.msra.mxu0 %v2717
    %3947 = vmatpush.bf16.msra.mxu0 %v2709
    %3948 = vmatpush.bf16.msra.mxu0 %v2701
    %3949 = vmatpush.bf16.msra.mxu0 %v2693
    %3950 = vmatpush.bf16.msra.mxu0 %v2685
    %3951 = vmatpush.bf16.msra.mxu0 %v2677
    %3952 = vmatpush.bf16.msra.mxu0 %v2669
    %3953 = vmatpush.bf16.msra.mxu0 %v2661
    %3954 = vmatmul.bf16.gmra.mxu0 %v662
    %v3955 = vpop.f32.mrf.mxu0
    %v3956 = vadd.f32 %v3943, %v3955
    %v3957 = vpop.f32.mrf.mxu0
    %3958 = vdwg.mxu0
    %3959 = vmatpush.bf16.msra.mxu0 %v2270
    %3960 = vmatpush.bf16.msra.mxu0 %v2262
    %3961 = vmatpush.bf16.msra.mxu0 %v2254
    %3962 = vmatpush.bf16.msra.mxu0 %v2246
    %3963 = vmatpush.bf16.msra.mxu0 %v2238
    %3964 = vmatpush.bf16.msra.mxu0 %v2230
    %3965 = vmatpush.bf16.msra.mxu0 %v2222
    %3966 = vmatpush.bf16.msra.mxu0 %v2214
    %3967 = vmatmul.bf16.gmra.mxu0 %v655
    %v3968 = vpop.f32.mrf.mxu0
    %v3969 = vadd.f32 0.0, %v3968
    %v3970 = vpop.f32.mrf.mxu0
    %3971 = vdwg.mxu0
    %3972 = vmatpush.bf16.msra.mxu0 %v2334
    %3973 = vmatpush.bf16.msra.mxu0 %v2326
    %3974 = vmatpush.bf16.msra.mxu0 %v2318
    %3975 = vmatpush.bf16.msra.mxu0 %v2310
    %3976 = vmatpush.bf16.msra.mxu0 %v2302
    %3977 = vmatpush.bf16.msra.mxu0 %v2294
    %3978 = vmatpush.bf16.msra.mxu0 %v2286
    %3979 = vmatpush.bf16.msra.mxu0 %v2278
    %3980 = vmatmul.bf16.gmra.mxu0 %v656
    %v3981 = vpop.f32.mrf.mxu0
    %v3982 = vadd.f32 %v3969, %v3981
    %v3983 = vpop.f32.mrf.mxu0
    %3984 = vdwg.mxu0
    %3985 = vmatpush.bf16.msra.mxu0 %v2398
    %3986 = vmatpush.bf16.msra.mxu0 %v2390
    %3987 = vmatpush.bf16.msra.mxu0 %v2382
    %3988 = vmatpush.bf16.msra.mxu0 %v2374
    %3989 = vmatpush.bf16.msra.mxu0 %v2366
    %3990 = vmatpush.bf16.msra.mxu0 %v2358
    %3991 = vmatpush.bf16.msra.mxu0 %v2350
    %3992 = vmatpush.bf16.msra.mxu0 %v2342
    %3993 = vmatmul.bf16.gmra.mxu0 %v657
    %v3994 = vpop.f32.mrf.mxu0
    %v3995 = vadd.f32 %v3982, %v3994
    %v3996 = vpop.f32.mrf.mxu0
    %3997 = vdwg.mxu0
    %3998 = vmatpush.bf16.msra.mxu0 %v2462
    %3999 = vmatpush.bf16.msra.mxu0 %v2454
    %4000 = vmatpush.bf16.msra.mxu0 %v2446
    %4001 = vmatpush.bf16.msra.mxu0 %v2438
    %4002 = vmatpush.bf16.msra.mxu0 %v2430
    %4003 = vmatpush.bf16.msra.mxu0 %v2422
    %4004 = vmatpush.bf16.msra.mxu0 %v2414
    %4005 = vmatpush.bf16.msra.mxu0 %v2406
    %4006 = vmatmul.bf16.gmra.mxu0 %v658
    %v4007 = vpop.f32.mrf.mxu0
    %v4008 = vadd.f32 %v3995, %v4007
    %v4009 = vpop.f32.mrf.mxu0
    %4010 = vdwg.mxu0
    %4011 = vmatpush.bf16.msra.mxu0 %v2526
    %4012 = vmatpush.bf16.msra.mxu0 %v2518
    %4013 = vmatpush.bf16.msra.mxu0 %v2510
    %4014 = vmatpush.bf16.msra.mxu0 %v2502
    %4015 = vmatpush.bf16.msra.mxu0 %v2494
    %4016 = vmatpush.bf16.msra.mxu0 %v2486
    %4017 = vmatpush.bf16.msra.mxu0 %v2478
    %4018 = vmatpush.bf16.msra.mxu0 %v2470
    %4019 = vmatmul.bf16.gmra.mxu0 %v659
    %v4020 = vpop.f32.mrf.mxu0
    %v4021 = vadd.f32 %v4008, %v4020
    %v4022 = vpop.f32.mrf.mxu0
    %4023 = vdwg.mxu0
    %4024 = vmatpush.bf16.msra.mxu0 %v2590
    %4025 = vmatpush.bf16.msra.mxu0 %v2582
    %4026 = vmatpush.bf16.msra.mxu0 %v2574
    %4027 = vmatpush.bf16.msra.mxu0 %v2566
    %4028 = vmatpush.bf16.msra.mxu0 %v2558
    %4029 = vmatpush.bf16.msra.mxu0 %v2550
    %4030 = vmatpush.bf16.msra.mxu0 %v2542
    %4031 = vmatpush.bf16.msra.mxu0 %v2534
    %4032 = vmatmul.bf16.gmra.mxu0 %v660
    %v4033 = vpop.f32.mrf.mxu0
    %v4034 = vadd.f32 %v4021, %v4033
    %v4035 = vpop.f32.mrf.mxu0
    %4036 = vdwg.mxu0
    %4037 = vmatpush.bf16.msra.mxu0 %v2654
    %4038 = vmatpush.bf16.msra.mxu0 %v2646
    %4039 = vmatpush.bf16.msra.mxu0 %v2638
    %4040 = vmatpush.bf16.msra.mxu0 %v2630
    %4041 = vmatpush.bf16.msra.mxu0 %v2622
    %4042 = vmatpush.bf16.msra.mxu0 %v2614
    %4043 = vmatpush.bf16.msra.mxu0 %v2606
    %4044 = vmatpush.bf16.msra.mxu0 %v2598
    %4045 = vmatmul.bf16.gmra.mxu0 %v661
    %v4046 = vpop.f32.mrf.mxu0
    %v4047 = vadd.f32 %v4034, %v4046
    %v4048 = vpop.f32.mrf.mxu0
    %4049 = vdwg.mxu0
    %4050 = vmatpush.bf16.msra.mxu0 %v2718
    %4051 = vmatpush.bf16.msra.mxu0 %v2710
    %4052 = vmatpush.bf16.msra.mxu0 %v2702
    %4053 = vmatpush.bf16.msra.mxu0 %v2694
    %4054 = vmatpush.bf16.msra.mxu0 %v2686
    %4055 = vmatpush.bf16.msra.mxu0 %v2678
    %4056 = vmatpush.bf16.msra.mxu0 %v2670
    %4057 = vmatpush.bf16.msra.mxu0 %v2662
    %4058 = vmatmul.bf16.gmra.mxu0 %v662
    %v4059 = vpop.f32.mrf.mxu0
    %v4060 = vadd.f32 %v4047, %v4059
    %v4061 = vpop.f32.mrf.mxu0
    %4062 = vdwg.mxu0
    %v4071 = vrot.slane %v3436, 6
    %v4072 = vrot.slane %v3540, 4
    %v4073 = vrot.slane %v3644, 2
    %v4074 = vrot.slane %v3852, 6
    %v4075 = vrot.slane %v3956, 4
    %v4076 = vrot.slane %v4060, 2
    %vm4077 = vcmask 1041408
    %v4078 = vsel %vm4077, %v3332, %v4071
    %vm4079 = vcmask 1045508
    %v4080 = vsel %vm4079, %v4072, %v4073
    %vm4081 = vcmask 1043456
    %v4082 = vsel %vm4081, %v4078, %v4080
    %v4083 = vsel %vm4077, %v3748, %v4074
    %v4084 = vsel %vm4079, %v4075, %v4076
    %v4085 = vsel %vm4081, %v4083, %v4084
    %v4088 = vadd.f32 %v135, %v4082
    %v4089 = vadd.f32 %v136, %v4085
    %4090 = vst [vmem:[#allocation2] sm:$0xff] %v4088
    %4091 = vst [vmem:[#allocation2 + $0x8] sm:$0xff] %v4089
    // Predicated region
    $region62: #{tpu_custom_call.1} parent=1 // pred_check
      %p4092 = pneg %p128
    $region63: #{tpu_custom_call.1} parent=1 // pred_check_branch
      %4094 = sbr.rel (%p4092) target = $region65
    $region64: #{tpu_custom_call.1} parent=1 // pred_region
      %v4095 = vld [vmem:[#allocation2] sm:$0xff]
      %v4096 = vld [vmem:[#allocation2 + $0x8] sm:$0xff]
      %v4097 = vld [vmem:[#allocation8] sm:$0xff]
      %v4099 = vperm.slane %v4097, 0
      %v4100 = vperm.slane %v4097, 1
      %v4101 = vperm.slane %v4097, 2
      %v4102 = vperm.slane %v4097, 3
      %v4103 = vperm.slane %v4097, 4
      %v4104 = vperm.slane %v4097, 5
      %v4105 = vperm.slane %v4097, 6
      %v4106 = vperm.slane %v4097, 7
      %v4107 = vrot.slane %v4100, 6
      %v4108 = vrot.slane %v4101, 4
      %v4109 = vrot.slane %v4102, 2
      %v4110 = vrot.slane %v4104, 6
      %v4111 = vrot.slane %v4105, 4
      %v4112 = vrot.slane %v4106, 2
      %v4113 = vsel %vm4077, %v4099, %v4107
      %v4114 = vsel %vm4079, %v4108, %v4109
      %v4115 = vsel %vm4081, %v4113, %v4114
      %v4116 = vsel %vm4077, %v4103, %v4110
      %v4117 = vsel %vm4079, %v4111, %v4112
      %v4118 = vsel %vm4081, %v4116, %v4117
      %v4121 = vadd.f32 %v4095, %v4115
      %v4122 = vadd.f32 %v4096, %v4118
      %v4123 = vmax.f32 %v4121, 0.0
      %v4124 = vmax.f32 %v4122, 0.0
      %4127 = vst [vmem:[#allocation1] ss:$4 sm:$0xff] %v4123
      %s4128 = scalar_lea.vmem [#allocation1], 32
      %4129 = vst [vmem:[%s4128] ss:$4 sm:$0xff] %v4124
      %v4130 = vld.sshfl [vmem:[#allocation1] sm:$0xff pattern:$0x73625140]
      %v4131 = vld.sshfl [vmem:[#allocation1 + $0x8] sm:$0xff pattern:$0x73625140]
      %v4132 = vld.sshfl [vmem:[#allocation1 + $0x10] sm:$0xff pattern:$0x73625140]
      %v4133 = vld.sshfl [vmem:[#allocation1 + $0x18] sm:$0xff pattern:$0x73625140]
      %v4134 = vld.sshfl [vmem:[#allocation1 + $0x20] sm:$0xff pattern:$0x73625140]
      %v4135 = vld.sshfl [vmem:[#allocation1 + $0x28] sm:$0xff pattern:$0x73625140]
      %v4136 = vld.sshfl [vmem:[#allocation1 + $0x30] sm:$0xff pattern:$0x73625140]
      %v4137 = vld.sshfl [vmem:[#allocation1 + $0x38] sm:$0xff pattern:$0x73625140]
      %v4146 = vpack.c.bf16 %v4130, %v4130
      %v4147 = vpack.c.bf16 %v4131, %v4131
      %v4148 = vpack.c.bf16 %v4132, %v4132
      %v4149 = vpack.c.bf16 %v4133, %v4133
      %v4150 = vpack.c.bf16 %v4134, %v4134
      %v4151 = vpack.c.bf16 %v4135, %v4135
      %v4152 = vpack.c.bf16 %v4136, %v4136
      %v4153 = vpack.c.bf16 %v4137, %v4137
      %v4154 = vld [vmem:[#allocation9] sm:$0xff]
      %v4155 = vld [vmem:[#allocation9 + $0x8] sm:$0xff]
      %v4156 = vld [vmem:[#allocation9 + $0x10] sm:$0xff]
      %v4157 = vld [vmem:[#allocation9 + $0x18] sm:$0xff]
      %v4158 = vld [vmem:[#allocation9 + $0x20] sm:$0xff]
      %v4159 = vld [vmem:[#allocation9 + $0x28] sm:$0xff]
      %v4160 = vld [vmem:[#allocation9 + $0x30] sm:$0xff]
      %v4161 = vld [vmem:[#allocation9 + $0x38] sm:$0xff]
      %v4162 = vld [vmem:[#allocation9 + $0x40] sm:$0xff]
      %v4163 = vld [vmem:[#allocation9 + $0x48] sm:$0xff]
      %v4164 = vld [vmem:[#allocation9 + $0x50] sm:$0xff]
      %v4165 = vld [vmem:[#allocation9 + $0x58] sm:$0xff]
      %v4166 = vld [vmem:[#allocation9 + $0x60] sm:$0xff]
      %v4167 = vld [vmem:[#allocation9 + $0x68] sm:$0xff]
      %v4168 = vld [vmem:[#allocation9 + $0x70] sm:$0xff]
      %v4169 = vld [vmem:[#allocation9 + $0x78] sm:$0xff]
      %v4170 = vld [vmem:[#allocation9 + $0x80] sm:$0xff]
      %v4171 = vld [vmem:[#allocation9 + $0x88] sm:$0xff]
      %v4172 = vld [vmem:[#allocation9 + $0x90] sm:$0xff]
      %v4173 = vld [vmem:[#allocation9 + $0x98] sm:$0xff]
      %v4174 = vld [vmem:[#allocation9 + $0xa0] sm:$0xff]
      %v4175 = vld [vmem:[#allocation9 + $0xa8] sm:$0xff]
      %v4176 = vld [vmem:[#allocation9 + $0xb0] sm:$0xff]
      %v4177 = vld [vmem:[#allocation9 + $0xb8] sm:$0xff]
      %v4178 = vld [vmem:[#allocation9 + $0xc0] sm:$0xff]
      %v4179 = vld [vmem:[#allocation9 + $0xc8] sm:$0xff]
      %v4180 = vld [vmem:[#allocation9 + $0xd0] sm:$0xff]
      %v4181 = vld [vmem:[#allocation9 + $0xd8] sm:$0xff]
      %v4182 = vld [vmem:[#allocation9 + $0xe0] sm:$0xff]
      %v4183 = vld [vmem:[#allocation9 + $0xe8] sm:$0xff]
      %v4184 = vld [vmem:[#allocation9 + $0xf0] sm:$0xff]
      %v4185 = vld [vmem:[#allocation9 + $0xf8] sm:$0xff]
      %v4186 = vld [vmem:[#allocation9 + $0x100] sm:$0xff]
      %v4187 = vld [vmem:[#allocation9 + $0x108] sm:$0xff]
      %v4188 = vld [vmem:[#allocation9 + $0x110] sm:$0xff]
      %v4189 = vld [vmem:[#allocation9 + $0x118] sm:$0xff]
      %v4190 = vld [vmem:[#allocation9 + $0x120] sm:$0xff]
      %v4191 = vld [vmem:[#allocation9 + $0x128] sm:$0xff]
      %v4192 = vld [vmem:[#allocation9 + $0x130] sm:$0xff]
      %v4193 = vld [vmem:[#allocation9 + $0x138] sm:$0xff]
      %v4194 = vld [vmem:[#allocation9 + $0x140] sm:$0xff]
      %v4195 = vld [vmem:[#allocation9 + $0x148] sm:$0xff]
      %v4196 = vld [vmem:[#allocation9 + $0x150] sm:$0xff]
      %v4197 = vld [vmem:[#allocation9 + $0x158] sm:$0xff]
      %v4198 = vld [vmem:[#allocation9 + $0x160] sm:$0xff]
      %v4199 = vld [vmem:[#allocation9 + $0x168] sm:$0xff]
      %v4200 = vld [vmem:[#allocation9 + $0x170] sm:$0xff]
      %v4201 = vld [vmem:[#allocation9 + $0x178] sm:$0xff]
      %v4202 = vld [vmem:[#allocation9 + $0x180] sm:$0xff]
      %v4203 = vld [vmem:[#allocation9 + $0x188] sm:$0xff]
      %v4204 = vld [vmem:[#allocation9 + $0x190] sm:$0xff]
      %v4205 = vld [vmem:[#allocation9 + $0x198] sm:$0xff]
      %v4206 = vld [vmem:[#allocation9 + $0x1a0] sm:$0xff]
      %v4207 = vld [vmem:[#allocation9 + $0x1a8] sm:$0xff]
      %v4208 = vld [vmem:[#allocation9 + $0x1b0] sm:$0xff]
      %v4209 = vld [vmem:[#allocation9 + $0x1b8] sm:$0xff]
      %v4210 = vld [vmem:[#allocation9 + $0x1c0] sm:$0xff]
      %v4211 = vld [vmem:[#allocation9 + $0x1c8] sm:$0xff]
      %v4212 = vld [vmem:[#allocation9 + $0x1d0] sm:$0xff]
      %v4213 = vld [vmem:[#allocation9 + $0x1d8] sm:$0xff]
      %v4214 = vld [vmem:[#allocation9 + $0x1e0] sm:$0xff]
      %v4215 = vld [vmem:[#allocation9 + $0x1e8] sm:$0xff]
      %v4216 = vld [vmem:[#allocation9 + $0x1f0] sm:$0xff]
      %v4217 = vld [vmem:[#allocation9 + $0x1f8] sm:$0xff]
      %v4218 = vld [vmem:[#allocation9 + $0x200] sm:$0xff]
      %v4219 = vld [vmem:[#allocation9 + $0x208] sm:$0xff]
      %v4220 = vld [vmem:[#allocation9 + $0x210] sm:$0xff]
      %v4221 = vld [vmem:[#allocation9 + $0x218] sm:$0xff]
      %v4222 = vld [vmem:[#allocation9 + $0x220] sm:$0xff]
      %v4223 = vld [vmem:[#allocation9 + $0x228] sm:$0xff]
      %v4224 = vld [vmem:[#allocation9 + $0x230] sm:$0xff]
      %v4225 = vld [vmem:[#allocation9 + $0x238] sm:$0xff]
      %v4226 = vld [vmem:[#allocation9 + $0x240] sm:$0xff]
      %v4227 = vld [vmem:[#allocation9 + $0x248] sm:$0xff]
      %v4228 = vld [vmem:[#allocation9 + $0x250] sm:$0xff]
      %v4229 = vld [vmem:[#allocation9 + $0x258] sm:$0xff]
      %v4230 = vld [vmem:[#allocation9 + $0x260] sm:$0xff]
      %v4231 = vld [vmem:[#allocation9 + $0x268] sm:$0xff]
      %v4232 = vld [vmem:[#allocation9 + $0x270] sm:$0xff]
      %v4233 = vld [vmem:[#allocation9 + $0x278] sm:$0xff]
      %v4234 = vld [vmem:[#allocation9 + $0x280] sm:$0xff]
      %v4235 = vld [vmem:[#allocation9 + $0x288] sm:$0xff]
      %v4236 = vld [vmem:[#allocation9 + $0x290] sm:$0xff]
      %v4237 = vld [vmem:[#allocation9 + $0x298] sm:$0xff]
      %v4238 = vld [vmem:[#allocation9 + $0x2a0] sm:$0xff]
      %v4239 = vld [vmem:[#allocation9 + $0x2a8] sm:$0xff]
      %v4240 = vld [vmem:[#allocation9 + $0x2b0] sm:$0xff]
      %v4241 = vld [vmem:[#allocation9 + $0x2b8] sm:$0xff]
      %v4242 = vld [vmem:[#allocation9 + $0x2c0] sm:$0xff]
      %v4243 = vld [vmem:[#allocation9 + $0x2c8] sm:$0xff]
      %v4244 = vld [vmem:[#allocation9 + $0x2d0] sm:$0xff]
      %v4245 = vld [vmem:[#allocation9 + $0x2d8] sm:$0xff]
      %v4246 = vld [vmem:[#allocation9 + $0x2e0] sm:$0xff]
      %v4247 = vld [vmem:[#allocation9 + $0x2e8] sm:$0xff]
      %v4248 = vld [vmem:[#allocation9 + $0x2f0] sm:$0xff]
      %v4249 = vld [vmem:[#allocation9 + $0x2f8] sm:$0xff]
      %v4250 = vld [vmem:[#allocation9 + $0x300] sm:$0xff]
      %v4251 = vld [vmem:[#allocation9 + $0x308] sm:$0xff]
      %v4252 = vld [vmem:[#allocation9 + $0x310] sm:$0xff]
      %v4253 = vld [vmem:[#allocation9 + $0x318] sm:$0xff]
      %v4254 = vld [vmem:[#allocation9 + $0x320] sm:$0xff]
      %v4255 = vld [vmem:[#allocation9 + $0x328] sm:$0xff]
      %v4256 = vld [vmem:[#allocation9 + $0x330] sm:$0xff]
      %v4257 = vld [vmem:[#allocation9 + $0x338] sm:$0xff]
      %v4258 = vld [vmem:[#allocation9 + $0x340] sm:$0xff]
      %v4259 = vld [vmem:[#allocation9 + $0x348] sm:$0xff]
      %v4260 = vld [vmem:[#allocation9 + $0x350] sm:$0xff]
      %v4261 = vld [vmem:[#allocation9 + $0x358] sm:$0xff]
      %v4262 = vld [vmem:[#allocation9 + $0x360] sm:$0xff]
      %v4263 = vld [vmem:[#allocation9 + $0x368] sm:$0xff]
      %v4264 = vld [vmem:[#allocation9 + $0x370] sm:$0xff]
      %v4265 = vld [vmem:[#allocation9 + $0x378] sm:$0xff]
      %v4266 = vld [vmem:[#allocation9 + $0x380] sm:$0xff]
      %v4267 = vld [vmem:[#allocation9 + $0x388] sm:$0xff]
      %v4268 = vld [vmem:[#allocation9 + $0x390] sm:$0xff]
      %v4269 = vld [vmem:[#allocation9 + $0x398] sm:$0xff]
      %v4270 = vld [vmem:[#allocation9 + $0x3a0] sm:$0xff]
      %v4271 = vld [vmem:[#allocation9 + $0x3a8] sm:$0xff]
      %v4272 = vld [vmem:[#allocation9 + $0x3b0] sm:$0xff]
      %v4273 = vld [vmem:[#allocation9 + $0x3b8] sm:$0xff]
      %v4274 = vld [vmem:[#allocation9 + $0x3c0] sm:$0xff]
      %v4275 = vld [vmem:[#allocation9 + $0x3c8] sm:$0xff]
      %v4276 = vld [vmem:[#allocation9 + $0x3d0] sm:$0xff]
      %v4277 = vld [vmem:[#allocation9 + $0x3d8] sm:$0xff]
      %v4278 = vld [vmem:[#allocation9 + $0x3e0] sm:$0xff]
      %v4279 = vld [vmem:[#allocation9 + $0x3e8] sm:$0xff]
      %v4280 = vld [vmem:[#allocation9 + $0x3f0] sm:$0xff]
      %v4281 = vld [vmem:[#allocation9 + $0x3f8] sm:$0xff]
      %v4282 = vld [vmem:[#allocation11] sm:$0x3]
      %v4284 = vperm.slane %v4282, 0
      %v4285 = vperm.slane %v4282, 1
      %v4416 = vunpack.c.l.b16 %v4154
      %v4417 = vunpack.c.h.b16 %v4154
      %v4418 = vunpack.c.l.b16 %v4155
      %v4419 = vunpack.c.h.b16 %v4155
      %v4420 = vunpack.c.l.b16 %v4156
      %v4421 = vunpack.c.h.b16 %v4156
      %v4422 = vunpack.c.l.b16 %v4157
      %v4423 = vunpack.c.h.b16 %v4157
      %v4424 = vunpack.c.l.b16 %v4158
      %v4425 = vunpack.c.h.b16 %v4158
      %v4426 = vunpack.c.l.b16 %v4159
      %v4427 = vunpack.c.h.b16 %v4159
      %v4428 = vunpack.c.l.b16 %v4160
      %v4429 = vunpack.c.h.b16 %v4160
      %v4430 = vunpack.c.l.b16 %v4161
      %v4431 = vunpack.c.h.b16 %v4161
      %v4432 = vunpack.c.l.b16 %v4162
      %v4433 = vunpack.c.h.b16 %v4162
      %v4434 = vunpack.c.l.b16 %v4163
      %v4435 = vunpack.c.h.b16 %v4163
      %v4436 = vunpack.c.l.b16 %v4164
      %v4437 = vunpack.c.h.b16 %v4164
      %v4438 = vunpack.c.l.b16 %v4165
      %v4439 = vunpack.c.h.b16 %v4165
      %v4440 = vunpack.c.l.b16 %v4166
      %v4441 = vunpack.c.h.b16 %v4166
      %v4442 = vunpack.c.l.b16 %v4167
      %v4443 = vunpack.c.h.b16 %v4167
      %v4444 = vunpack.c.l.b16 %v4168
      %v4445 = vunpack.c.h.b16 %v4168
      %v4446 = vunpack.c.l.b16 %v4169
      %v4447 = vunpack.c.h.b16 %v4169
      %v4448 = vunpack.c.l.b16 %v4170
      %v4449 = vunpack.c.h.b16 %v4170
      %v4450 = vunpack.c.l.b16 %v4171
      %v4451 = vunpack.c.h.b16 %v4171
      %v4452 = vunpack.c.l.b16 %v4172
      %v4453 = vunpack.c.h.b16 %v4172
      %v4454 = vunpack.c.l.b16 %v4173
      %v4455 = vunpack.c.h.b16 %v4173
      %v4456 = vunpack.c.l.b16 %v4174
      %v4457 = vunpack.c.h.b16 %v4174
      %v4458 = vunpack.c.l.b16 %v4175
      %v4459 = vunpack.c.h.b16 %v4175
      %v4460 = vunpack.c.l.b16 %v4176
      %v4461 = vunpack.c.h.b16 %v4176
      %v4462 = vunpack.c.l.b16 %v4177
      %v4463 = vunpack.c.h.b16 %v4177
      %v4464 = vunpack.c.l.b16 %v4178
      %v4465 = vunpack.c.h.b16 %v4178
      %v4466 = vunpack.c.l.b16 %v4179
      %v4467 = vunpack.c.h.b16 %v4179
      %v4468 = vunpack.c.l.b16 %v4180
      %v4469 = vunpack.c.h.b16 %v4180
      %v4470 = vunpack.c.l.b16 %v4181
      %v4471 = vunpack.c.h.b16 %v4181
      %v4472 = vunpack.c.l.b16 %v4182
      %v4473 = vunpack.c.h.b16 %v4182
      %v4474 = vunpack.c.l.b16 %v4183
      %v4475 = vunpack.c.h.b16 %v4183
      %v4476 = vunpack.c.l.b16 %v4184
      %v4477 = vunpack.c.h.b16 %v4184
      %v4478 = vunpack.c.l.b16 %v4185
      %v4479 = vunpack.c.h.b16 %v4185
      %v4480 = vunpack.c.l.b16 %v4186
      %v4481 = vunpack.c.h.b16 %v4186
      %v4482 = vunpack.c.l.b16 %v4187
      %v4483 = vunpack.c.h.b16 %v4187
      %v4484 = vunpack.c.l.b16 %v4188
      %v4485 = vunpack.c.h.b16 %v4188
      %v4486 = vunpack.c.l.b16 %v4189
      %v4487 = vunpack.c.h.b16 %v4189
      %v4488 = vunpack.c.l.b16 %v4190
      %v4489 = vunpack.c.h.b16 %v4190
      %v4490 = vunpack.c.l.b16 %v4191
      %v4491 = vunpack.c.h.b16 %v4191
      %v4492 = vunpack.c.l.b16 %v4192
      %v4493 = vunpack.c.h.b16 %v4192
      %v4494 = vunpack.c.l.b16 %v4193
      %v4495 = vunpack.c.h.b16 %v4193
      %v4496 = vunpack.c.l.b16 %v4194
      %v4497 = vunpack.c.h.b16 %v4194
      %v4498 = vunpack.c.l.b16 %v4195
      %v4499 = vunpack.c.h.b16 %v4195
      %v4500 = vunpack.c.l.b16 %v4196
      %v4501 = vunpack.c.h.b16 %v4196
      %v4502 = vunpack.c.l.b16 %v4197
      %v4503 = vunpack.c.h.b16 %v4197
      %v4504 = vunpack.c.l.b16 %v4198
      %v4505 = vunpack.c.h.b16 %v4198
      %v4506 = vunpack.c.l.b16 %v4199
      %v4507 = vunpack.c.h.b16 %v4199
      %v4508 = vunpack.c.l.b16 %v4200
      %v4509 = vunpack.c.h.b16 %v4200
      %v4510 = vunpack.c.l.b16 %v4201
      %v4511 = vunpack.c.h.b16 %v4201
      %v4512 = vunpack.c.l.b16 %v4202
      %v4513 = vunpack.c.h.b16 %v4202
      %v4514 = vunpack.c.l.b16 %v4203
      %v4515 = vunpack.c.h.b16 %v4203
      %v4516 = vunpack.c.l.b16 %v4204
      %v4517 = vunpack.c.h.b16 %v4204
      %v4518 = vunpack.c.l.b16 %v4205
      %v4519 = vunpack.c.h.b16 %v4205
      %v4520 = vunpack.c.l.b16 %v4206
      %v4521 = vunpack.c.h.b16 %v4206
      %v4522 = vunpack.c.l.b16 %v4207
      %v4523 = vunpack.c.h.b16 %v4207
      %v4524 = vunpack.c.l.b16 %v4208
      %v4525 = vunpack.c.h.b16 %v4208
      %v4526 = vunpack.c.l.b16 %v4209
      %v4527 = vunpack.c.h.b16 %v4209
      %v4528 = vunpack.c.l.b16 %v4210
      %v4529 = vunpack.c.h.b16 %v4210
      %v4530 = vunpack.c.l.b16 %v4211
      %v4531 = vunpack.c.h.b16 %v4211
      %v4532 = vunpack.c.l.b16 %v4212
      %v4533 = vunpack.c.h.b16 %v4212
      %v4534 = vunpack.c.l.b16 %v4213
      %v4535 = vunpack.c.h.b16 %v4213
      %v4536 = vunpack.c.l.b16 %v4214
      %v4537 = vunpack.c.h.b16 %v4214
      %v4538 = vunpack.c.l.b16 %v4215
      %v4539 = vunpack.c.h.b16 %v4215
      %v4540 = vunpack.c.l.b16 %v4216
      %v4541 = vunpack.c.h.b16 %v4216
      %v4542 = vunpack.c.l.b16 %v4217
      %v4543 = vunpack.c.h.b16 %v4217
      %v4544 = vunpack.c.l.b16 %v4218
      %v4545 = vunpack.c.h.b16 %v4218
      %v4546 = vunpack.c.l.b16 %v4219
      %v4547 = vunpack.c.h.b16 %v4219
      %v4548 = vunpack.c.l.b16 %v4220
      %v4549 = vunpack.c.h.b16 %v4220
      %v4550 = vunpack.c.l.b16 %v4221
      %v4551 = vunpack.c.h.b16 %v4221
      %v4552 = vunpack.c.l.b16 %v4222
      %v4553 = vunpack.c.h.b16 %v4222
      %v4554 = vunpack.c.l.b16 %v4223
      %v4555 = vunpack.c.h.b16 %v4223
      %v4556 = vunpack.c.l.b16 %v4224
      %v4557 = vunpack.c.h.b16 %v4224
      %v4558 = vunpack.c.l.b16 %v4225
      %v4559 = vunpack.c.h.b16 %v4225
      %v4560 = vunpack.c.l.b16 %v4226
      %v4561 = vunpack.c.h.b16 %v4226
      %v4562 = vunpack.c.l.b16 %v4227
      %v4563 = vunpack.c.h.b16 %v4227
      %v4564 = vunpack.c.l.b16 %v4228
      %v4565 = vunpack.c.h.b16 %v4228
      %v4566 = vunpack.c.l.b16 %v4229
      %v4567 = vunpack.c.h.b16 %v4229
      %v4568 = vunpack.c.l.b16 %v4230
      %v4569 = vunpack.c.h.b16 %v4230
      %v4570 = vunpack.c.l.b16 %v4231
      %v4571 = vunpack.c.h.b16 %v4231
      %v4572 = vunpack.c.l.b16 %v4232
      %v4573 = vunpack.c.h.b16 %v4232
      %v4574 = vunpack.c.l.b16 %v4233
      %v4575 = vunpack.c.h.b16 %v4233
      %v4576 = vunpack.c.l.b16 %v4234
      %v4577 = vunpack.c.h.b16 %v4234
      %v4578 = vunpack.c.l.b16 %v4235
      %v4579 = vunpack.c.h.b16 %v4235
      %v4580 = vunpack.c.l.b16 %v4236
      %v4581 = vunpack.c.h.b16 %v4236
      %v4582 = vunpack.c.l.b16 %v4237
      %v4583 = vunpack.c.h.b16 %v4237
      %v4584 = vunpack.c.l.b16 %v4238
      %v4585 = vunpack.c.h.b16 %v4238
      %v4586 = vunpack.c.l.b16 %v4239
      %v4587 = vunpack.c.h.b16 %v4239
      %v4588 = vunpack.c.l.b16 %v4240
      %v4589 = vunpack.c.h.b16 %v4240
      %v4590 = vunpack.c.l.b16 %v4241
      %v4591 = vunpack.c.h.b16 %v4241
      %v4592 = vunpack.c.l.b16 %v4242
      %v4593 = vunpack.c.h.b16 %v4242
      %v4594 = vunpack.c.l.b16 %v4243
      %v4595 = vunpack.c.h.b16 %v4243
      %v4596 = vunpack.c.l.b16 %v4244
      %v4597 = vunpack.c.h.b16 %v4244
      %v4598 = vunpack.c.l.b16 %v4245
      %v4599 = vunpack.c.h.b16 %v4245
      %v4600 = vunpack.c.l.b16 %v4246
      %v4601 = vunpack.c.h.b16 %v4246
      %v4602 = vunpack.c.l.b16 %v4247
      %v4603 = vunpack.c.h.b16 %v4247
      %v4604 = vunpack.c.l.b16 %v4248
      %v4605 = vunpack.c.h.b16 %v4248
      %v4606 = vunpack.c.l.b16 %v4249
      %v4607 = vunpack.c.h.b16 %v4249
      %v4608 = vunpack.c.l.b16 %v4250
      %v4609 = vunpack.c.h.b16 %v4250
      %v4610 = vunpack.c.l.b16 %v4251
      %v4611 = vunpack.c.h.b16 %v4251
      %v4612 = vunpack.c.l.b16 %v4252
      %v4613 = vunpack.c.h.b16 %v4252
      %v4614 = vunpack.c.l.b16 %v4253
      %v4615 = vunpack.c.h.b16 %v4253
      %v4616 = vunpack.c.l.b16 %v4254
      %v4617 = vunpack.c.h.b16 %v4254
      %v4618 = vunpack.c.l.b16 %v4255
      %v4619 = vunpack.c.h.b16 %v4255
      %v4620 = vunpack.c.l.b16 %v4256
      %v4621 = vunpack.c.h.b16 %v4256
      %v4622 = vunpack.c.l.b16 %v4257
      %v4623 = vunpack.c.h.b16 %v4257
      %v4624 = vunpack.c.l.b16 %v4258
      %v4625 = vunpack.c.h.b16 %v4258
      %v4626 = vunpack.c.l.b16 %v4259
      %v4627 = vunpack.c.h.b16 %v4259
      %v4628 = vunpack.c.l.b16 %v4260
      %v4629 = vunpack.c.h.b16 %v4260
      %v4630 = vunpack.c.l.b16 %v4261
      %v4631 = vunpack.c.h.b16 %v4261
      %v4632 = vunpack.c.l.b16 %v4262
      %v4633 = vunpack.c.h.b16 %v4262
      %v4634 = vunpack.c.l.b16 %v4263
      %v4635 = vunpack.c.h.b16 %v4263
      %v4636 = vunpack.c.l.b16 %v4264
      %v4637 = vunpack.c.h.b16 %v4264
      %v4638 = vunpack.c.l.b16 %v4265
      %v4639 = vunpack.c.h.b16 %v4265
      %v4640 = vunpack.c.l.b16 %v4266
      %v4641 = vunpack.c.h.b16 %v4266
      %v4642 = vunpack.c.l.b16 %v4267
      %v4643 = vunpack.c.h.b16 %v4267
      %v4644 = vunpack.c.l.b16 %v4268
      %v4645 = vunpack.c.h.b16 %v4268
      %v4646 = vunpack.c.l.b16 %v4269
      %v4647 = vunpack.c.h.b16 %v4269
      %v4648 = vunpack.c.l.b16 %v4270
      %v4649 = vunpack.c.h.b16 %v4270
      %v4650 = vunpack.c.l.b16 %v4271
      %v4651 = vunpack.c.h.b16 %v4271
      %v4652 = vunpack.c.l.b16 %v4272
      %v4653 = vunpack.c.h.b16 %v4272
      %v4654 = vunpack.c.l.b16 %v4273
      %v4655 = vunpack.c.h.b16 %v4273
      %v4656 = vunpack.c.l.b16 %v4274
      %v4657 = vunpack.c.h.b16 %v4274
      %v4658 = vunpack.c.l.b16 %v4275
      %v4659 = vunpack.c.h.b16 %v4275
      %v4660 = vunpack.c.l.b16 %v4276
      %v4661 = vunpack.c.h.b16 %v4276
      %v4662 = vunpack.c.l.b16 %v4277
      %v4663 = vunpack.c.h.b16 %v4277
      %v4664 = vunpack.c.l.b16 %v4278
      %v4665 = vunpack.c.h.b16 %v4278
      %v4666 = vunpack.c.l.b16 %v4279
      %v4667 = vunpack.c.h.b16 %v4279
      %v4668 = vunpack.c.l.b16 %v4280
      %v4669 = vunpack.c.h.b16 %v4280
      %v4670 = vunpack.c.l.b16 %v4281
      %v4671 = vunpack.c.h.b16 %v4281
      %v4672 = vpack.c.b16 %v4418, %v4416
      %v4673 = vpack.c.b16 %v4419, %v4417
      %v4674 = vpack.c.b16 %v4422, %v4420
      %v4675 = vpack.c.b16 %v4423, %v4421
      %v4676 = vpack.c.b16 %v4426, %v4424
      %v4677 = vpack.c.b16 %v4427, %v4425
      %v4678 = vpack.c.b16 %v4430, %v4428
      %v4679 = vpack.c.b16 %v4431, %v4429
      %v4680 = vpack.c.b16 %v4434, %v4432
      %v4681 = vpack.c.b16 %v4435, %v4433
      %v4682 = vpack.c.b16 %v4438, %v4436
      %v4683 = vpack.c.b16 %v4439, %v4437
      %v4684 = vpack.c.b16 %v4442, %v4440
      %v4685 = vpack.c.b16 %v4443, %v4441
      %v4686 = vpack.c.b16 %v4446, %v4444
      %v4687 = vpack.c.b16 %v4447, %v4445
      %v4688 = vpack.c.b16 %v4450, %v4448
      %v4689 = vpack.c.b16 %v4451, %v4449
      %v4690 = vpack.c.b16 %v4454, %v4452
      %v4691 = vpack.c.b16 %v4455, %v4453
      %v4692 = vpack.c.b16 %v4458, %v4456
      %v4693 = vpack.c.b16 %v4459, %v4457
      %v4694 = vpack.c.b16 %v4462, %v4460
      %v4695 = vpack.c.b16 %v4463, %v4461
      %v4696 = vpack.c.b16 %v4466, %v4464
      %v4697 = vpack.c.b16 %v4467, %v4465
      %v4698 = vpack.c.b16 %v4470, %v4468
      %v4699 = vpack.c.b16 %v4471, %v4469
      %v4700 = vpack.c.b16 %v4474, %v4472
      %v4701 = vpack.c.b16 %v4475, %v4473
      %v4702 = vpack.c.b16 %v4478, %v4476
      %v4703 = vpack.c.b16 %v4479, %v4477
      %v4704 = vpack.c.b16 %v4482, %v4480
      %v4705 = vpack.c.b16 %v4483, %v4481
      %v4706 = vpack.c.b16 %v4486, %v4484
      %v4707 = vpack.c.b16 %v4487, %v4485
      %v4708 = vpack.c.b16 %v4490, %v4488
      %v4709 = vpack.c.b16 %v4491, %v4489
      %v4710 = vpack.c.b16 %v4494, %v4492
      %v4711 = vpack.c.b16 %v4495, %v4493
      %v4712 = vpack.c.b16 %v4498, %v4496
      %v4713 = vpack.c.b16 %v4499, %v4497
      %v4714 = vpack.c.b16 %v4502, %v4500
      %v4715 = vpack.c.b16 %v4503, %v4501
      %v4716 = vpack.c.b16 %v4506, %v4504
      %v4717 = vpack.c.b16 %v4507, %v4505
      %v4718 = vpack.c.b16 %v4510, %v4508
      %v4719 = vpack.c.b16 %v4511, %v4509
      %v4720 = vpack.c.b16 %v4514, %v4512
      %v4721 = vpack.c.b16 %v4515, %v4513
      %v4722 = vpack.c.b16 %v4518, %v4516
      %v4723 = vpack.c.b16 %v4519, %v4517
      %v4724 = vpack.c.b16 %v4522, %v4520
      %v4725 = vpack.c.b16 %v4523, %v4521
      %v4726 = vpack.c.b16 %v4526, %v4524
      %v4727 = vpack.c.b16 %v4527, %v4525
      %v4728 = vpack.c.b16 %v4530, %v4528
      %v4729 = vpack.c.b16 %v4531, %v4529
      %v4730 = vpack.c.b16 %v4534, %v4532
      %v4731 = vpack.c.b16 %v4535, %v4533
      %v4732 = vpack.c.b16 %v4538, %v4536
      %v4733 = vpack.c.b16 %v4539, %v4537
      %v4734 = vpack.c.b16 %v4542, %v4540
      %v4735 = vpack.c.b16 %v4543, %v4541
      %v4736 = vpack.c.b16 %v4546, %v4544
      %v4737 = vpack.c.b16 %v4547, %v4545
      %v4738 = vpack.c.b16 %v4550, %v4548
      %v4739 = vpack.c.b16 %v4551, %v4549
      %v4740 = vpack.c.b16 %v4554, %v4552
      %v4741 = vpack.c.b16 %v4555, %v4553
      %v4742 = vpack.c.b16 %v4558, %v4556
      %v4743 = vpack.c.b16 %v4559, %v4557
      %v4744 = vpack.c.b16 %v4562, %v4560
      %v4745 = vpack.c.b16 %v4563, %v4561
      %v4746 = vpack.c.b16 %v4566, %v4564
      %v4747 = vpack.c.b16 %v4567, %v4565
      %v4748 = vpack.c.b16 %v4570, %v4568
      %v4749 = vpack.c.b16 %v4571, %v4569
      %v4750 = vpack.c.b16 %v4574, %v4572
      %v4751 = vpack.c.b16 %v4575, %v4573
      %v4752 = vpack.c.b16 %v4578, %v4576
      %v4753 = vpack.c.b16 %v4579, %v4577
      %v4754 = vpack.c.b16 %v4582, %v4580
      %v4755 = vpack.c.b16 %v4583, %v4581
      %v4756 = vpack.c.b16 %v4586, %v4584
      %v4757 = vpack.c.b16 %v4587, %v4585
      %v4758 = vpack.c.b16 %v4590, %v4588
      %v4759 = vpack.c.b16 %v4591, %v4589
      %v4760 = vpack.c.b16 %v4594, %v4592
      %v4761 = vpack.c.b16 %v4595, %v4593
      %v4762 = vpack.c.b16 %v4598, %v4596
      %v4763 = vpack.c.b16 %v4599, %v4597
      %v4764 = vpack.c.b16 %v4602, %v4600
      %v4765 = vpack.c.b16 %v4603, %v4601
      %v4766 = vpack.c.b16 %v4606, %v4604
      %v4767 = vpack.c.b16 %v4607, %v4605
      %v4768 = vpack.c.b16 %v4610, %v4608
      %v4769 = vpack.c.b16 %v4611, %v4609
      %v4770 = vpack.c.b16 %v4614, %v4612
      %v4771 = vpack.c.b16 %v4615, %v4613
      %v4772 = vpack.c.b16 %v4618, %v4616
      %v4773 = vpack.c.b16 %v4619, %v4617
      %v4774 = vpack.c.b16 %v4622, %v4620
      %v4775 = vpack.c.b16 %v4623, %v4621
      %v4776 = vpack.c.b16 %v4626, %v4624
      %v4777 = vpack.c.b16 %v4627, %v4625
      %v4778 = vpack.c.b16 %v4630, %v4628
      %v4779 = vpack.c.b16 %v4631, %v4629
      %v4780 = vpack.c.b16 %v4634, %v4632
      %v4781 = vpack.c.b16 %v4635, %v4633
      %v4782 = vpack.c.b16 %v4638, %v4636
      %v4783 = vpack.c.b16 %v4639, %v4637
      %v4784 = vpack.c.b16 %v4642, %v4640
      %v4785 = vpack.c.b16 %v4643, %v4641
      %v4786 = vpack.c.b16 %v4646, %v4644
      %v4787 = vpack.c.b16 %v4647, %v4645
      %v4788 = vpack.c.b16 %v4650, %v4648
      %v4789 = vpack.c.b16 %v4651, %v4649
      %v4790 = vpack.c.b16 %v4654, %v4652
      %v4791 = vpack.c.b16 %v4655, %v4653
      %v4792 = vpack.c.b16 %v4658, %v4656
      %v4793 = vpack.c.b16 %v4659, %v4657
      %v4794 = vpack.c.b16 %v4662, %v4660
      %v4795 = vpack.c.b16 %v4663, %v4661
      %v4796 = vpack.c.b16 %v4666, %v4664
      %v4797 = vpack.c.b16 %v4667, %v4665
      %v4798 = vpack.c.b16 %v4670, %v4668
      %v4799 = vpack.c.b16 %v4671, %v4669
      %4928 = vmatpush.bf16.msra.mxu0 %v4686
      %4929 = vmatpush.bf16.msra.mxu0 %v4684
      %4930 = vmatpush.bf16.msra.mxu0 %v4682
      %4931 = vmatpush.bf16.msra.mxu0 %v4680
      %4932 = vmatpush.bf16.msra.mxu0 %v4678
      %4933 = vmatpush.bf16.msra.mxu0 %v4676
      %4934 = vmatpush.bf16.msra.mxu0 %v4674
      %4935 = vmatpush.bf16.msra.mxu0 %v4672
      %4936 = vmatmul.bf16.gmra.mxu0 %v4146
      %v4937 = vpop.f32.mrf.mxu0
      %v4938 = vadd.f32 %v4284, %v4937
      %v4939 = vpop.f32.mrf.mxu0
      %4940 = vdwg.mxu0
      %4941 = vmatpush.bf16.msra.mxu0 %v4702
      %4942 = vmatpush.bf16.msra.mxu0 %v4700
      %4943 = vmatpush.bf16.msra.mxu0 %v4698
      %4944 = vmatpush.bf16.msra.mxu0 %v4696
      %4945 = vmatpush.bf16.msra.mxu0 %v4694
      %4946 = vmatpush.bf16.msra.mxu0 %v4692
      %4947 = vmatpush.bf16.msra.mxu0 %v4690
      %4948 = vmatpush.bf16.msra.mxu0 %v4688
      %4949 = vmatmul.bf16.gmra.mxu0 %v4147
      %v4950 = vpop.f32.mrf.mxu0
      %v4951 = vadd.f32 %v4938, %v4950
      %v4952 = vpop.f32.mrf.mxu0
      %4953 = vdwg.mxu0
      %4954 = vmatpush.bf16.msra.mxu0 %v4718
      %4955 = vmatpush.bf16.msra.mxu0 %v4716
      %4956 = vmatpush.bf16.msra.mxu0 %v4714
      %4957 = vmatpush.bf16.msra.mxu0 %v4712
      %4958 = vmatpush.bf16.msra.mxu0 %v4710
      %4959 = vmatpush.bf16.msra.mxu0 %v4708
      %4960 = vmatpush.bf16.msra.mxu0 %v4706
      %4961 = vmatpush.bf16.msra.mxu0 %v4704
      %4962 = vmatmul.bf16.gmra.mxu0 %v4148
      %v4963 = vpop.f32.mrf.mxu0
      %v4964 = vadd.f32 %v4951, %v4963
      %v4965 = vpop.f32.mrf.mxu0
      %4966 = vdwg.mxu0
      %4967 = vmatpush.bf16.msra.mxu0 %v4734
      %4968 = vmatpush.bf16.msra.mxu0 %v4732
      %4969 = vmatpush.bf16.msra.mxu0 %v4730
      %4970 = vmatpush.bf16.msra.mxu0 %v4728
      %4971 = vmatpush.bf16.msra.mxu0 %v4726
      %4972 = vmatpush.bf16.msra.mxu0 %v4724
      %4973 = vmatpush.bf16.msra.mxu0 %v4722
      %4974 = vmatpush.bf16.msra.mxu0 %v4720
      %4975 = vmatmul.bf16.gmra.mxu0 %v4149
      %v4976 = vpop.f32.mrf.mxu0
      %v4977 = vadd.f32 %v4964, %v4976
      %v4978 = vpop.f32.mrf.mxu0
      %4979 = vdwg.mxu0
      %4980 = vmatpush.bf16.msra.mxu0 %v4750
      %4981 = vmatpush.bf16.msra.mxu0 %v4748
      %4982 = vmatpush.bf16.msra.mxu0 %v4746
      %4983 = vmatpush.bf16.msra.mxu0 %v4744
      %4984 = vmatpush.bf16.msra.mxu0 %v4742
      %4985 = vmatpush.bf16.msra.mxu0 %v4740
      %4986 = vmatpush.bf16.msra.mxu0 %v4738
      %4987 = vmatpush.bf16.msra.mxu0 %v4736
      %4988 = vmatmul.bf16.gmra.mxu0 %v4150
      %v4989 = vpop.f32.mrf.mxu0
      %v4990 = vadd.f32 %v4977, %v4989
      %v4991 = vpop.f32.mrf.mxu0
      %4992 = vdwg.mxu0
      %4993 = vmatpush.bf16.msra.mxu0 %v4766
      %4994 = vmatpush.bf16.msra.mxu0 %v4764
      %4995 = vmatpush.bf16.msra.mxu0 %v4762
      %4996 = vmatpush.bf16.msra.mxu0 %v4760
      %4997 = vmatpush.bf16.msra.mxu0 %v4758
      %4998 = vmatpush.bf16.msra.mxu0 %v4756
      %4999 = vmatpush.bf16.msra.mxu0 %v4754
      %5000 = vmatpush.bf16.msra.mxu0 %v4752
      %5001 = vmatmul.bf16.gmra.mxu0 %v4151
      %v5002 = vpop.f32.mrf.mxu0
      %v5003 = vadd.f32 %v4990, %v5002
      %v5004 = vpop.f32.mrf.mxu0
      %5005 = vdwg.mxu0
      %5006 = vmatpush.bf16.msra.mxu0 %v4782
      %5007 = vmatpush.bf16.msra.mxu0 %v4780
      %5008 = vmatpush.bf16.msra.mxu0 %v4778
      %5009 = vmatpush.bf16.msra.mxu0 %v4776
      %5010 = vmatpush.bf16.msra.mxu0 %v4774
      %5011 = vmatpush.bf16.msra.mxu0 %v4772
      %5012 = vmatpush.bf16.msra.mxu0 %v4770
      %5013 = vmatpush.bf16.msra.mxu0 %v4768
      %5014 = vmatmul.bf16.gmra.mxu0 %v4152
      %v5015 = vpop.f32.mrf.mxu0
      %v5016 = vadd.f32 %v5003, %v5015
      %v5017 = vpop.f32.mrf.mxu0
      %5018 = vdwg.mxu0
      %5019 = vmatpush.bf16.msra.mxu0 %v4798
      %5020 = vmatpush.bf16.msra.mxu0 %v4796
      %5021 = vmatpush.bf16.msra.mxu0 %v4794
      %5022 = vmatpush.bf16.msra.mxu0 %v4792
      %5023 = vmatpush.bf16.msra.mxu0 %v4790
      %5024 = vmatpush.bf16.msra.mxu0 %v4788
      %5025 = vmatpush.bf16.msra.mxu0 %v4786
      %5026 = vmatpush.bf16.msra.mxu0 %v4784
      %5027 = vmatmul.bf16.gmra.mxu0 %v4153
      %v5028 = vpop.f32.mrf.mxu0
      %v5029 = vadd.f32 %v5016, %v5028
      %v5030 = vpop.f32.mrf.mxu0
      %5031 = vdwg.mxu0
      %5032 = vmatpush.bf16.msra.mxu0 %v4687
      %5033 = vmatpush.bf16.msra.mxu0 %v4685
      %5034 = vmatpush.bf16.msra.mxu0 %v4683
      %5035 = vmatpush.bf16.msra.mxu0 %v4681
      %5036 = vmatpush.bf16.msra.mxu0 %v4679
      %5037 = vmatpush.bf16.msra.mxu0 %v4677
      %5038 = vmatpush.bf16.msra.mxu0 %v4675
      %5039 = vmatpush.bf16.msra.mxu0 %v4673
      %5040 = vmatmul.bf16.gmra.mxu0 %v4146
      %v5041 = vpop.f32.mrf.mxu0
      %v5042 = vadd.f32 %v4285, %v5041
      %v5043 = vpop.f32.mrf.mxu0
      %5044 = vdwg.mxu0
      %5045 = vmatpush.bf16.msra.mxu0 %v4703
      %5046 = vmatpush.bf16.msra.mxu0 %v4701
      %5047 = vmatpush.bf16.msra.mxu0 %v4699
      %5048 = vmatpush.bf16.msra.mxu0 %v4697
      %5049 = vmatpush.bf16.msra.mxu0 %v4695
      %5050 = vmatpush.bf16.msra.mxu0 %v4693
      %5051 = vmatpush.bf16.msra.mxu0 %v4691
      %5052 = vmatpush.bf16.msra.mxu0 %v4689
      %5053 = vmatmul.bf16.gmra.mxu0 %v4147
      %v5054 = vpop.f32.mrf.mxu0
      %v5055 = vadd.f32 %v5042, %v5054
      %v5056 = vpop.f32.mrf.mxu0
      %5057 = vdwg.mxu0
      %5058 = vmatpush.bf16.msra.mxu0 %v4719
      %5059 = vmatpush.bf16.msra.mxu0 %v4717
      %5060 = vmatpush.bf16.msra.mxu0 %v4715
      %5061 = vmatpush.bf16.msra.mxu0 %v4713
      %5062 = vmatpush.bf16.msra.mxu0 %v4711
      %5063 = vmatpush.bf16.msra.mxu0 %v4709
      %5064 = vmatpush.bf16.msra.mxu0 %v4707
      %5065 = vmatpush.bf16.msra.mxu0 %v4705
      %5066 = vmatmul.bf16.gmra.mxu0 %v4148
      %v5067 = vpop.f32.mrf.mxu0
      %v5068 = vadd.f32 %v5055, %v5067
      %v5069 = vpop.f32.mrf.mxu0
      %5070 = vdwg.mxu0
      %5071 = vmatpush.bf16.msra.mxu0 %v4735
      %5072 = vmatpush.bf16.msra.mxu0 %v4733
      %5073 = vmatpush.bf16.msra.mxu0 %v4731
      %5074 = vmatpush.bf16.msra.mxu0 %v4729
      %5075 = vmatpush.bf16.msra.mxu0 %v4727
      %5076 = vmatpush.bf16.msra.mxu0 %v4725
      %5077 = vmatpush.bf16.msra.mxu0 %v4723
      %5078 = vmatpush.bf16.msra.mxu0 %v4721
      %5079 = vmatmul.bf16.gmra.mxu0 %v4149
      %v5080 = vpop.f32.mrf.mxu0
      %v5081 = vadd.f32 %v5068, %v5080
      %v5082 = vpop.f32.mrf.mxu0
      %5083 = vdwg.mxu0
      %5084 = vmatpush.bf16.msra.mxu0 %v4751
      %5085 = vmatpush.bf16.msra.mxu0 %v4749
      %5086 = vmatpush.bf16.msra.mxu0 %v4747
      %5087 = vmatpush.bf16.msra.mxu0 %v4745
      %5088 = vmatpush.bf16.msra.mxu0 %v4743
      %5089 = vmatpush.bf16.msra.mxu0 %v4741
      %5090 = vmatpush.bf16.msra.mxu0 %v4739
      %5091 = vmatpush.bf16.msra.mxu0 %v4737
      %5092 = vmatmul.bf16.gmra.mxu0 %v4150
      %v5093 = vpop.f32.mrf.mxu0
      %v5094 = vadd.f32 %v5081, %v5093
      %v5095 = vpop.f32.mrf.mxu0
      %5096 = vdwg.mxu0
      %5097 = vmatpush.bf16.msra.mxu0 %v4767
      %5098 = vmatpush.bf16.msra.mxu0 %v4765
      %5099 = vmatpush.bf16.msra.mxu0 %v4763
      %5100 = vmatpush.bf16.msra.mxu0 %v4761
      %5101 = vmatpush.bf16.msra.mxu0 %v4759
      %5102 = vmatpush.bf16.msra.mxu0 %v4757
      %5103 = vmatpush.bf16.msra.mxu0 %v4755
      %5104 = vmatpush.bf16.msra.mxu0 %v4753
      %5105 = vmatmul.bf16.gmra.mxu0 %v4151
      %v5106 = vpop.f32.mrf.mxu0
      %v5107 = vadd.f32 %v5094, %v5106
      %v5108 = vpop.f32.mrf.mxu0
      %5109 = vdwg.mxu0
      %5110 = vmatpush.bf16.msra.mxu0 %v4783
      %5111 = vmatpush.bf16.msra.mxu0 %v4781
      %5112 = vmatpush.bf16.msra.mxu0 %v4779
      %5113 = vmatpush.bf16.msra.mxu0 %v4777
      %5114 = vmatpush.bf16.msra.mxu0 %v4775
      %5115 = vmatpush.bf16.msra.mxu0 %v4773
      %5116 = vmatpush.bf16.msra.mxu0 %v4771
      %5117 = vmatpush.bf16.msra.mxu0 %v4769
      %5118 = vmatmul.bf16.gmra.mxu0 %v4152
      %v5119 = vpop.f32.mrf.mxu0
      %v5120 = vadd.f32 %v5107, %v5119
      %v5121 = vpop.f32.mrf.mxu0
      %5122 = vdwg.mxu0
      %5123 = vmatpush.bf16.msra.mxu0 %v4799
      %5124 = vmatpush.bf16.msra.mxu0 %v4797
      %5125 = vmatpush.bf16.msra.mxu0 %v4795
      %5126 = vmatpush.bf16.msra.mxu0 %v4793
      %5127 = vmatpush.bf16.msra.mxu0 %v4791
      %5128 = vmatpush.bf16.msra.mxu0 %v4789
      %5129 = vmatpush.bf16.msra.mxu0 %v4787
      %5130 = vmatpush.bf16.msra.mxu0 %v4785
      %5131 = vmatmul.bf16.gmra.mxu0 %v4153
      %v5132 = vpop.f32.mrf.mxu0
      %v5133 = vadd.f32 %v5120, %v5132
      %v5134 = vpop.f32.mrf.mxu0
      %5135 = vdwg.mxu0
      %v5136 = vmax.f32 %v5029, 0.0
      %v5137 = vmax.f32 %v5133, 0.0
      %v5138 = vpack.c.bf16 %v5136, %v5136
      %v5139 = vpack.c.bf16 %v5137, %v5137
      %v5140 = vld [vmem:[#allocation12] sm:$0xff]
      %v5141 = vld [vmem:[#allocation12 + $0x8] sm:$0xff]
      %v5142 = vld [vmem:[#allocation12 + $0x10] sm:$0xff]
      %v5143 = vld [vmem:[#allocation12 + $0x18] sm:$0xff]
      %v5144 = vld [vmem:[#allocation12 + $0x20] sm:$0xff]
      %v5145 = vld [vmem:[#allocation12 + $0x28] sm:$0xff]
      %v5146 = vld [vmem:[#allocation12 + $0x30] sm:$0xff]
      %v5147 = vld [vmem:[#allocation12 + $0x38] sm:$0xff]
      %v5148 = vld [vmem:[#allocation12 + $0x40] sm:$0xff]
      %v5149 = vld [vmem:[#allocation12 + $0x48] sm:$0xff]
      %v5150 = vld [vmem:[#allocation12 + $0x50] sm:$0xff]
      %v5151 = vld [vmem:[#allocation12 + $0x58] sm:$0xff]
      %v5152 = vld [vmem:[#allocation12 + $0x60] sm:$0xff]
      %v5153 = vld [vmem:[#allocation12 + $0x68] sm:$0xff]
      %v5154 = vld [vmem:[#allocation12 + $0x70] sm:$0xff]
      %v5155 = vld [vmem:[#allocation12 + $0x78] sm:$0xff]
      %v5156 = vld [vmem:[#allocation12 + $0x80] sm:$0xff]
      %v5157 = vld [vmem:[#allocation12 + $0x88] sm:$0xff]
      %v5158 = vld [vmem:[#allocation12 + $0x90] sm:$0xff]
      %v5159 = vld [vmem:[#allocation12 + $0x98] sm:$0xff]
      %v5160 = vld [vmem:[#allocation12 + $0xa0] sm:$0xff]
      %v5161 = vld [vmem:[#allocation12 + $0xa8] sm:$0xff]
      %v5162 = vld [vmem:[#allocation12 + $0xb0] sm:$0xff]
      %v5163 = vld [vmem:[#allocation12 + $0xb8] sm:$0xff]
      %v5164 = vld [vmem:[#allocation12 + $0xc0] sm:$0xff]
      %v5165 = vld [vmem:[#allocation12 + $0xc8] sm:$0xff]
      %v5166 = vld [vmem:[#allocation12 + $0xd0] sm:$0xff]
      %v5167 = vld [vmem:[#allocation12 + $0xd8] sm:$0xff]
      %v5168 = vld [vmem:[#allocation12 + $0xe0] sm:$0xff]
      %v5169 = vld [vmem:[#allocation12 + $0xe8] sm:$0xff]
      %v5170 = vld [vmem:[#allocation12 + $0xf0] sm:$0xff]
      %v5171 = vld [vmem:[#allocation12 + $0xf8] sm:$0xff]
      %v5172 = vld [vmem:[#allocation14] sm:$0x3]
      %v5174 = vperm.slane %v5172, 0
      %v5175 = vperm.slane %v5172, 1
      %v5210 = vunpack.c.l.b16 %v5140
      %v5211 = vunpack.c.h.b16 %v5140
      %v5212 = vunpack.c.l.b16 %v5141
      %v5213 = vunpack.c.h.b16 %v5141
      %v5214 = vunpack.c.l.b16 %v5142
      %v5215 = vunpack.c.h.b16 %v5142
      %v5216 = vunpack.c.l.b16 %v5143
      %v5217 = vunpack.c.h.b16 %v5143
      %v5218 = vunpack.c.l.b16 %v5144
      %v5219 = vunpack.c.h.b16 %v5144
      %v5220 = vunpack.c.l.b16 %v5145
      %v5221 = vunpack.c.h.b16 %v5145
      %v5222 = vunpack.c.l.b16 %v5146
      %v5223 = vunpack.c.h.b16 %v5146
      %v5224 = vunpack.c.l.b16 %v5147
      %v5225 = vunpack.c.h.b16 %v5147
      %v5226 = vunpack.c.l.b16 %v5148
      %v5227 = vunpack.c.h.b16 %v5148
      %v5228 = vunpack.c.l.b16 %v5149
      %v5229 = vunpack.c.h.b16 %v5149
      %v5230 = vunpack.c.l.b16 %v5150
      %v5231 = vunpack.c.h.b16 %v5150
      %v5232 = vunpack.c.l.b16 %v5151
      %v5233 = vunpack.c.h.b16 %v5151
      %v5234 = vunpack.c.l.b16 %v5152
      %v5235 = vunpack.c.h.b16 %v5152
      %v5236 = vunpack.c.l.b16 %v5153
      %v5237 = vunpack.c.h.b16 %v5153
      %v5238 = vunpack.c.l.b16 %v5154
      %v5239 = vunpack.c.h.b16 %v5154
      %v5240 = vunpack.c.l.b16 %v5155
      %v5241 = vunpack.c.h.b16 %v5155
      %v5242 = vunpack.c.l.b16 %v5156
      %v5243 = vunpack.c.h.b16 %v5156
      %v5244 = vunpack.c.l.b16 %v5157
      %v5245 = vunpack.c.h.b16 %v5157
      %v5246 = vunpack.c.l.b16 %v5158
      %v5247 = vunpack.c.h.b16 %v5158
      %v5248 = vunpack.c.l.b16 %v5159
      %v5249 = vunpack.c.h.b16 %v5159
      %v5250 = vunpack.c.l.b16 %v5160
      %v5251 = vunpack.c.h.b16 %v5160
      %v5252 = vunpack.c.l.b16 %v5161
      %v5253 = vunpack.c.h.b16 %v5161
      %v5254 = vunpack.c.l.b16 %v5162
      %v5255 = vunpack.c.h.b16 %v5162
      %v5256 = vunpack.c.l.b16 %v5163
      %v5257 = vunpack.c.h.b16 %v5163
      %v5258 = vunpack.c.l.b16 %v5164
      %v5259 = vunpack.c.h.b16 %v5164
      %v5260 = vunpack.c.l.b16 %v5165
      %v5261 = vunpack.c.h.b16 %v5165
      %v5262 = vunpack.c.l.b16 %v5166
      %v5263 = vunpack.c.h.b16 %v5166
      %v5264 = vunpack.c.l.b16 %v5167
      %v5265 = vunpack.c.h.b16 %v5167
      %v5266 = vunpack.c.l.b16 %v5168
      %v5267 = vunpack.c.h.b16 %v5168
      %v5268 = vunpack.c.l.b16 %v5169
      %v5269 = vunpack.c.h.b16 %v5169
      %v5270 = vunpack.c.l.b16 %v5170
      %v5271 = vunpack.c.h.b16 %v5170
      %v5272 = vunpack.c.l.b16 %v5171
      %v5273 = vunpack.c.h.b16 %v5171
      %v5274 = vpack.c.b16 %v5212, %v5210
      %v5275 = vpack.c.b16 %v5213, %v5211
      %v5276 = vpack.c.b16 %v5216, %v5214
      %v5277 = vpack.c.b16 %v5217, %v5215
      %v5278 = vpack.c.b16 %v5220, %v5218
      %v5279 = vpack.c.b16 %v5221, %v5219
      %v5280 = vpack.c.b16 %v5224, %v5222
      %v5281 = vpack.c.b16 %v5225, %v5223
      %v5282 = vpack.c.b16 %v5228, %v5226
      %v5283 = vpack.c.b16 %v5229, %v5227
      %v5284 = vpack.c.b16 %v5232, %v5230
      %v5285 = vpack.c.b16 %v5233, %v5231
      %v5286 = vpack.c.b16 %v5236, %v5234
      %v5287 = vpack.c.b16 %v5237, %v5235
      %v5288 = vpack.c.b16 %v5240, %v5238
      %v5289 = vpack.c.b16 %v5241, %v5239
      %v5290 = vpack.c.b16 %v5244, %v5242
      %v5291 = vpack.c.b16 %v5245, %v5243
      %v5292 = vpack.c.b16 %v5248, %v5246
      %v5293 = vpack.c.b16 %v5249, %v5247
      %v5294 = vpack.c.b16 %v5252, %v5250
      %v5295 = vpack.c.b16 %v5253, %v5251
      %v5296 = vpack.c.b16 %v5256, %v5254
      %v5297 = vpack.c.b16 %v5257, %v5255
      %v5298 = vpack.c.b16 %v5260, %v5258
      %v5299 = vpack.c.b16 %v5261, %v5259
      %v5300 = vpack.c.b16 %v5264, %v5262
      %v5301 = vpack.c.b16 %v5265, %v5263
      %v5302 = vpack.c.b16 %v5268, %v5266
      %v5303 = vpack.c.b16 %v5269, %v5267
      %v5304 = vpack.c.b16 %v5272, %v5270
      %v5305 = vpack.c.b16 %v5273, %v5271
      %5338 = vmatpush.bf16.msra.mxu0 %v5288
      %5339 = vmatpush.bf16.msra.mxu0 %v5286
      %5340 = vmatpush.bf16.msra.mxu0 %v5284
      %5341 = vmatpush.bf16.msra.mxu0 %v5282
      %5342 = vmatpush.bf16.msra.mxu0 %v5280
      %5343 = vmatpush.bf16.msra.mxu0 %v5278
      %5344 = vmatpush.bf16.msra.mxu0 %v5276
      %5345 = vmatpush.bf16.msra.mxu0 %v5274
      %5346 = vmatmul.bf16.gmra.mxu0 %v5138
      %v5347 = vpop.f32.mrf.mxu0
      %v5348 = vadd.f32 %v5174, %v5347
      %v5349 = vpop.f32.mrf.mxu0
      %5350 = vdwg.mxu0
      %5351 = vmatpush.bf16.msra.mxu0 %v5304
      %5352 = vmatpush.bf16.msra.mxu0 %v5302
      %5353 = vmatpush.bf16.msra.mxu0 %v5300
      %5354 = vmatpush.bf16.msra.mxu0 %v5298
      %5355 = vmatpush.bf16.msra.mxu0 %v5296
      %5356 = vmatpush.bf16.msra.mxu0 %v5294
      %5357 = vmatpush.bf16.msra.mxu0 %v5292
      %5358 = vmatpush.bf16.msra.mxu0 %v5290
      %5359 = vmatmul.bf16.gmra.mxu0 %v5139
      %v5360 = vpop.f32.mrf.mxu0
      %v5361 = vadd.f32 %v5348, %v5360
      %v5362 = vpop.f32.mrf.mxu0
      %5363 = vdwg.mxu0
      %5364 = vmatpush.bf16.msra.mxu0 %v5289
      %5365 = vmatpush.bf16.msra.mxu0 %v5287
      %5366 = vmatpush.bf16.msra.mxu0 %v5285
      %5367 = vmatpush.bf16.msra.mxu0 %v5283
      %5368 = vmatpush.bf16.msra.mxu0 %v5281
      %5369 = vmatpush.bf16.msra.mxu0 %v5279
      %5370 = vmatpush.bf16.msra.mxu0 %v5277
      %5371 = vmatpush.bf16.msra.mxu0 %v5275
      %5372 = vmatmul.bf16.gmra.mxu0 %v5138
      %v5373 = vpop.f32.mrf.mxu0
      %v5374 = vadd.f32 %v5175, %v5373
      %v5375 = vpop.f32.mrf.mxu0
      %5376 = vdwg.mxu0
      %5377 = vmatpush.bf16.msra.mxu0 %v5305
      %5378 = vmatpush.bf16.msra.mxu0 %v5303
      %5379 = vmatpush.bf16.msra.mxu0 %v5301
      %5380 = vmatpush.bf16.msra.mxu0 %v5299
      %5381 = vmatpush.bf16.msra.mxu0 %v5297
      %5382 = vmatpush.bf16.msra.mxu0 %v5295
      %5383 = vmatpush.bf16.msra.mxu0 %v5293
      %5384 = vmatpush.bf16.msra.mxu0 %v5291
      %5385 = vmatmul.bf16.gmra.mxu0 %v5139
      %v5386 = vpop.f32.mrf.mxu0
      %v5387 = vadd.f32 %v5374, %v5386
      %v5388 = vpop.f32.mrf.mxu0
      %5389 = vdwg.mxu0
      %v5392 = vrot.slane %v5387, 6
      %v5393 = vsel %vm4077, %v5361, %v5392
      %5395 = vst [vmem:[#allocation15] sm:$0xf] %v5393
    $region65: #{tpu_custom_call.1} parent=1 // pred_fallthru
      _
    // Predicated region
    $region66: #{tpu_custom_call.1} parent=1 // pred_check
      _
    $region67: #{tpu_custom_call.1} parent=1 // pred_check_branch
      %5397 = sbr.rel (0) target = $region69
    $region68: #{tpu_custom_call.1} parent=1 // pred_region
      %5399 = vsyncadd [#allocation5], 0
      %s5401 = sshll.u32 [#allocation15], 4
      %s5402 = int_to_ptr.vmem [resolvable:$true] %s5401
      %s5403 = sshll.u32 %s7, 4
      %s5404 = int_to_ptr.hbm [resolvable:$true] %s5403
      %5406 = dma.vmem_to_hbm [thread:$0]  %s5402, 64, %s5404, [#allocation5]
    $region69: #{tpu_custom_call.1} parent=1 // pred_fallthru
      _
    // Predicated region
    $region70: #{tpu_custom_call.1} parent=1 // pred_check
      _
    $region71: #{tpu_custom_call.1} parent=1 // pred_check_branch
      %5408 = sbr.rel (0) target = $region73
    $region72: #{tpu_custom_call.1} parent=1 // pred_region
      %5410 = dma.done [#allocation5], 64
    $region73: #{tpu_custom_call.1} parent=1 // pred_fallthru
      _
    %5411 = vsyncpa [#allocation4], 1
    %5412 = vsyncpa [#allocation7], 1
    %5413 = vsyncpa [#allocation10], 1
    %5414 = vsyncpa [#allocation13], 1
    %5415 = vsyncpa [#allocation5], 1

</llo_original>
